<compile_context>
chip_gen: v5e
topology: v5e:2x2
jax: 0.10.0
libtpu: 0.0.40
codegen_flags: <defaults>
</compile_context>

<pallas_src>
import jax
import jax.numpy as jnp
from jax.experimental import pallas as pl
from jax.experimental.pallas import tpu as pltpu

EPS = 1e-5
LANE = 128


# ------------------------------- small helpers --------------------------------
def _ceil_to(v, m):
    return ((v + m - 1) // m) * m


def _pad_tail(a, tail):
    """Zero-pad the trailing dims of `a` up to `tail`."""
    pads = [(0, 0)] * (a.ndim - len(tail))
    for cur, tgt in zip(a.shape[a.ndim - len(tail):], tail):
        pads.append((0, tgt - cur))
    if not any(p[1] for p in pads):
        return a
    return jnp.pad(a, pads)


def _pick_th(h, w, target_rows=1024):
    """Largest divisor of H whose tile (TH*W rows) stays near the target row count."""
    best = 1
    for th in range(1, h + 1):
        if h % th == 0 and th * w <= max(target_rows, w):
            best = th
    return best


def _bn_affine(s, ss, gamma, beta, m):
    """Fold training-mode BN batch stats (sum, sumsq over m pixels) into scale/shift."""
    mean = s / m
    var = jnp.maximum(ss / m - mean * mean, 0.0)
    scale = gamma * jax.lax.rsqrt(var + EPS)
    return scale, beta - mean * scale


def _vmem_bytes(th, w, cin_p, cout_p):
    """Rough per-grid-step VMEM footprint (double-buffered streams + in-kernel temps)."""
    rows = (th + 2) * w
    tile_in = rows * cin_p * 2                        # bf16 input window (center + halos)
    tile_out = th * w * cout_p * 2                    # bf16 output tile
    weights = (9 * cin_p + cin_p) * cout_p * 2        # packed 3x3 taps + 1x1 shortcut
    scratch = th * w * cout_p * 4 + 3 * rows * cin_p * 2   # f32 acc + packed slab
    return 2 * (tile_in + 2 * tile_out + weights) + scratch + (2 << 20)


def _cparams(sem, vmem_bytes=0):
    kwargs = {"dimension_semantics": sem}
    if vmem_bytes > (32 << 20):
        # Large-channel configs exceed the 32 MiB scoped default; stay under v7x's 64 MiB.
        kwargs["vmem_limit_bytes"] = int(min(vmem_bytes, 64 << 20))
    return pltpu.CompilerParams(**kwargs)


# ---------------------------------- kernels ------------------------------------
def _packed_slab(y, th, w):
    """(TH+2, W, C) -> (TH+2, W, 3C): fold the 3 column taps into the contraction dim."""
    zcol = jnp.zeros((th + 2, 1, y.shape[-1]), y.dtype)
    return jnp.concatenate([
        jnp.concatenate([zcol, y[:, :w - 1, :]], axis=1),   # dx = 0 (input col w-1)
        y,                                                  # dx = 1 (input col w)
        jnp.concatenate([y[:, 1:, :], zcol], axis=1),       # dx = 2 (input col w+1)
    ], axis=-1)


def conv1_kernel(xu_ref, xc_ref, xd_ref, w1_ref, ws_ref, y1_ref, sc_ref, st_ref):
    """Pass A: conv1 (3 packed-tap MXU matmuls) + 1x1 shortcut conv.  Writes raw bf16
    activations and this tile's per-channel sum / sum-of-squares partials."""
    j = pl.program_id(1)
    nhb = pl.num_programs(1)
    th, w, cin = xc_ref.shape
    cout = y1_ref.shape[-1]
    r = th * w

    # Row halo from neighbouring H-blocks; zeroed at the image boundary (conv zero-pad).
    top = (j > 0).astype(jnp.bfloat16)
    bot = (j < nhb - 1).astype(jnp.bfloat16)
    x = jnp.concatenate([xu_ref[...] * top, xc_ref[...], xd_ref[...] * bot], axis=0)

    slab = _packed_slab(x, th, w)                  # (TH+2, W, 3*Cin) bf16

    acc = jnp.zeros((r, cout), jnp.float32)
    xs_center = None
    for dy in range(3):                            # 3 row-shifted matmuls, K = 3*Cin
        xs = slab[dy:dy + th].reshape(r, 3 * cin)
        if dy == 1:
            xs_center = xs
        acc = acc + jnp.dot(xs, w1_ref[dy], preferred_element_type=jnp.float32)
    y1_ref[...] = acc.reshape(th, w, cout).astype(y1_ref.dtype)

    # 1x1 shortcut conv: reuse the dy=1 packed operand's centre chunk (lane-aligned slice).
    sc = jnp.dot(xs_center[:, cin:2 * cin], ws_ref[...], preferred_element_type=jnp.float32)
    sc_ref[...] = sc.reshape(th, w, cout).astype(sc_ref.dtype)

    # Per-(sample, H-block) BN-stat partials: conv1 sum/sumsq, shortcut sum/sumsq.
    st_ref[...] = jnp.concatenate([
        jnp.sum(acc, axis=0, keepdims=True), jnp.sum(acc * acc, axis=0, keepdims=True),
        jnp.sum(sc, axis=0, keepdims=True), jnp.sum(sc * sc, axis=0, keepdims=True)], axis=0)


def conv2_kernel(yu_ref, yc_ref, yd_ref, w2_ref, c1_ref, c2_ref, st_ref):
    """Pass B: bn1+relu (folded affine) on the raw conv1 tile (+ its row halo) then conv2
    (packed taps).  Writes raw bf16 conv2 and this tile's bn2-stat partials."""
    j = pl.program_id(1)
    nhb = pl.num_programs(1)
    th, w, c = yc_ref.shape
    cout = c2_ref.shape[-1]
    r = th * w

    scale1 = c1_ref[0:1, :].reshape(1, 1, c)
    shift1 = c1_ref[1:2, :].reshape(1, 1, c)

    def act(v):                                    # bn1 affine + relu
        return jnp.maximum(v.astype(jnp.float32) * scale1 + shift1, 0.0)

    top = (j > 0).astype(jnp.float32)
    bot = (j < nhb - 1).astype(jnp.float32)
    y = jnp.concatenate([act(yu_ref[...]) * top, act(yc_ref[...]),
                         act(yd_ref[...]) * bot], axis=0).astype(jnp.bfloat16)

    slab = _packed_slab(y, th, w)                  # (TH+2, W, 3*C) bf16

    acc = jnp.zeros((r, cout), jnp.float32)
    for dy in range(3):
        ys = slab[dy:dy + th].reshape(r, 3 * c)
        acc = acc + jnp.dot(ys, w2_ref[dy], preferred_element_type=jnp.float32)
    c2_ref[...] = acc.reshape(th, w, cout).astype(c2_ref.dtype)

    st_ref[...] = jnp.concatenate([
        jnp.sum(acc, axis=0, keepdims=True),
        jnp.sum(acc * acc, axis=0, keepdims=True)], axis=0)


def final_kernel(c2_ref, sc_ref, cst_ref, gate_ref, out_ref):
    """Pass C: bn2 + bn_s(shortcut) + SE gate (precomputed per sample) + final ReLU."""
    c = cst_ref.shape[-1]
    cst = cst_ref[...]
    scale2, shift2 = cst[0:1].reshape(1, 1, c), cst[1:2].reshape(1, 1, c)
    scale_s, shift_s = cst[2:3].reshape(1, 1, c), cst[3:4].reshape(1, 1, c)
    gate = gate_ref[...].reshape(1, 1, c)
    pre = (c2_ref[...].astype(jnp.float32) * scale2 + shift2
           + sc_ref[...].astype(jnp.float32) * scale_s + shift_s)
    out_ref[...] = jnp.maximum(pre * gate, 0.0).astype(out_ref.dtype)


# --------------------------------- wrapper --------------------------------------
def residual_block(x_nchw, p):
    N, Cin, H, W = x_nchw.shape
    Cout = p["w1"].shape[0]
    Cr = p["fc1_w"].shape[0]
    cin_p = _ceil_to(Cin, LANE)
    cout_p = _ceil_to(Cout, LANE)
    cr_p = _ceil_to(Cr, LANE)
    th = _pick_th(H, W)
    hb = H // th
    m = float(N * H * W)

    # NHWC, channel-padded (lane-dense), bf16 MXU operands.
    x = _pad_tail(jnp.transpose(x_nchw, (0, 2, 3, 1)), (cin_p,)).astype(jnp.bfloat16)

    # 3x3 weights -> packed-tap layout (dy, 3*Cin_p, Cout_p); 1x1 shortcut -> (Cin_p, Cout_p).
    def pack3(wv, cpi, cpo):
        wt = _pad_tail(jnp.transpose(wv, (2, 3, 1, 0)), (cpi, cpo))  # (dy, dx, Cin_p, Cout_p)
        return wt.reshape(3, 3 * cpi, cpo).astype(jnp.bfloat16)

    w1p = pack3(p["w1"], cin_p, cout_p)
    w2p = pack3(p["w2"], cout_p, cout_p)
    wsm = _pad_tail(p["ws"][:, :, 0, 0].T, (cin_p, cout_p)).astype(jnp.bfloat16)
    f1w = _pad_tail(p["fc1_w"].T, (cout_p, cr_p)).astype(jnp.float32)
    f1b = _pad_tail(p["fc1_b"], (cr_p,)).astype(jnp.float32)
    f2w = _pad_tail(p["fc2_w"].T, (cr_p, cout_p)).astype(jnp.float32)
    f2b = _pad_tail(p["fc2_b"], (cout_p,)).astype(jnp.float32)
    g1 = _pad_tail(p["g1"], (cout_p,)); b1 = _pad_tail(p["b1"], (cout_p,))
    g2 = _pad_tail(p["g2"], (cout_p,)); b2 = _pad_tail(p["b2"], (cout_p,))
    gs = _pad_tail(p["gs"], (cout_p,)); bs = _pad_tail(p["bs"], (cout_p,))

    # Halo-windowed H-row tiling: centre block plus two 1-row halo streams read from the
    # same plain (N, H, W, C) array (no wrapper gather; ~(TH+2)/TH read duplication only).
    def center(ch):
        return pl.BlockSpec((None, th, W, ch), lambda i, j: (i, j, 0, 0))

    def halo_up(ch):
        return pl.BlockSpec((None, 1, W, ch),
                            lambda i, j: (i, jnp.maximum(j * th - 1, 0), 0, 0))

    def halo_down(ch):
        return pl.BlockSpec((None, 1, W, ch),
                            lambda i, j: (i, jnp.minimum((j + 1) * th, H - 1), 0, 0))

    # TODO(synk): for very large Cout on v7x (64 MiB VMEM), single-buffer the constant
    #             weight streams (pipeline_mode=pl.Buffered(1)) before shrinking the tile.

    # ---- Pass A: conv1 + 1x1 shortcut (raw bf16) + per-tile BN-stat partials -------------
    y1, sc, st_a = pl.pallas_call(
        conv1_kernel,
        grid=(N, hb),
        in_specs=[
            halo_up(cin_p), center(cin_p), halo_down(cin_p),
            pl.BlockSpec((3, 3 * cin_p, cout_p), lambda i, j: (0, 0, 0)),
            pl.BlockSpec((cin_p, cout_p), lambda i, j: (0, 0)),
        ],
        out_specs=[
            center(cout_p), center(cout_p),
            pl.BlockSpec((None, None, 4, cout_p), lambda i, j: (i, j, 0, 0)),
        ],
        out_shape=[
            jax.ShapeDtypeStruct((N, H, W, cout_p), jnp.bfloat16),
            jax.ShapeDtypeStruct((N, H, W, cout_p), jnp.bfloat16),
            jax.ShapeDtypeStruct((N, hb, 4, cout_p), jnp.float32),
        ],
        compiler_params=_cparams(("parallel", "parallel"),
                                 _vmem_bytes(th, W, cin_p, cout_p)),
    )(x, x, x, w1p, wsm)

    # O(C) glue: fold batch statistics into BN affines (training-mode BatchNorm).
    s_a = st_a.sum(axis=(0, 1))
    scale1, shift1 = _bn_affine(s_a[0], s_a[1], g1, b1, m)
    scale_s, shift_s = _bn_affine(s_a[2], s_a[3], gs, bs, m)
    c1 = jnp.stack([scale1, shift1]).astype(jnp.float32)             # (2, Cout_p)
    pool_s = st_a[:, :, 2, :].sum(axis=1)                            # (N, Cout_p)

    # ---- Pass B: bn1+relu (in-kernel affine) + conv2 (raw bf16) + bn2-stat partials ------
    c2, st_c = pl.pallas_call(
        conv2_kernel,
        grid=(N, hb),
        in_specs=[
            halo_up(cout_p), center(cout_p), halo_down(cout_p),
            pl.BlockSpec((3, 3 * cout_p, cout_p), lambda i, j: (0, 0, 0)),
            pl.BlockSpec((2, cout_p), lambda i, j: (0, 0)),
        ],
        out_specs=[
            center(cout_p),
            pl.BlockSpec((None, None, 2, cout_p), lambda i, j: (i, j, 0, 0)),
        ],
        out_shape=[
            jax.ShapeDtypeStruct((N, H, W, cout_p), jnp.bfloat16),
            jax.ShapeDtypeStruct((N, hb, 2, cout_p), jnp.float32),
        ],
        compiler_params=_cparams(("parallel", "parallel"),
                                 _vmem_bytes(th, W, cout_p, cout_p)),
    )(y1, y1, y1, w2p, c1)

    s_c = st_c.sum(axis=(0, 1))
    scale2, shift2 = _bn_affine(s_c[0], s_c[1], g2, b2, m)
    cst = jnp.stack([scale2, shift2, scale_s, shift_s]).astype(jnp.float32)  # (4, Cout_p)

    # SE gate per sample from the raw per-sample sums (tiny FCs + exact sigmoid, XLA glue).
    pool_c = st_c[:, :, 0, :].sum(axis=1)                             # (N, Cout_p)
    pooled = (pool_c * scale2 + pool_s * scale_s) / (H * W) + shift2 + shift_s
    hid = jnp.maximum(pooled @ f1w + f1b, 0.0)
    gate = jax.nn.sigmoid(hid @ f2w + f2b).reshape(N, 1, cout_p).astype(jnp.float32)

    # ---- Pass C: bn2 + shortcut bn + SE gate + final relu (fully parallel, bf16 out) -----
    out = pl.pallas_call(
        final_kernel,
        grid=(N, hb),
        in_specs=[
            center(cout_p), center(cout_p),
            pl.BlockSpec((4, cout_p), lambda i, j: (0, 0)),
            pl.BlockSpec((None, 1, cout_p), lambda i, j: (i, 0, 0)),
        ],
        out_specs=center(cout_p),
        out_shape=jax.ShapeDtypeStruct((N, H, W, cout_p), jnp.bfloat16),
        compiler_params=_cparams(("parallel", "parallel")),
    )(c2, sc, cst, gate)

    out = out[..., :Cout]
    return jnp.transpose(out, (0, 3, 1, 2)).astype(jnp.float32)       # NCHW f32


# --------------------------------- params / reference ---------------------------
def init_params(key, cin, cout, reduction=16):
    cr = max(cout // reduction, 1)
    ks = jax.random.split(key, 12)
    return {
        "w1": jax.random.normal(ks[0], (cout, cin, 3, 3), jnp.float32) * 0.1,
        "g1": 1.0 + 0.1 * jax.random.normal(ks[1], (cout,), jnp.float32),
        "b1": 0.1 * jax.random.normal(ks[2], (cout,), jnp.float32),
        "w2": jax.random.normal(ks[3], (cout, cout, 3, 3), jnp.float32) * 0.1,
        "g2": 1.0 + 0.1 * jax.random.normal(ks[4], (cout,), jnp.float32),
        "b2": 0.1 * jax.random.normal(ks[5], (cout,), jnp.float32),
        "ws": jax.random.normal(ks[6], (cout, cin, 1, 1), jnp.float32) * 0.1,
        "gs": 1.0 + 0.1 * jax.random.normal(ks[7], (cout,), jnp.float32),
        "bs": 0.1 * jax.random.normal(ks[8], (cout,), jnp.float32),
        "fc1_w": jax.random.normal(ks[9], (cr, cout), jnp.float32) * 0.2,
        "fc1_b": 0.1 * jax.random.normal(ks[10], (cr,), jnp.float32),
        "fc2_w": jax.random.normal(ks[11], (cout, cr), jnp.float32) * 0.2,
        "fc2_b": jnp.zeros((cout,), jnp.float32),
    }


def reference(x, p):
    def conv(x_, w, pad):
        return jax.lax.conv_general_dilated(
            x_, w, (1, 1), ((pad, pad), (pad, pad)),
            dimension_numbers=("NCHW", "OIHW", "NCHW"))

    def bn(x_, g, b):
        mean = x_.mean(axis=(0, 2, 3), keepdims=True)
        var = ((x_ - mean) ** 2).mean(axis=(0, 2, 3), keepdims=True)
        return (x_ - mean) * jax.lax.rsqrt(var + EPS) * g.reshape(1, -1, 1, 1) + b.reshape(1, -1, 1, 1)

    out = jnp.maximum(bn(conv(x, p["w1"], 1), p["g1"], p["b1"]), 0.0)
    out = bn(conv(out, p["w2"], 1), p["g2"], p["b2"])
    out = out + bn(conv(x, p["ws"], 0), p["gs"], p["bs"])
    pooled = out.mean(axis=(2, 3))
    h = jnp.maximum(pooled @ p["fc1_w"].T + p["fc1_b"], 0.0)
    gate = jax.nn.sigmoid(h @ p["fc2_w"].T + p["fc2_b"])
    return jnp.maximum(out * gate[:, :, None, None], 0.0)


# ------------------------------------ main --------------------------------------
if __name__ == "__main__":
    N, Cin, Cout, H, W = 2, 16, 32, 16, 16
    key = jax.random.PRNGKey(0)
    kx, kp = jax.random.split(key)
    x = jax.random.normal(kx, (N, Cin, H, W), jnp.float32)
    params = init_params(kp, Cin, Cout)

    out = jax.jit(residual_block)(x, params)
    out = jax.block_until_ready(out)

    ref = reference(x, params)
    assert out.shape == (N, Cout, H, W)
    # bf16 MXU operands and bf16 intermediates -> tolerance loosened vs the f32 reference.
    assert jnp.allclose(out, ref, atol=5e-2, rtol=5e-2), float(jnp.max(jnp.abs(out - ref)))

    print("KERNEL_OK")
</pallas_src>

<mosaic_0001>
module attributes {stable_mosaic.version = 11 : i64} {
  func.func @conv1_kernel(%arg0: i32, %arg1: i32, %arg2: memref<1x1x16x128xbf16, #tpu.memory_space<vmem>>, %arg3: memref<1x16x16x128xbf16, #tpu.memory_space<vmem>>, %arg4: memref<1x1x16x128xbf16, #tpu.memory_space<vmem>>, %arg5: memref<3x384x128xbf16, #tpu.memory_space<vmem>>, %arg6: memref<128x128xbf16, #tpu.memory_space<vmem>>, %arg7: memref<1x16x16x128xbf16, #tpu.memory_space<vmem>>, %arg8: memref<1x16x16x128xbf16, #tpu.memory_space<vmem>>, %arg9: memref<1x1x4x128xf32, #tpu.memory_space<vmem>>) attributes {dimension_semantics = [#tpu.dimension_semantics<parallel>, #tpu.dimension_semantics<parallel>], iteration_bounds = array<i64: 2, 1>, scalar_prefetch = 0 : i64, scratch_operands = 0 : i64, tpu.core_type = #tpu.core_type<tc>, window_params = [{transform_indices = @transform_0, window_bounds = array<i64: 1, 1, 16, 128>}, {transform_indices = @transform_1, window_bounds = array<i64: 1, 16, 16, 128>}, {transform_indices = @transform_2, window_bounds = array<i64: 1, 1, 16, 128>}, {pipeline_mode = #tpu.pipeline_mode<synchronous>, transform_indices = @transform_3, window_bounds = array<i64: 3, 384, 128>}, {pipeline_mode = #tpu.pipeline_mode<synchronous>, transform_indices = @transform_4, window_bounds = array<i64: 128, 128>}, {transform_indices = @transform_5, window_bounds = array<i64: 1, 16, 16, 128>}, {transform_indices = @transform_6, window_bounds = array<i64: 1, 16, 16, 128>}, {transform_indices = @transform_7, window_bounds = array<i64: 1, 1, 4, 128>}]} {
    %c0_i32 = arith.constant 0 : i32
    %0 = arith.cmpi sgt, %arg1, %c0_i32 : i32
    %1 = arith.extui %0 : i1 to i32
    %2 = arith.sitofp %1 : i32 to f32
    %3 = arith.truncf %2 : f32 to bf16
    %c0_i32_0 = arith.constant 0 : i32
    %4 = arith.cmpi slt, %arg1, %c0_i32_0 : i32
    %5 = arith.extui %4 : i1 to i32
    %6 = arith.sitofp %5 : i32 to f32
    %7 = arith.truncf %6 : f32 to bf16
    %c0 = arith.constant 0 : index
    %c0_1 = arith.constant 0 : index
    %c0_2 = arith.constant 0 : index
    %c0_3 = arith.constant 0 : index
    %8 = vector.load %arg2[%c0, %c0_1, %c0_2, %c0_3] : memref<1x1x16x128xbf16, #tpu.memory_space<vmem>>, vector<1x1x16x128xbf16>
    %9 = vector.shape_cast %8 : vector<1x1x16x128xbf16> to vector<1x16x128xbf16>
    %10 = vector.broadcast %3 : bf16 to vector<1x16x128xbf16>
    %11 = arith.mulf %9, %10 : vector<1x16x128xbf16>
    %c0_4 = arith.constant 0 : index
    %c0_5 = arith.constant 0 : index
    %c0_6 = arith.constant 0 : index
    %c0_7 = arith.constant 0 : index
    %12 = vector.load %arg3[%c0_4, %c0_5, %c0_6, %c0_7] : memref<1x16x16x128xbf16, #tpu.memory_space<vmem>>, vector<1x16x16x128xbf16>
    %13 = vector.shape_cast %12 : vector<1x16x16x128xbf16> to vector<16x16x128xbf16>
    %c0_8 = arith.constant 0 : index
    %c0_9 = arith.constant 0 : index
    %c0_10 = arith.constant 0 : index
    %c0_11 = arith.constant 0 : index
    %14 = vector.load %arg4[%c0_8, %c0_9, %c0_10, %c0_11] : memref<1x1x16x128xbf16, #tpu.memory_space<vmem>>, vector<1x1x16x128xbf16>
    %15 = vector.shape_cast %14 : vector<1x1x16x128xbf16> to vector<1x16x128xbf16>
    %16 = vector.broadcast %7 : bf16 to vector<1x16x128xbf16>
    %17 = arith.mulf %15, %16 : vector<1x16x128xbf16>
    %18 = tpu.concatenate %11, %13, %17 in 0 : vector<1x16x128xbf16>, vector<16x16x128xbf16>, vector<1x16x128xbf16> -> vector<18x16x128xbf16>
    %cst = arith.constant 0.000000e+00 : bf16
    %19 = vector.broadcast %cst : bf16 to vector<18x1x128xbf16>
    %20 = vector.extract_strided_slice %18 {offsets = [0, 0, 0], sizes = [18, 15, 128], strides = [1, 1, 1]} : vector<18x16x128xbf16> to vector<18x15x128xbf16>
    %21 = tpu.concatenate %19, %20 in 1 : vector<18x1x128xbf16>, vector<18x15x128xbf16> -> vector<18x16x128xbf16>
    %22 = vector.extract_strided_slice %18 {offsets = [0, 1, 0], sizes = [18, 15, 128], strides = [1, 1, 1]} : vector<18x16x128xbf16> to vector<18x15x128xbf16>
    %23 = tpu.concatenate %22, %19 in 1 : vector<18x15x128xbf16>, vector<18x1x128xbf16> -> vector<18x16x128xbf16>
    %24 = tpu.concatenate %21, %18, %23 in 2 : vector<18x16x128xbf16>, vector<18x16x128xbf16>, vector<18x16x128xbf16> -> vector<18x16x384xbf16>
    %cst_12 = arith.constant 0.000000e+00 : f32
    %25 = vector.broadcast %cst_12 : f32 to vector<256x128xf32>
    %26 = vector.extract_strided_slice %24 {offsets = [0, 0, 0], sizes = [16, 16, 384], strides = [1, 1, 1]} : vector<18x16x384xbf16> to vector<16x16x384xbf16>
    %27 = vector.shape_cast %26 : vector<16x16x384xbf16> to vector<256x384xbf16>
    %c0_13 = arith.constant 0 : index
    %c0_14 = arith.constant 0 : index
    %c0_15 = arith.constant 0 : index
    %28 = vector.load %arg5[%c0_13, %c0_14, %c0_15] : memref<3x384x128xbf16, #tpu.memory_space<vmem>>, vector<1x384x128xbf16>
    %29 = vector.shape_cast %28 : vector<1x384x128xbf16> to vector<384x128xbf16>
    %cst_16 = arith.constant dense<0.000000e+00> : vector<256x128xf32>
    %30 = tpu.matmul %27, %29, %cst_16 {dimension_numbers = #tpu.dot_dimension_numbers<[1], [0], [0], [1], [0, 0, 1, 1], [], []>} : vector<256x384xbf16>, vector<384x128xbf16>, vector<256x128xf32> -> vector<256x128xf32>
    %31 = arith.addf %25, %30 : vector<256x128xf32>
    %32 = vector.extract_strided_slice %24 {offsets = [1, 0, 0], sizes = [16, 16, 384], strides = [1, 1, 1]} : vector<18x16x384xbf16> to vector<16x16x384xbf16>
    %33 = vector.shape_cast %32 : vector<16x16x384xbf16> to vector<256x384xbf16>
    %c1 = arith.constant 1 : index
    %c0_17 = arith.constant 0 : index
    %c0_18 = arith.constant 0 : index
    %34 = vector.load %arg5[%c1, %c0_17, %c0_18] : memref<3x384x128xbf16, #tpu.memory_space<vmem>>, vector<1x384x128xbf16>
    %35 = vector.shape_cast %34 : vector<1x384x128xbf16> to vector<384x128xbf16>
    %cst_19 = arith.constant dense<0.000000e+00> : vector<256x128xf32>
    %36 = tpu.matmul %33, %35, %cst_19 {dimension_numbers = #tpu.dot_dimension_numbers<[1], [0], [0], [1], [0, 0, 1, 1], [], []>} : vector<256x384xbf16>, vector<384x128xbf16>, vector<256x128xf32> -> vector<256x128xf32>
    %37 = arith.addf %31, %36 : vector<256x128xf32>
    %38 = vector.extract_strided_slice %24 {offsets = [2, 0, 0], sizes = [16, 16, 384], strides = [1, 1, 1]} : vector<18x16x384xbf16> to vector<16x16x384xbf16>
    %39 = vector.shape_cast %38 : vector<16x16x384xbf16> to vector<256x384xbf16>
    %c2 = arith.constant 2 : index
    %c0_20 = arith.constant 0 : index
    %c0_21 = arith.constant 0 : index
    %40 = vector.load %arg5[%c2, %c0_20, %c0_21] : memref<3x384x128xbf16, #tpu.memory_space<vmem>>, vector<1x384x128xbf16>
    %41 = vector.shape_cast %40 : vector<1x384x128xbf16> to vector<384x128xbf16>
    %cst_22 = arith.constant dense<0.000000e+00> : vector<256x128xf32>
    %42 = tpu.matmul %39, %41, %cst_22 {dimension_numbers = #tpu.dot_dimension_numbers<[1], [0], [0], [1], [0, 0, 1, 1], [], []>} : vector<256x384xbf16>, vector<384x128xbf16>, vector<256x128xf32> -> vector<256x128xf32>
    %43 = arith.addf %37, %42 : vector<256x128xf32>
    %44 = vector.shape_cast %43 : vector<256x128xf32> to vector<16x16x128xf32>
    %45 = arith.truncf %44 : vector<16x16x128xf32> to vector<16x16x128xbf16>
    %c0_23 = arith.constant 0 : index
    %c0_24 = arith.constant 0 : index
    %c0_25 = arith.constant 0 : index
    %c0_26 = arith.constant 0 : index
    %46 = vector.load %arg7[%c0_23, %c0_24, %c0_25, %c0_26] : memref<1x16x16x128xbf16, #tpu.memory_space<vmem>>, vector<1x16x16x128xbf16>
    %47 = vector.shape_cast %46 : vector<1x16x16x128xbf16> to vector<16x16x128xbf16>
    %48 = vector.shape_cast %45 : vector<16x16x128xbf16> to vector<1x16x16x128xbf16>
    tpu.vector_store %arg7[%c0_23, %c0_24, %c0_25, %c0_26], %48 {strides = array<i32>} : memref<1x16x16x128xbf16, #tpu.memory_space<vmem>>, vector<1x16x16x128xbf16>,
    %49 = vector.extract_strided_slice %33 {offsets = [0, 128], sizes = [256, 128], strides = [1, 1]} : vector<256x384xbf16> to vector<256x128xbf16>
    %c0_27 = arith.constant 0 : index
    %c0_28 = arith.constant 0 : index
    %50 = vector.load %arg6[%c0_27, %c0_28] : memref<128x128xbf16, #tpu.memory_space<vmem>>, vector<128x128xbf16>
    %cst_29 = arith.constant dense<0.000000e+00> : vector<256x128xf32>
    %51 = tpu.matmul %49, %50, %cst_29 {dimension_numbers = #tpu.dot_dimension_numbers<[1], [0], [0], [1], [0, 0, 1, 1], [], []>} : vector<256x128xbf16>, vector<128x128xbf16>, vector<256x128xf32> -> vector<256x128xf32>
    %52 = vector.shape_cast %51 : vector<256x128xf32> to vector<16x16x128xf32>
    %53 = arith.truncf %52 : vector<16x16x128xf32> to vector<16x16x128xbf16>
    %c0_30 = arith.constant 0 : index
    %c0_31 = arith.constant 0 : index
    %c0_32 = arith.constant 0 : index
    %c0_33 = arith.constant 0 : index
    %54 = vector.load %arg8[%c0_30, %c0_31, %c0_32, %c0_33] : memref<1x16x16x128xbf16, #tpu.memory_space<vmem>>, vector<1x16x16x128xbf16>
    %55 = vector.shape_cast %54 : vector<1x16x16x128xbf16> to vector<16x16x128xbf16>
    %56 = vector.shape_cast %53 : vector<16x16x128xbf16> to vector<1x16x16x128xbf16>
    tpu.vector_store %arg8[%c0_30, %c0_31, %c0_32, %c0_33], %56 {strides = array<i32>} : memref<1x16x16x128xbf16, #tpu.memory_space<vmem>>, vector<1x16x16x128xbf16>,
    %cst_34 = arith.constant dense<0.000000e+00> : vector<128xf32>
    %57 = vector.multi_reduction <add>, %43, %cst_34 [0] : vector<256x128xf32> to vector<128xf32>
    %58 = vector.shape_cast %57 : vector<128xf32> to vector<1x128xf32>
    %59 = arith.mulf %43, %43 : vector<256x128xf32>
    %cst_35 = arith.constant dense<0.000000e+00> : vector<128xf32>
    %60 = vector.multi_reduction <add>, %59, %cst_35 [0] : vector<256x128xf32> to vector<128xf32>
    %61 = vector.shape_cast %60 : vector<128xf32> to vector<1x128xf32>
    %cst_36 = arith.constant dense<0.000000e+00> : vector<128xf32>
    %62 = vector.multi_reduction <add>, %51, %cst_36 [0] : vector<256x128xf32> to vector<128xf32>
    %63 = vector.shape_cast %62 : vector<128xf32> to vector<1x128xf32>
    %64 = arith.mulf %51, %51 : vector<256x128xf32>
    %cst_37 = arith.constant dense<0.000000e+00> : vector<128xf32>
    %65 = vector.multi_reduction <add>, %64, %cst_37 [0] : vector<256x128xf32> to vector<128xf32>
    %66 = vector.shape_cast %65 : vector<128xf32> to vector<1x128xf32>
    %67 = tpu.concatenate %58, %61, %63, %66 in 0 : vector<1x128xf32>, vector<1x128xf32>, vector<1x128xf32>, vector<1x128xf32> -> vector<4x128xf32>
    %c0_38 = arith.constant 0 : index
    %c0_39 = arith.constant 0 : index
    %c0_40 = arith.constant 0 : index
    %c0_41 = arith.constant 0 : index
    %68 = vector.load %arg9[%c0_38, %c0_39, %c0_40, %c0_41] : memref<1x1x4x128xf32, #tpu.memory_space<vmem>>, vector<1x1x4x128xf32>
    %69 = vector.shape_cast %68 : vector<1x1x4x128xf32> to vector<4x128xf32>
    %70 = vector.shape_cast %67 : vector<4x128xf32> to vector<1x1x4x128xf32>
    tpu.vector_store %arg9[%c0_38, %c0_39, %c0_40, %c0_41], %70 {strides = array<i32>} : memref<1x1x4x128xf32, #tpu.memory_space<vmem>>, vector<1x1x4x128xf32>,
    return
  }
  func.func @transform_0(%arg0: i32, %arg1: i32) -> (i32, i32, i32, i32) {
    %c16_i32 = arith.constant 16 : i32
    %0 = arith.muli %arg1, %c16_i32 : i32
    %c1_i32 = arith.constant 1 : i32
    %1 = arith.subi %0, %c1_i32 : i32
    %c0_i32 = arith.constant 0 : i32
    %2 = arith.maxsi %1, %c0_i32 : i32
    %c0_i32_0 = arith.constant 0 : i32
    %c0_i32_1 = arith.constant 0 : i32
    %c0_i32_2 = arith.constant 0 : i32
    return %arg0, %2, %c0_i32_0, %c0_i32_1 : i32, i32, i32, i32
  }
  func.func @transform_1(%arg0: i32, %arg1: i32) -> (i32, i32, i32, i32) {
    %c0_i32 = arith.constant 0 : i32
    %c0_i32_0 = arith.constant 0 : i32
    %c0_i32_1 = arith.constant 0 : i32
    return %arg0, %arg1, %c0_i32, %c0_i32_0 : i32, i32, i32, i32
  }
  func.func @transform_2(%arg0: i32, %arg1: i32) -> (i32, i32, i32, i32) {
    %c1_i32 = arith.constant 1 : i32
    %0 = arith.addi %arg1, %c1_i32 : i32
    %c16_i32 = arith.constant 16 : i32
    %1 = arith.muli %0, %c16_i32 : i32
    %c15_i32 = arith.constant 15 : i32
    %2 = arith.minsi %1, %c15_i32 : i32
    %c0_i32 = arith.constant 0 : i32
    %c0_i32_0 = arith.constant 0 : i32
    %c0_i32_1 = arith.constant 0 : i32
    return %arg0, %2, %c0_i32, %c0_i32_0 : i32, i32, i32, i32
  }
  func.func @transform_3(%arg0: i32, %arg1: i32) -> (i32, i32, i32) {
    %c0_i32 = arith.constant 0 : i32
    %c0_i32_0 = arith.constant 0 : i32
    %c0_i32_1 = arith.constant 0 : i32
    %c0_i32_2 = arith.constant 0 : i32
    return %c0_i32, %c0_i32_0, %c0_i32_1 : i32, i32, i32
  }
  func.func @transform_4(%arg0: i32, %arg1: i32) -> (i32, i32) {
    %c0_i32 = arith.constant 0 : i32
    %c0_i32_0 = arith.constant 0 : i32
    %c0_i32_1 = arith.constant 0 : i32
    return %c0_i32, %c0_i32_0 : i32, i32
  }
  func.func @transform_5(%arg0: i32, %arg1: i32) -> (i32, i32, i32, i32) {
    %c0_i32 = arith.constant 0 : i32
    %c0_i32_0 = arith.constant 0 : i32
    %c0_i32_1 = arith.constant 0 : i32
    return %arg0, %arg1, %c0_i32, %c0_i32_0 : i32, i32, i32, i32
  }
  func.func @transform_6(%arg0: i32, %arg1: i32) -> (i32, i32, i32, i32) {
    %c0_i32 = arith.constant 0 : i32
    %c0_i32_0 = arith.constant 0 : i32
    %c0_i32_1 = arith.constant 0 : i32
    return %arg0, %arg1, %c0_i32, %c0_i32_0 : i32, i32, i32, i32
  }
  func.func @transform_7(%arg0: i32, %arg1: i32) -> (i32, i32, i32, i32) {
    %c0_i32 = arith.constant 0 : i32
    %c0_i32_0 = arith.constant 0 : i32
    %c0_i32_1 = arith.constant 0 : i32
    return %arg0, %arg1, %c0_i32, %c0_i32_0 : i32, i32, i32, i32
  }
}

module attributes {stable_mosaic.version = 11 : i64} {
  func.func @conv2_kernel(%arg0: i32, %arg1: i32, %arg2: memref<1x1x16x128xbf16, #tpu.memory_space<vmem>>, %arg3: memref<1x16x16x128xbf16, #tpu.memory_space<vmem>>, %arg4: memref<1x1x16x128xbf16, #tpu.memory_space<vmem>>, %arg5: memref<3x384x128xbf16, #tpu.memory_space<vmem>>, %arg6: memref<2x128xf32, #tpu.memory_space<vmem>>, %arg7: memref<1x16x16x128xbf16, #tpu.memory_space<vmem>>, %arg8: memref<1x1x2x128xf32, #tpu.memory_space<vmem>>) attributes {dimension_semantics = [#tpu.dimension_semantics<parallel>, #tpu.dimension_semantics<parallel>], iteration_bounds = array<i64: 2, 1>, scalar_prefetch = 0 : i64, scratch_operands = 0 : i64, tpu.core_type = #tpu.core_type<tc>, window_params = [{transform_indices = @transform_0, window_bounds = array<i64: 1, 1, 16, 128>}, {transform_indices = @transform_1, window_bounds = array<i64: 1, 16, 16, 128>}, {transform_indices = @transform_2, window_bounds = array<i64: 1, 1, 16, 128>}, {pipeline_mode = #tpu.pipeline_mode<synchronous>, transform_indices = @transform_3, window_bounds = array<i64: 3, 384, 128>}, {pipeline_mode = #tpu.pipeline_mode<synchronous>, transform_indices = @transform_4, window_bounds = array<i64: 2, 128>}, {transform_indices = @transform_5, window_bounds = array<i64: 1, 16, 16, 128>}, {transform_indices = @transform_6, window_bounds = array<i64: 1, 1, 2, 128>}]} {
    %c0 = arith.constant 0 : index
    %c0_0 = arith.constant 0 : index
    %0 = vector.load %arg6[%c0, %c0_0] : memref<2x128xf32, #tpu.memory_space<vmem>>, vector<1x128xf32>
    %1 = vector.shape_cast %0 : vector<1x128xf32> to vector<1x1x128xf32>
    %c1 = arith.constant 1 : index
    %c0_1 = arith.constant 0 : index
    %2 = vector.load %arg6[%c1, %c0_1] : memref<2x128xf32, #tpu.memory_space<vmem>>, vector<1x128xf32>
    %3 = vector.shape_cast %2 : vector<1x128xf32> to vector<1x1x128xf32>
    %c0_i32 = arith.constant 0 : i32
    %4 = arith.cmpi sgt, %arg1, %c0_i32 : i32
    %5 = arith.extui %4 : i1 to i32
    %6 = arith.sitofp %5 : i32 to f32
    %c0_i32_2 = arith.constant 0 : i32
    %7 = arith.cmpi slt, %arg1, %c0_i32_2 : i32
    %8 = arith.extui %7 : i1 to i32
    %9 = arith.sitofp %8 : i32 to f32
    %c0_3 = arith.constant 0 : index
    %c0_4 = arith.constant 0 : index
    %c0_5 = arith.constant 0 : index
    %c0_6 = arith.constant 0 : index
    %10 = vector.load %arg2[%c0_3, %c0_4, %c0_5, %c0_6] : memref<1x1x16x128xbf16, #tpu.memory_space<vmem>>, vector<1x1x16x128xbf16>
    %11 = vector.shape_cast %10 : vector<1x1x16x128xbf16> to vector<1x16x128xbf16>
    %12 = arith.extf %11 : vector<1x16x128xbf16> to vector<1x16x128xf32>
    %13 = vector.broadcast %1 : vector<1x1x128xf32> to vector<1x16x128xf32>
    %14 = arith.mulf %12, %13 : vector<1x16x128xf32>
    %15 = vector.broadcast %3 : vector<1x1x128xf32> to vector<1x16x128xf32>
    %16 = arith.addf %14, %15 : vector<1x16x128xf32>
    %cst = arith.constant 0.000000e+00 : f32
    %17 = vector.broadcast %cst : f32 to vector<1x16x128xf32>
    %18 = arith.maximumf %16, %17 : vector<1x16x128xf32>
    %19 = vector.broadcast %6 : f32 to vector<1x16x128xf32>
    %20 = arith.mulf %18, %19 : vector<1x16x128xf32>
    %c0_7 = arith.constant 0 : index
    %c0_8 = arith.constant 0 : index
    %c0_9 = arith.constant 0 : index
    %c0_10 = arith.constant 0 : index
    %21 = vector.load %arg3[%c0_7, %c0_8, %c0_9, %c0_10] : memref<1x16x16x128xbf16, #tpu.memory_space<vmem>>, vector<1x16x16x128xbf16>
    %22 = vector.shape_cast %21 : vector<1x16x16x128xbf16> to vector<16x16x128xbf16>
    %23 = arith.extf %22 : vector<16x16x128xbf16> to vector<16x16x128xf32>
    %24 = vector.broadcast %1 : vector<1x1x128xf32> to vector<16x16x128xf32>
    %25 = arith.mulf %23, %24 : vector<16x16x128xf32>
    %26 = vector.broadcast %3 : vector<1x1x128xf32> to vector<16x16x128xf32>
    %27 = arith.addf %25, %26 : vector<16x16x128xf32>
    %cst_11 = arith.constant 0.000000e+00 : f32
    %28 = vector.broadcast %cst_11 : f32 to vector<16x16x128xf32>
    %29 = arith.maximumf %27, %28 : vector<16x16x128xf32>
    %c0_12 = arith.constant 0 : index
    %c0_13 = arith.constant 0 : index
    %c0_14 = arith.constant 0 : index
    %c0_15 = arith.constant 0 : index
    %30 = vector.load %arg4[%c0_12, %c0_13, %c0_14, %c0_15] : memref<1x1x16x128xbf16, #tpu.memory_space<vmem>>, vector<1x1x16x128xbf16>
    %31 = vector.shape_cast %30 : vector<1x1x16x128xbf16> to vector<1x16x128xbf16>
    %32 = arith.extf %31 : vector<1x16x128xbf16> to vector<1x16x128xf32>
    %33 = vector.broadcast %1 : vector<1x1x128xf32> to vector<1x16x128xf32>
    %34 = arith.mulf %32, %33 : vector<1x16x128xf32>
    %35 = vector.broadcast %3 : vector<1x1x128xf32> to vector<1x16x128xf32>
    %36 = arith.addf %34, %35 : vector<1x16x128xf32>
    %cst_16 = arith.constant 0.000000e+00 : f32
    %37 = vector.broadcast %cst_16 : f32 to vector<1x16x128xf32>
    %38 = arith.maximumf %36, %37 : vector<1x16x128xf32>
    %39 = vector.broadcast %9 : f32 to vector<1x16x128xf32>
    %40 = arith.mulf %38, %39 : vector<1x16x128xf32>
    %41 = tpu.concatenate %20, %29, %40 in 0 : vector<1x16x128xf32>, vector<16x16x128xf32>, vector<1x16x128xf32> -> vector<18x16x128xf32>
    %42 = arith.truncf %41 : vector<18x16x128xf32> to vector<18x16x128xbf16>
    %cst_17 = arith.constant 0.000000e+00 : bf16
    %43 = vector.broadcast %cst_17 : bf16 to vector<18x1x128xbf16>
    %44 = vector.extract_strided_slice %42 {offsets = [0, 0, 0], sizes = [18, 15, 128], strides = [1, 1, 1]} : vector<18x16x128xbf16> to vector<18x15x128xbf16>
    %45 = tpu.concatenate %43, %44 in 1 : vector<18x1x128xbf16>, vector<18x15x128xbf16> -> vector<18x16x128xbf16>
    %46 = vector.extract_strided_slice %42 {offsets = [0, 1, 0], sizes = [18, 15, 128], strides = [1, 1, 1]} : vector<18x16x128xbf16> to vector<18x15x128xbf16>
    %47 = tpu.concatenate %46, %43 in 1 : vector<18x15x128xbf16>, vector<18x1x128xbf16> -> vector<18x16x128xbf16>
    %48 = tpu.concatenate %45, %42, %47 in 2 : vector<18x16x128xbf16>, vector<18x16x128xbf16>, vector<18x16x128xbf16> -> vector<18x16x384xbf16>
    %cst_18 = arith.constant 0.000000e+00 : f32
    %49 = vector.broadcast %cst_18 : f32 to vector<256x128xf32>
    %50 = vector.extract_strided_slice %48 {offsets = [0, 0, 0], sizes = [16, 16, 384], strides = [1, 1, 1]} : vector<18x16x384xbf16> to vector<16x16x384xbf16>
    %51 = vector.shape_cast %50 : vector<16x16x384xbf16> to vector<256x384xbf16>
    %c0_19 = arith.constant 0 : index
    %c0_20 = arith.constant 0 : index
    %c0_21 = arith.constant 0 : index
    %52 = vector.load %arg5[%c0_19, %c0_20, %c0_21] : memref<3x384x128xbf16, #tpu.memory_space<vmem>>, vector<1x384x128xbf16>
    %53 = vector.shape_cast %52 : vector<1x384x128xbf16> to vector<384x128xbf16>
    %cst_22 = arith.constant dense<0.000000e+00> : vector<256x128xf32>
    %54 = tpu.matmul %51, %53, %cst_22 {dimension_numbers = #tpu.dot_dimension_numbers<[1], [0], [0], [1], [0, 0, 1, 1], [], []>} : vector<256x384xbf16>, vector<384x128xbf16>, vector<256x128xf32> -> vector<256x128xf32>
    %55 = arith.addf %49, %54 : vector<256x128xf32>
    %56 = vector.extract_strided_slice %48 {offsets = [1, 0, 0], sizes = [16, 16, 384], strides = [1, 1, 1]} : vector<18x16x384xbf16> to vector<16x16x384xbf16>
    %57 = vector.shape_cast %56 : vector<16x16x384xbf16> to vector<256x384xbf16>
    %c1_23 = arith.constant 1 : index
    %c0_24 = arith.constant 0 : index
    %c0_25 = arith.constant 0 : index
    %58 = vector.load %arg5[%c1_23, %c0_24, %c0_25] : memref<3x384x128xbf16, #tpu.memory_space<vmem>>, vector<1x384x128xbf16>
    %59 = vector.shape_cast %58 : vector<1x384x128xbf16> to vector<384x128xbf16>
    %cst_26 = arith.constant dense<0.000000e+00> : vector<256x128xf32>
    %60 = tpu.matmul %57, %59, %cst_26 {dimension_numbers = #tpu.dot_dimension_numbers<[1], [0], [0], [1], [0, 0, 1, 1], [], []>} : vector<256x384xbf16>, vector<384x128xbf16>, vector<256x128xf32> -> vector<256x128xf32>
    %61 = arith.addf %55, %60 : vector<256x128xf32>
    %62 = vector.extract_strided_slice %48 {offsets = [2, 0, 0], sizes = [16, 16, 384], strides = [1, 1, 1]} : vector<18x16x384xbf16> to vector<16x16x384xbf16>
    %63 = vector.shape_cast %62 : vector<16x16x384xbf16> to vector<256x384xbf16>
    %c2 = arith.constant 2 : index
    %c0_27 = arith.constant 0 : index
    %c0_28 = arith.constant 0 : index
    %64 = vector.load %arg5[%c2, %c0_27, %c0_28] : memref<3x384x128xbf16, #tpu.memory_space<vmem>>, vector<1x384x128xbf16>
    %65 = vector.shape_cast %64 : vector<1x384x128xbf16> to vector<384x128xbf16>
    %cst_29 = arith.constant dense<0.000000e+00> : vector<256x128xf32>
    %66 = tpu.matmul %63, %65, %cst_29 {dimension_numbers = #tpu.dot_dimension_numbers<[1], [0], [0], [1], [0, 0, 1, 1], [], []>} : vector<256x384xbf16>, vector<384x128xbf16>, vector<256x128xf32> -> vector<256x128xf32>
    %67 = arith.addf %61, %66 : vector<256x128xf32>
    %68 = vector.shape_cast %67 : vector<256x128xf32> to vector<16x16x128xf32>
    %69 = arith.truncf %68 : vector<16x16x128xf32> to vector<16x16x128xbf16>
    %c0_30 = arith.constant 0 : index
    %c0_31 = arith.constant 0 : index
    %c0_32 = arith.constant 0 : index
    %c0_33 = arith.constant 0 : index
    %70 = vector.load %arg7[%c0_30, %c0_31, %c0_32, %c0_33] : memref<1x16x16x128xbf16, #tpu.memory_space<vmem>>, vector<1x16x16x128xbf16>
    %71 = vector.shape_cast %70 : vector<1x16x16x128xbf16> to vector<16x16x128xbf16>
    %72 = vector.shape_cast %69 : vector<16x16x128xbf16> to vector<1x16x16x128xbf16>
    tpu.vector_store %arg7[%c0_30, %c0_31, %c0_32, %c0_33], %72 {strides = array<i32>} : memref<1x16x16x128xbf16, #tpu.memory_space<vmem>>, vector<1x16x16x128xbf16>,
    %cst_34 = arith.constant dense<0.000000e+00> : vector<128xf32>
    %73 = vector.multi_reduction <add>, %67, %cst_34 [0] : vector<256x128xf32> to vector<128xf32>
    %74 = vector.shape_cast %73 : vector<128xf32> to vector<1x128xf32>
    %75 = arith.mulf %67, %67 : vector<256x128xf32>
    %cst_35 = arith.constant dense<0.000000e+00> : vector<128xf32>
    %76 = vector.multi_reduction <add>, %75, %cst_35 [0] : vector<256x128xf32> to vector<128xf32>
    %77 = vector.shape_cast %76 : vector<128xf32> to vector<1x128xf32>
    %78 = tpu.concatenate %74, %77 in 0 : vector<1x128xf32>, vector<1x128xf32> -> vector<2x128xf32>
    %c0_36 = arith.constant 0 : index
    %c0_37 = arith.constant 0 : index
    %c0_38 = arith.constant 0 : index
    %c0_39 = arith.constant 0 : index
    %79 = vector.load %arg8[%c0_36, %c0_37, %c0_38, %c0_39] : memref<1x1x2x128xf32, #tpu.memory_space<vmem>>, vector<1x1x2x128xf32>
    %80 = vector.shape_cast %79 : vector<1x1x2x128xf32> to vector<2x128xf32>
    %81 = vector.shape_cast %78 : vector<2x128xf32> to vector<1x1x2x128xf32>
    tpu.vector_store %arg8[%c0_36, %c0_37, %c0_38, %c0_39], %81 {strides = array<i32>} : memref<1x1x2x128xf32, #tpu.memory_space<vmem>>, vector<1x1x2x128xf32>,
    return
  }
  func.func @transform_0(%arg0: i32, %arg1: i32) -> (i32, i32, i32, i32) {
    %c16_i32 = arith.constant 16 : i32
    %0 = arith.muli %arg1, %c16_i32 : i32
    %c1_i32 = arith.constant 1 : i32
    %1 = arith.subi %0, %c1_i32 : i32
    %c0_i32 = arith.constant 0 : i32
    %2 = arith.maxsi %1, %c0_i32 : i32
    %c0_i32_0 = arith.constant 0 : i32
    %c0_i32_1 = arith.constant 0 : i32
    %c0_i32_2 = arith.constant 0 : i32
    return %arg0, %2, %c0_i32_0, %c0_i32_1 : i32, i32, i32, i32
  }
  func.func @transform_1(%arg0: i32, %arg1: i32) -> (i32, i32, i32, i32) {
    %c0_i32 = arith.constant 0 : i32
    %c0_i32_0 = arith.constant 0 : i32
    %c0_i32_1 = arith.constant 0 : i32
    return %arg0, %arg1, %c0_i32, %c0_i32_0 : i32, i32, i32, i32
  }
  func.func @transform_2(%arg0: i32, %arg1: i32) -> (i32, i32, i32, i32) {
    %c1_i32 = arith.constant 1 : i32
    %0 = arith.addi %arg1, %c1_i32 : i32
    %c16_i32 = arith.constant 16 : i32
    %1 = arith.muli %0, %c16_i32 : i32
    %c15_i32 = arith.constant 15 : i32
    %2 = arith.minsi %1, %c15_i32 : i32
    %c0_i32 = arith.constant 0 : i32
    %c0_i32_0 = arith.constant 0 : i32
    %c0_i32_1 = arith.constant 0 : i32
    return %arg0, %2, %c0_i32, %c0_i32_0 : i32, i32, i32, i32
  }
  func.func @transform_3(%arg0: i32, %arg1: i32) -> (i32, i32, i32) {
    %c0_i32 = arith.constant 0 : i32
    %c0_i32_0 = arith.constant 0 : i32
    %c0_i32_1 = arith.constant 0 : i32
    %c0_i32_2 = arith.constant 0 : i32
    return %c0_i32, %c0_i32_0, %c0_i32_1 : i32, i32, i32
  }
  func.func @transform_4(%arg0: i32, %arg1: i32) -> (i32, i32) {
    %c0_i32 = arith.constant 0 : i32
    %c0_i32_0 = arith.constant 0 : i32
    %c0_i32_1 = arith.constant 0 : i32
    return %c0_i32, %c0_i32_0 : i32, i32
  }
  func.func @transform_5(%arg0: i32, %arg1: i32) -> (i32, i32, i32, i32) {
    %c0_i32 = arith.constant 0 : i32
    %c0_i32_0 = arith.constant 0 : i32
    %c0_i32_1 = arith.constant 0 : i32
    return %arg0, %arg1, %c0_i32, %c0_i32_0 : i32, i32, i32, i32
  }
  func.func @transform_6(%arg0: i32, %arg1: i32) -> (i32, i32, i32, i32) {
    %c0_i32 = arith.constant 0 : i32
    %c0_i32_0 = arith.constant 0 : i32
    %c0_i32_1 = arith.constant 0 : i32
    return %arg0, %arg1, %c0_i32, %c0_i32_0 : i32, i32, i32, i32
  }
}

module attributes {stable_mosaic.version = 11 : i64} {
  func.func @final_kernel(%arg0: i32, %arg1: i32, %arg2: memref<1x16x16x128xbf16, #tpu.memory_space<vmem>>, %arg3: memref<1x16x16x128xbf16, #tpu.memory_space<vmem>>, %arg4: memref<4x128xf32, #tpu.memory_space<vmem>>, %arg5: memref<1x1x128xf32, #tpu.memory_space<vmem>>, %arg6: memref<1x16x16x128xbf16, #tpu.memory_space<vmem>>) attributes {dimension_semantics = [#tpu.dimension_semantics<parallel>, #tpu.dimension_semantics<parallel>], iteration_bounds = array<i64: 2, 1>, scalar_prefetch = 0 : i64, scratch_operands = 0 : i64, tpu.core_type = #tpu.core_type<tc>, window_params = [{transform_indices = @transform_0, window_bounds = array<i64: 1, 16, 16, 128>}, {transform_indices = @transform_1, window_bounds = array<i64: 1, 16, 16, 128>}, {pipeline_mode = #tpu.pipeline_mode<synchronous>, transform_indices = @transform_2, window_bounds = array<i64: 4, 128>}, {transform_indices = @transform_3, window_bounds = array<i64: 1, 1, 128>}, {transform_indices = @transform_4, window_bounds = array<i64: 1, 16, 16, 128>}]} {
    %c0 = arith.constant 0 : index
    %c0_0 = arith.constant 0 : index
    %0 = vector.load %arg4[%c0, %c0_0] : memref<4x128xf32, #tpu.memory_space<vmem>>, vector<4x128xf32>
    %1 = vector.extract_strided_slice %0 {offsets = [0, 0], sizes = [1, 128], strides = [1, 1]} : vector<4x128xf32> to vector<1x128xf32>
    %2 = vector.shape_cast %1 : vector<1x128xf32> to vector<1x1x128xf32>
    %3 = vector.extract_strided_slice %0 {offsets = [1, 0], sizes = [1, 128], strides = [1, 1]} : vector<4x128xf32> to vector<1x128xf32>
    %4 = vector.shape_cast %3 : vector<1x128xf32> to vector<1x1x128xf32>
    %5 = vector.extract_strided_slice %0 {offsets = [2, 0], sizes = [1, 128], strides = [1, 1]} : vector<4x128xf32> to vector<1x128xf32>
    %6 = vector.shape_cast %5 : vector<1x128xf32> to vector<1x1x128xf32>
    %7 = vector.extract_strided_slice %0 {offsets = [3, 0], sizes = [1, 128], strides = [1, 1]} : vector<4x128xf32> to vector<1x128xf32>
    %8 = vector.shape_cast %7 : vector<1x128xf32> to vector<1x1x128xf32>
    %c0_1 = arith.constant 0 : index
    %c0_2 = arith.constant 0 : index
    %c0_3 = arith.constant 0 : index
    %9 = vector.load %arg5[%c0_1, %c0_2, %c0_3] : memref<1x1x128xf32, #tpu.memory_space<vmem>>, vector<1x1x128xf32>
    %10 = vector.shape_cast %9 : vector<1x1x128xf32> to vector<1x128xf32>
    %11 = vector.shape_cast %10 : vector<1x128xf32> to vector<1x1x128xf32>
    %c0_4 = arith.constant 0 : index
    %c0_5 = arith.constant 0 : index
    %c0_6 = arith.constant 0 : index
    %c0_7 = arith.constant 0 : index
    %12 = vector.load %arg2[%c0_4, %c0_5, %c0_6, %c0_7] : memref<1x16x16x128xbf16, #tpu.memory_space<vmem>>, vector<1x16x16x128xbf16>
    %13 = vector.shape_cast %12 : vector<1x16x16x128xbf16> to vector<16x16x128xbf16>
    %14 = arith.extf %13 : vector<16x16x128xbf16> to vector<16x16x128xf32>
    %15 = vector.broadcast %2 : vector<1x1x128xf32> to vector<16x16x128xf32>
    %16 = arith.mulf %14, %15 : vector<16x16x128xf32>
    %17 = vector.broadcast %4 : vector<1x1x128xf32> to vector<16x16x128xf32>
    %18 = arith.addf %16, %17 : vector<16x16x128xf32>
    %c0_8 = arith.constant 0 : index
    %c0_9 = arith.constant 0 : index
    %c0_10 = arith.constant 0 : index
    %c0_11 = arith.constant 0 : index
    %19 = vector.load %arg3[%c0_8, %c0_9, %c0_10, %c0_11] : memref<1x16x16x128xbf16, #tpu.memory_space<vmem>>, vector<1x16x16x128xbf16>
    %20 = vector.shape_cast %19 : vector<1x16x16x128xbf16> to vector<16x16x128xbf16>
    %21 = arith.extf %20 : vector<16x16x128xbf16> to vector<16x16x128xf32>
    %22 = vector.broadcast %6 : vector<1x1x128xf32> to vector<16x16x128xf32>
    %23 = arith.mulf %21, %22 : vector<16x16x128xf32>
    %24 = arith.addf %18, %23 : vector<16x16x128xf32>
    %25 = vector.broadcast %8 : vector<1x1x128xf32> to vector<16x16x128xf32>
    %26 = arith.addf %24, %25 : vector<16x16x128xf32>
    %27 = vector.broadcast %11 : vector<1x1x128xf32> to vector<16x16x128xf32>
    %28 = arith.mulf %26, %27 : vector<16x16x128xf32>
    %cst = arith.constant 0.000000e+00 : f32
    %29 = vector.broadcast %cst : f32 to vector<16x16x128xf32>
    %30 = arith.maximumf %28, %29 : vector<16x16x128xf32>
    %31 = arith.truncf %30 : vector<16x16x128xf32> to vector<16x16x128xbf16>
    %c0_12 = arith.constant 0 : index
    %c0_13 = arith.constant 0 : index
    %c0_14 = arith.constant 0 : index
    %c0_15 = arith.constant 0 : index
    %32 = vector.load %arg6[%c0_12, %c0_13, %c0_14, %c0_15] : memref<1x16x16x128xbf16, #tpu.memory_space<vmem>>, vector<1x16x16x128xbf16>
    %33 = vector.shape_cast %32 : vector<1x16x16x128xbf16> to vector<16x16x128xbf16>
    %34 = vector.shape_cast %31 : vector<16x16x128xbf16> to vector<1x16x16x128xbf16>
    tpu.vector_store %arg6[%c0_12, %c0_13, %c0_14, %c0_15], %34 {strides = array<i32>} : memref<1x16x16x128xbf16, #tpu.memory_space<vmem>>, vector<1x16x16x128xbf16>,
    return
  }
  func.func @transform_0(%arg0: i32, %arg1: i32) -> (i32, i32, i32, i32) {
    %c0_i32 = arith.constant 0 : i32
    %c0_i32_0 = arith.constant 0 : i32
    %c0_i32_1 = arith.constant 0 : i32
    return %arg0, %arg1, %c0_i32, %c0_i32_0 : i32, i32, i32, i32
  }
  func.func @transform_1(%arg0: i32, %arg1: i32) -> (i32, i32, i32, i32) {
    %c0_i32 = arith.constant 0 : i32
    %c0_i32_0 = arith.constant 0 : i32
    %c0_i32_1 = arith.constant 0 : i32
    return %arg0, %arg1, %c0_i32, %c0_i32_0 : i32, i32, i32, i32
  }
  func.func @transform_2(%arg0: i32, %arg1: i32) -> (i32, i32) {
    %c0_i32 = arith.constant 0 : i32
    %c0_i32_0 = arith.constant 0 : i32
    %c0_i32_1 = arith.constant 0 : i32
    return %c0_i32, %c0_i32_0 : i32, i32
  }
  func.func @transform_3(%arg0: i32, %arg1: i32) -> (i32, i32, i32) {
    %c0_i32 = arith.constant 0 : i32
    %c0_i32_0 = arith.constant 0 : i32
    %c0_i32_1 = arith.constant 0 : i32
    return %arg0, %c0_i32, %c0_i32_0 : i32, i32, i32
  }
  func.func @transform_4(%arg0: i32, %arg1: i32) -> (i32, i32, i32, i32) {
    %c0_i32 = arith.constant 0 : i32
    %c0_i32_0 = arith.constant 0 : i32
    %c0_i32_1 = arith.constant 0 : i32
    return %arg0, %arg1, %c0_i32, %c0_i32_0 : i32, i32, i32, i32
  }
}

</mosaic_0001>

<llo_original>
// kernel: residual_block.5
$region0: #{residual_block.5}
  #allocation0 [shape = 'u32[]', space=smem, size = 0x4, offset = 0x4, fixed_abs, tag = 'smem constant byte address 0x4 - core index']
  #allocation1 [shape = 'u32[72,128]{1,0:T(1,128)}', space=vmem, size = 0x9000, scoped, tag = 'internal scratch']
  %s0 = inlined_call_operand.vmem [shape: bf16[2,16,16,128], index: 0, kind: input, shape index: {}]
  %s1 = inlined_call_operand.vmem [shape: bf16[2,16,16,128], index: 1, kind: input, shape index: {}]
  %s2 = inlined_call_operand.vmem [shape: f32[4,128], index: 2, kind: input, shape index: {}]
  %s3 = inlined_call_operand.vmem [shape: f32[2,1,128], index: 3, kind: input, shape index: {}]
  %s4 = inlined_call_operand.vmem [shape: bf16[2,16,16,128], index: 4, kind: output, shape index: {}]
  %s5 = sld [smem:[#allocation0]]
  $region49: #{residual_block.5} parent=0
    _
  %s7 = ssub.s32 1, %s5
  %s8 = scalar_select 0, %s7, %s5
  loop: start=0, step=1, limit=4
  $region2: #{residual_block.5} parent=0 // loop_pre_header
    _
  $region3: #{residual_block.5} parent=0 // loop_header
    %s10 = sphi 0, %s14
    %p11 = scmp.ge.s32.totalorder %s10, 4
    %s17 = sphi 0, %s29
    %s18 = sphi 0, %s25
    %s19 = sphi 0, %s17
    %s20 = sphi 0, %s18
    %s21 = sphi 0, %s19
    %s22 = sphi 0, %s20
    %s34 = sphi 0, %s36
    %s37 = sphi 0, %s34
    %s38 = sphi 0, %s37
    %s54 = sphi 0, %s38
    %s62 = sphi 0, %s64
    %s65 = sphi 0, %s62
    %s66 = sphi 0, %s65
    %s82 = sphi 0, %s66
    %s86 = sphi 0, %s86
    %s88 = sphi 0, %s86
    %s89 = sphi 0, %s88
    %s103 = sphi 0, %s89
    %s109 = sphi 0, %s111
    %s112 = sphi 0, %s109
    %s113 = sphi 0, %s112
    %s129 = sphi 0, %s113
    %s137 = sphi 0, %s139
    %s140 = sphi 0, %s137
    %s141 = sphi 0, %s140
    %s157 = sphi 0, %s141
  $region4: #{residual_block.5} parent=0 // loop_header_branch
    %13 = sbr.rel (%p11) target = $region8
  $region5: #{residual_block.5} parent=0 // loop_body
    %s15 = ssub.s32 %s10, 1
    %s16 = ssub.s32 %s10, 2
    %s23 = sadd.s32 1, %s18
    %p24 = scmp.ge.s32.totalorder %s23, 1
    %s25 = scalar_select %p24, 0, %s23
    %s26 = sadd.s32 1, %s17
    %s27 = scalar_select %p24, %s26, %s17
    %p28 = scmp.ge.s32.totalorder %s27, 2
    %s29 = scalar_select %p28, 0, %s27
    %s30 = ssub.s32 %s17, %s29
    %s31 = ssub.s32 %s18, %s25
    %s32 = sor.u32 %s30, %s31
    %p33 = scmp.eq.s32.totalorder %s32, 0
    %s35 = sadd.s32 %s34, 1
    %s36 = scalar_select %p33, %s34, %s35
    %p39 = pneg %p33
    %p40 = scmp.eq.s32.totalorder %s10, 1
    %p41 = por %p39, %p40
    %p42 = scmp.ne.s32.totalorder %s34, %s37
    %p43 = scmp.eq.s32.totalorder %s10, 0
    %p44 = por %p42, %p43
    %p45 = scmp.ne.s32.totalorder %s34, %s37
    %p46 = scmp.eq.s32.totalorder %s15, 1
    %p47 = por %p45, %p46
    %p48 = scmp.ne.s32.totalorder %s37, %s38
    %p49 = scmp.eq.s32.totalorder %s15, 0
    %p50 = por %p48, %p49
    %p51 = scmp.ne.s32.totalorder %s37, %s38
    %p52 = scmp.eq.s32.totalorder %s16, 1
    %p53 = por %p51, %p52
    %p55 = scmp.ne.s32.totalorder %s38, %s54
    %p56 = scmp.eq.s32.totalorder %s16, 0
    %p57 = por %p55, %p56
    %s58 = ssub.s32 %s17, %s29
    %s59 = ssub.s32 %s18, %s25
    %s60 = sor.u32 %s58, %s59
    %p61 = scmp.eq.s32.totalorder %s60, 0
    %s63 = sadd.s32 %s62, 1
    %s64 = scalar_select %p61, %s62, %s63
    %p67 = pneg %p61
    %p68 = scmp.eq.s32.totalorder %s10, 1
    %p69 = por %p67, %p68
    %p70 = scmp.ne.s32.totalorder %s62, %s65
    %p71 = scmp.eq.s32.totalorder %s10, 0
    %p72 = por %p70, %p71
    %p73 = scmp.ne.s32.totalorder %s62, %s65
    %p74 = scmp.eq.s32.totalorder %s15, 1
    %p75 = por %p73, %p74
    %p76 = scmp.ne.s32.totalorder %s65, %s66
    %p77 = scmp.eq.s32.totalorder %s15, 0
    %p78 = por %p76, %p77
    %p79 = scmp.ne.s32.totalorder %s65, %s66
    %p80 = scmp.eq.s32.totalorder %s16, 1
    %p81 = por %p79, %p80
    %p83 = scmp.ne.s32.totalorder %s66, %s82
    %p84 = scmp.eq.s32.totalorder %s16, 0
    %p85 = por %p83, %p84
    %s87 = sadd.s32 %s86, 1
    %p90 = scmp.eq.s32.totalorder %s10, 1
    %p91 = scmp.ne.s32.totalorder %s86, %s88
    %p92 = scmp.eq.s32.totalorder %s10, 0
    %p93 = por %p91, %p92
    %p94 = scmp.ne.s32.totalorder %s86, %s88
    %p95 = scmp.eq.s32.totalorder %s15, 1
    %p96 = por %p94, %p95
    %p97 = scmp.ne.s32.totalorder %s88, %s89
    %p98 = scmp.eq.s32.totalorder %s15, 0
    %p99 = por %p97, %p98
    %p100 = scmp.ne.s32.totalorder %s88, %s89
    %p101 = scmp.eq.s32.totalorder %s16, 1
    %p102 = por %p100, %p101
    %p104 = scmp.ne.s32.totalorder %s89, %s103
    %p105 = scmp.eq.s32.totalorder %s16, 0
    %p106 = por %p104, %p105
    %s107 = ssub.s32 %s17, %s29
    %p108 = scmp.eq.s32.totalorder %s107, 0
    %s110 = sadd.s32 %s109, 1
    %s111 = scalar_select %p108, %s109, %s110
    %p114 = pneg %p108
    %p115 = scmp.eq.s32.totalorder %s10, 1
    %p116 = por %p114, %p115
    %p117 = scmp.ne.s32.totalorder %s109, %s112
    %p118 = scmp.eq.s32.totalorder %s10, 0
    %p119 = por %p117, %p118
    %p120 = scmp.ne.s32.totalorder %s109, %s112
    %p121 = scmp.eq.s32.totalorder %s15, 1
    %p122 = por %p120, %p121
    %p123 = scmp.ne.s32.totalorder %s112, %s113
    %p124 = scmp.eq.s32.totalorder %s15, 0
    %p125 = por %p123, %p124
    %p126 = scmp.ne.s32.totalorder %s112, %s113
    %p127 = scmp.eq.s32.totalorder %s16, 1
    %p128 = por %p126, %p127
    %p130 = scmp.ne.s32.totalorder %s113, %s129
    %p131 = scmp.eq.s32.totalorder %s16, 0
    %p132 = por %p130, %p131
    %s133 = ssub.s32 %s17, %s29
    %s134 = ssub.s32 %s18, %s25
    %s135 = sor.u32 %s133, %s134
    %p136 = scmp.eq.s32.totalorder %s135, 0
    %s138 = sadd.s32 %s137, 1
    %s139 = scalar_select %p136, %s137, %s138
    %p142 = pneg %p136
    %p143 = scmp.eq.s32.totalorder %s10, 1
    %p144 = por %p142, %p143
    %p145 = scmp.ne.s32.totalorder %s137, %s140
    %p146 = scmp.eq.s32.totalorder %s10, 0
    %p147 = por %p145, %p146
    %p148 = scmp.ne.s32.totalorder %s137, %s140
    %p149 = scmp.eq.s32.totalorder %s15, 1
    %p150 = por %p148, %p149
    %p151 = scmp.ne.s32.totalorder %s140, %s141
    %p152 = scmp.eq.s32.totalorder %s15, 0
    %p153 = por %p151, %p152
    %p154 = scmp.ne.s32.totalorder %s140, %s141
    %p155 = scmp.eq.s32.totalorder %s16, 1
    %p156 = por %p154, %p155
    %p158 = scmp.ne.s32.totalorder %s141, %s157
    %p159 = scmp.eq.s32.totalorder %s16, 0
    %p160 = por %p158, %p159
    %p161 = scmp.le.s32.totalorder 1, %s10
    %p162 = scmp.lt.s32.totalorder %s10, 3
    %p163 = pnand %p161, %p162
    %p164 = pneg %p163
    // Predicated region
    $region9: #{residual_block.5} parent=5 // pred_check
      _
    $region10: #{residual_block.5} parent=5 // pred_check_branch
      %166 = sbr.rel (%p163) target = $region12
    $region11: #{residual_block.5} parent=5 // pred_region
      %s167 = ssub.s32 %s10, 1
      // Predicated region
      $region13: #{residual_block.5} parent=11 // pred_check
        %p168 = pneg %p99
      $region14: #{residual_block.5} parent=11 // pred_check_branch
        %170 = sbr.rel (%p168) target = $region16
      $region15: #{residual_block.5} parent=11 // pred_region
        _
      $region16: #{residual_block.5} parent=11 // pred_fallthru
        _
    $region12: #{residual_block.5} parent=5 // pred_fallthru
      _
    %p171 = scmp.lt.s32.totalorder %s10, 2
    // Predicated region
    $region17: #{residual_block.5} parent=5 // pred_check
      %p172 = pneg %p171
    $region18: #{residual_block.5} parent=5 // pred_check_branch
      %174 = sbr.rel (%p172) target = $region20
    $region19: #{residual_block.5} parent=5 // pred_region
      // Predicated region
      $region21: #{residual_block.5} parent=19 // pred_check
        %p175 = pneg %p44
      $region22: #{residual_block.5} parent=19 // pred_check_branch
        %177 = sbr.rel (%p175) target = $region24
      $region23: #{residual_block.5} parent=19 // pred_region
        %s178 = smul.u32 16, %s18
        %p179 = scmp.lt.s32.totalorder %s17, 1
        %s180 = scalar_select %p179, %s17, 1
        %p181 = scmp.lt.s32.totalorder %s178, 15
        %s182 = scalar_select %p181, %s178, 15
        %s183 = smul.addr %s182, 2
        %s184 = smul.addr %s180, 32
        %s185 = sadd.s32 %s183, %s184
        %s186 = smul.addr %s185, 4
        %s187 = scalar_lea.vmem %s0, %s186
        %s188 = smul.u32 16, %s18
      $region24: #{residual_block.5} parent=19 // pred_fallthru
        _
      // Predicated region
      $region25: #{residual_block.5} parent=19 // pred_check
        %p189 = pneg %p72
      $region26: #{residual_block.5} parent=19 // pred_check_branch
        %191 = sbr.rel (%p189) target = $region28
      $region27: #{residual_block.5} parent=19 // pred_region
        %s192 = smul.u32 16, %s18
        %p193 = scmp.lt.s32.totalorder %s17, 1
        %s194 = scalar_select %p193, %s17, 1
        %p195 = scmp.lt.s32.totalorder %s192, 15
        %s196 = scalar_select %p195, %s192, 15
        %s197 = smul.addr %s196, 2
        %s198 = smul.addr %s194, 32
        %s199 = sadd.s32 %s197, %s198
        %s200 = smul.addr %s199, 4
        %s201 = scalar_lea.vmem %s1, %s200
        %s202 = smul.u32 16, %s18
      $region28: #{residual_block.5} parent=19 // pred_fallthru
        _
      // Predicated region
      $region29: #{residual_block.5} parent=19 // pred_check
        %p203 = pneg %p119
      $region30: #{residual_block.5} parent=19 // pred_check_branch
        %205 = sbr.rel (%p203) target = $region32
      $region31: #{residual_block.5} parent=19 // pred_region
        %p206 = scmp.lt.s32.totalorder %s17, 1
        %s207 = scalar_select %p206, %s17, 1
        %s208 = scalar_lea.vmem %s3, %s207
      $region32: #{residual_block.5} parent=19 // pred_fallthru
        _
    $region20: #{residual_block.5} parent=5 // pred_fallthru
      _
    %p209 = scmp.le.s32.totalorder 1, %s10
    %p210 = scmp.lt.s32.totalorder %s10, 3
    %p211 = pnand %p209, %p210
    %p212 = pneg %p211
    // Predicated region
    $region33: #{residual_block.5} parent=5 // pred_check
      _
    $region34: #{residual_block.5} parent=5 // pred_check_branch
      %214 = sbr.rel (%p211) target = $region36
    $region35: #{residual_block.5} parent=5 // pred_region
      %s215 = ssub.s32 %s10, 1
      %s216 = smul.u32 16, %s20
      %p217 = scmp.lt.s32.totalorder %s19, 1
      %s218 = scalar_select %p217, %s19, 1
      %p219 = scmp.lt.s32.totalorder %s216, 15
      %s220 = scalar_select %p219, %s216, 15
      %s221 = smul.addr %s220, 2
      %s222 = smul.addr %s218, 32
      %s223 = sadd.s32 %s221, %s222
      %s224 = smul.addr %s223, 4
      %s225 = scalar_lea.vmem %s0, %s224
      %p226 = pneg %p50
      %p227 = pneg %p47
      %s228 = smul.u32 16, %s20
      %p229 = scmp.lt.s32.totalorder %s19, 1
      %s230 = scalar_select %p229, %s19, 1
      %p231 = scmp.lt.s32.totalorder %s228, 15
      %s232 = scalar_select %p231, %s228, 15
      %s233 = smul.addr %s232, 2
      %s234 = smul.addr %s230, 32
      %s235 = sadd.s32 %s233, %s234
      %s236 = smul.addr %s235, 4
      %s237 = scalar_lea.vmem %s1, %s236
      %p238 = pneg %p78
      %p239 = pneg %p75
      %p240 = pneg %p99
      %p241 = pneg %p96
      %p242 = scmp.lt.s32.totalorder %s19, 1
      %s243 = scalar_select %p242, %s19, 1
      %s244 = scalar_lea.vmem %s3, %s243
      %p245 = pneg %p125
      %p246 = pneg %p122
      %p247 = pneg %p153
      %p248 = pneg %p150
      %s249 = smul.u32 16, %s20
      %p250 = scmp.lt.s32.totalorder %s19, 1
      %s251 = scalar_select %p250, %s19, 1
      %p252 = scmp.lt.s32.totalorder %s249, 15
      %s253 = scalar_select %p252, %s249, 15
      %s254 = smul.addr %s253, 2
      %s255 = smul.addr %s251, 32
      %s256 = sadd.s32 %s254, %s255
      %s257 = smul.addr %s256, 4
      %s258 = scalar_lea.vmem %s4, %s257
      %s259 = smul.u32 16, %s20
      %p260 = scmp.lt.s32.totalorder %s19, 1
      %s261 = scalar_select %p260, %s19, 1
      %p262 = scmp.lt.s32.totalorder %s259, 15
      %s263 = scalar_select %p262, %s259, 15
      %s264 = smul.addr %s263, 2
      %s265 = smul.addr %s261, 32
      %s266 = sadd.s32 %s264, %s265
      %s267 = smul.addr %s266, 4
      %s268 = scalar_lea.vmem %s0, %s267
      %s269 = smul.u32 16, %s20
      %s270 = smul.u32 16, %s20
      %p271 = scmp.lt.s32.totalorder %s19, 1
      %s272 = scalar_select %p271, %s19, 1
      %p273 = scmp.lt.s32.totalorder %s270, 15
      %s274 = scalar_select %p273, %s270, 15
      %s275 = smul.addr %s274, 2
      %s276 = smul.addr %s272, 32
      %s277 = sadd.s32 %s275, %s276
      %s278 = smul.addr %s277, 4
      %s279 = scalar_lea.vmem %s1, %s278
      %s280 = smul.u32 16, %s20
      %p281 = scmp.lt.s32.totalorder %s19, 1
      %s282 = scalar_select %p281, %s19, 1
      %s283 = scalar_lea.vmem %s3, %s282
      %s284 = smul.u32 16, %s20
      %p285 = scmp.lt.s32.totalorder %s19, 1
      %s286 = scalar_select %p285, %s19, 1
      %p287 = scmp.lt.s32.totalorder %s284, 15
      %s288 = scalar_select %p287, %s284, 15
      %s289 = smul.addr %s288, 2
      %s290 = smul.addr %s286, 32
      %s291 = sadd.s32 %s289, %s290
      %s292 = smul.addr %s291, 4
      %s293 = scalar_lea.vmem %s4, %s292
      %s294 = smul.u32 16, %s20
      %v295 = vld [vmem:[%s2] sm:$0xf]
      %v296 = vld [vmem:[%s283] sm:$0x1]
      %v297 = vld [vmem:[%s268] sm:$0xf]
      %v298 = vld [vmem:[%s268 + $0x4] sm:$0xf]
      %v299 = vld [vmem:[%s268 + $0x8] sm:$0xf]
      %v300 = vld [vmem:[%s268 + $0xc] sm:$0xf]
      %v301 = vld [vmem:[%s268 + $0x10] sm:$0xf]
      %v302 = vld [vmem:[%s268 + $0x14] sm:$0xf]
      %v303 = vld [vmem:[%s268 + $0x18] sm:$0xf]
      %v304 = vld [vmem:[%s268 + $0x1c] sm:$0xf]
      %v305 = vld [vmem:[%s268 + $0x20] sm:$0xf]
      %v306 = vld [vmem:[%s268 + $0x24] sm:$0xf]
      %v307 = vld [vmem:[%s268 + $0x28] sm:$0xf]
      %v308 = vld [vmem:[%s268 + $0x2c] sm:$0xf]
      %v309 = vld [vmem:[%s268 + $0x30] sm:$0xf]
      %v310 = vld [vmem:[%s268 + $0x34] sm:$0xf]
      %v311 = vld [vmem:[%s268 + $0x38] sm:$0xf]
      %v312 = vld [vmem:[%s268 + $0x3c] sm:$0xf]
      %v313 = vld [vmem:[%s268 + $0x40] sm:$0xf]
      %v314 = vld [vmem:[%s268 + $0x44] sm:$0xf]
      %v315 = vld [vmem:[%s268 + $0x48] sm:$0xf]
      %v316 = vld [vmem:[%s268 + $0x4c] sm:$0xf]
      %v317 = vld [vmem:[%s268 + $0x50] sm:$0xf]
      %v318 = vld [vmem:[%s268 + $0x54] sm:$0xf]
      %v319 = vld [vmem:[%s268 + $0x58] sm:$0xf]
      %v320 = vld [vmem:[%s268 + $0x5c] sm:$0xf]
      %v321 = vld [vmem:[%s268 + $0x60] sm:$0xf]
      %v322 = vld [vmem:[%s268 + $0x64] sm:$0xf]
      %v323 = vld [vmem:[%s268 + $0x68] sm:$0xf]
      %v324 = vld [vmem:[%s268 + $0x6c] sm:$0xf]
      %v325 = vld [vmem:[%s268 + $0x70] sm:$0xf]
      %v326 = vld [vmem:[%s268 + $0x74] sm:$0xf]
      %v327 = vld [vmem:[%s268 + $0x78] sm:$0xf]
      %v328 = vld [vmem:[%s268 + $0x7c] sm:$0xf]
      %v329 = vunpack.c.l.bf16 %v297
      %v330 = vunpack.c.l.bf16 %v298
      %v331 = vunpack.c.l.bf16 %v299
      %v332 = vunpack.c.l.bf16 %v300
      %v333 = vunpack.c.l.bf16 %v301
      %v334 = vunpack.c.l.bf16 %v302
      %v335 = vunpack.c.l.bf16 %v303
      %v336 = vunpack.c.l.bf16 %v304
      %v337 = vunpack.c.l.bf16 %v305
      %v338 = vunpack.c.l.bf16 %v306
      %v339 = vunpack.c.l.bf16 %v307
      %v340 = vunpack.c.l.bf16 %v308
      %v341 = vunpack.c.l.bf16 %v309
      %v342 = vunpack.c.l.bf16 %v310
      %v343 = vunpack.c.l.bf16 %v311
      %v344 = vunpack.c.l.bf16 %v312
      %v345 = vunpack.c.l.bf16 %v313
      %v346 = vunpack.c.l.bf16 %v314
      %v347 = vunpack.c.l.bf16 %v315
      %v348 = vunpack.c.l.bf16 %v316
      %v349 = vunpack.c.l.bf16 %v317
      %v350 = vunpack.c.l.bf16 %v318
      %v351 = vunpack.c.l.bf16 %v319
      %v352 = vunpack.c.l.bf16 %v320
      %v353 = vunpack.c.l.bf16 %v321
      %v354 = vunpack.c.l.bf16 %v322
      %v355 = vunpack.c.l.bf16 %v323
      %v356 = vunpack.c.l.bf16 %v324
      %v357 = vunpack.c.l.bf16 %v325
      %v358 = vunpack.c.l.bf16 %v326
      %v359 = vunpack.c.l.bf16 %v327
      %v360 = vunpack.c.l.bf16 %v328
      %v361 = vperm.slane %v295, 0
      %v362 = vmul.f32 %v329, %v361
      %v363 = vmul.f32 %v330, %v361
      %v364 = vmul.f32 %v331, %v361
      %v365 = vmul.f32 %v332, %v361
      %v366 = vmul.f32 %v333, %v361
      %v367 = vmul.f32 %v334, %v361
      %v368 = vmul.f32 %v335, %v361
      %v369 = vmul.f32 %v336, %v361
      %v370 = vmul.f32 %v337, %v361
      %v371 = vmul.f32 %v338, %v361
      %v372 = vmul.f32 %v339, %v361
      %v373 = vmul.f32 %v340, %v361
      %v374 = vmul.f32 %v341, %v361
      %v375 = vmul.f32 %v342, %v361
      %v376 = vmul.f32 %v343, %v361
      %v377 = vmul.f32 %v344, %v361
      %v378 = vmul.f32 %v345, %v361
      %v379 = vmul.f32 %v346, %v361
      %v380 = vmul.f32 %v347, %v361
      %v381 = vmul.f32 %v348, %v361
      %v382 = vmul.f32 %v349, %v361
      %v383 = vmul.f32 %v350, %v361
      %v384 = vmul.f32 %v351, %v361
      %v385 = vmul.f32 %v352, %v361
      %v386 = vmul.f32 %v353, %v361
      %v387 = vmul.f32 %v354, %v361
      %v388 = vmul.f32 %v355, %v361
      %v389 = vmul.f32 %v356, %v361
      %v390 = vmul.f32 %v357, %v361
      %v391 = vmul.f32 %v358, %v361
      %v392 = vmul.f32 %v359, %v361
      %v393 = vmul.f32 %v360, %v361
      %v394 = vperm.slane %v295, 1
      %v395 = vadd.f32 %v362, %v394
      %v396 = vadd.f32 %v363, %v394
      %v397 = vadd.f32 %v364, %v394
      %v398 = vadd.f32 %v365, %v394
      %v399 = vadd.f32 %v366, %v394
      %v400 = vadd.f32 %v367, %v394
      %v401 = vadd.f32 %v368, %v394
      %v402 = vadd.f32 %v369, %v394
      %v403 = vadd.f32 %v370, %v394
      %v404 = vadd.f32 %v371, %v394
      %v405 = vadd.f32 %v372, %v394
      %v406 = vadd.f32 %v373, %v394
      %v407 = vadd.f32 %v374, %v394
      %v408 = vadd.f32 %v375, %v394
      %v409 = vadd.f32 %v376, %v394
      %v410 = vadd.f32 %v377, %v394
      %v411 = vadd.f32 %v378, %v394
      %v412 = vadd.f32 %v379, %v394
      %v413 = vadd.f32 %v380, %v394
      %v414 = vadd.f32 %v381, %v394
      %v415 = vadd.f32 %v382, %v394
      %v416 = vadd.f32 %v383, %v394
      %v417 = vadd.f32 %v384, %v394
      %v418 = vadd.f32 %v385, %v394
      %v419 = vadd.f32 %v386, %v394
      %v420 = vadd.f32 %v387, %v394
      %v421 = vadd.f32 %v388, %v394
      %v422 = vadd.f32 %v389, %v394
      %v423 = vadd.f32 %v390, %v394
      %v424 = vadd.f32 %v391, %v394
      %v425 = vadd.f32 %v392, %v394
      %v426 = vadd.f32 %v393, %v394
      %v427 = vld [vmem:[%s279] sm:$0xf]
      %v428 = vld [vmem:[%s279 + $0x4] sm:$0xf]
      %v429 = vld [vmem:[%s279 + $0x8] sm:$0xf]
      %v430 = vld [vmem:[%s279 + $0xc] sm:$0xf]
      %v431 = vld [vmem:[%s279 + $0x10] sm:$0xf]
      %v432 = vld [vmem:[%s279 + $0x14] sm:$0xf]
      %v433 = vld [vmem:[%s279 + $0x18] sm:$0xf]
      %v434 = vld [vmem:[%s279 + $0x1c] sm:$0xf]
      %v435 = vld [vmem:[%s279 + $0x20] sm:$0xf]
      %v436 = vld [vmem:[%s279 + $0x24] sm:$0xf]
      %v437 = vld [vmem:[%s279 + $0x28] sm:$0xf]
      %v438 = vld [vmem:[%s279 + $0x2c] sm:$0xf]
      %v439 = vld [vmem:[%s279 + $0x30] sm:$0xf]
      %v440 = vld [vmem:[%s279 + $0x34] sm:$0xf]
      %v441 = vld [vmem:[%s279 + $0x38] sm:$0xf]
      %v442 = vld [vmem:[%s279 + $0x3c] sm:$0xf]
      %v443 = vld [vmem:[%s279 + $0x40] sm:$0xf]
      %v444 = vld [vmem:[%s279 + $0x44] sm:$0xf]
      %v445 = vld [vmem:[%s279 + $0x48] sm:$0xf]
      %v446 = vld [vmem:[%s279 + $0x4c] sm:$0xf]
      %v447 = vld [vmem:[%s279 + $0x50] sm:$0xf]
      %v448 = vld [vmem:[%s279 + $0x54] sm:$0xf]
      %v449 = vld [vmem:[%s279 + $0x58] sm:$0xf]
      %v450 = vld [vmem:[%s279 + $0x5c] sm:$0xf]
      %v451 = vld [vmem:[%s279 + $0x60] sm:$0xf]
      %v452 = vld [vmem:[%s279 + $0x64] sm:$0xf]
      %v453 = vld [vmem:[%s279 + $0x68] sm:$0xf]
      %v454 = vld [vmem:[%s279 + $0x6c] sm:$0xf]
      %v455 = vld [vmem:[%s279 + $0x70] sm:$0xf]
      %v456 = vld [vmem:[%s279 + $0x74] sm:$0xf]
      %v457 = vld [vmem:[%s279 + $0x78] sm:$0xf]
      %v458 = vld [vmem:[%s279 + $0x7c] sm:$0xf]
      %v459 = vunpack.c.l.bf16 %v427
      %v460 = vunpack.c.l.bf16 %v428
      %v461 = vunpack.c.l.bf16 %v429
      %v462 = vunpack.c.l.bf16 %v430
      %v463 = vunpack.c.l.bf16 %v431
      %v464 = vunpack.c.l.bf16 %v432
      %v465 = vunpack.c.l.bf16 %v433
      %v466 = vunpack.c.l.bf16 %v434
      %v467 = vunpack.c.l.bf16 %v435
      %v468 = vunpack.c.l.bf16 %v436
      %v469 = vunpack.c.l.bf16 %v437
      %v470 = vunpack.c.l.bf16 %v438
      %v471 = vunpack.c.l.bf16 %v439
      %v472 = vunpack.c.l.bf16 %v440
      %v473 = vunpack.c.l.bf16 %v441
      %v474 = vunpack.c.l.bf16 %v442
      %v475 = vunpack.c.l.bf16 %v443
      %v476 = vunpack.c.l.bf16 %v444
      %v477 = vunpack.c.l.bf16 %v445
      %v478 = vunpack.c.l.bf16 %v446
      %v479 = vunpack.c.l.bf16 %v447
      %v480 = vunpack.c.l.bf16 %v448
      %v481 = vunpack.c.l.bf16 %v449
      %v482 = vunpack.c.l.bf16 %v450
      %v483 = vunpack.c.l.bf16 %v451
      %v484 = vunpack.c.l.bf16 %v452
      %v485 = vunpack.c.l.bf16 %v453
      %v486 = vunpack.c.l.bf16 %v454
      %v487 = vunpack.c.l.bf16 %v455
      %v488 = vunpack.c.l.bf16 %v456
      %v489 = vunpack.c.l.bf16 %v457
      %v490 = vunpack.c.l.bf16 %v458
      %v491 = vperm.slane %v295, 2
      %v492 = vmul.f32 %v459, %v491
      %v493 = vmul.f32 %v460, %v491
      %v494 = vmul.f32 %v461, %v491
      %v495 = vmul.f32 %v462, %v491
      %v496 = vmul.f32 %v463, %v491
      %v497 = vmul.f32 %v464, %v491
      %v498 = vmul.f32 %v465, %v491
      %v499 = vmul.f32 %v466, %v491
      %v500 = vmul.f32 %v467, %v491
      %v501 = vmul.f32 %v468, %v491
      %v502 = vmul.f32 %v469, %v491
      %v503 = vmul.f32 %v470, %v491
      %v504 = vmul.f32 %v471, %v491
      %v505 = vmul.f32 %v472, %v491
      %v506 = vmul.f32 %v473, %v491
      %v507 = vmul.f32 %v474, %v491
      %v508 = vmul.f32 %v475, %v491
      %v509 = vmul.f32 %v476, %v491
      %v510 = vmul.f32 %v477, %v491
      %v511 = vmul.f32 %v478, %v491
      %v512 = vmul.f32 %v479, %v491
      %v513 = vmul.f32 %v480, %v491
      %v514 = vmul.f32 %v481, %v491
      %v515 = vmul.f32 %v482, %v491
      %v516 = vmul.f32 %v483, %v491
      %v517 = vmul.f32 %v484, %v491
      %v518 = vmul.f32 %v485, %v491
      %v519 = vmul.f32 %v486, %v491
      %v520 = vmul.f32 %v487, %v491
      %v521 = vmul.f32 %v488, %v491
      %v522 = vmul.f32 %v489, %v491
      %v523 = vmul.f32 %v490, %v491
      %v524 = vadd.f32 %v395, %v492
      %v525 = vadd.f32 %v396, %v493
      %v526 = vadd.f32 %v397, %v494
      %v527 = vadd.f32 %v398, %v495
      %v528 = vadd.f32 %v399, %v496
      %v529 = vadd.f32 %v400, %v497
      %v530 = vadd.f32 %v401, %v498
      %v531 = vadd.f32 %v402, %v499
      %v532 = vadd.f32 %v403, %v500
      %v533 = vadd.f32 %v404, %v501
      %v534 = vadd.f32 %v405, %v502
      %v535 = vadd.f32 %v406, %v503
      %v536 = vadd.f32 %v407, %v504
      %v537 = vadd.f32 %v408, %v505
      %v538 = vadd.f32 %v409, %v506
      %v539 = vadd.f32 %v410, %v507
      %v540 = vadd.f32 %v411, %v508
      %v541 = vadd.f32 %v412, %v509
      %v542 = vadd.f32 %v413, %v510
      %v543 = vadd.f32 %v414, %v511
      %v544 = vadd.f32 %v415, %v512
      %v545 = vadd.f32 %v416, %v513
      %v546 = vadd.f32 %v417, %v514
      %v547 = vadd.f32 %v418, %v515
      %v548 = vadd.f32 %v419, %v516
      %v549 = vadd.f32 %v420, %v517
      %v550 = vadd.f32 %v421, %v518
      %v551 = vadd.f32 %v422, %v519
      %v552 = vadd.f32 %v423, %v520
      %v553 = vadd.f32 %v424, %v521
      %v554 = vadd.f32 %v425, %v522
      %v555 = vadd.f32 %v426, %v523
      %v556 = vperm.slane %v295, 3
      %v557 = vadd.f32 %v524, %v556
      %v558 = vadd.f32 %v525, %v556
      %v559 = vadd.f32 %v526, %v556
      %v560 = vadd.f32 %v527, %v556
      %v561 = vadd.f32 %v528, %v556
      %v562 = vadd.f32 %v529, %v556
      %v563 = vadd.f32 %v530, %v556
      %v564 = vadd.f32 %v531, %v556
      %v565 = vadd.f32 %v532, %v556
      %v566 = vadd.f32 %v533, %v556
      %v567 = vadd.f32 %v534, %v556
      %v568 = vadd.f32 %v535, %v556
      %v569 = vadd.f32 %v536, %v556
      %v570 = vadd.f32 %v537, %v556
      %v571 = vadd.f32 %v538, %v556
      %v572 = vadd.f32 %v539, %v556
      %v573 = vadd.f32 %v540, %v556
      %v574 = vadd.f32 %v541, %v556
      %v575 = vadd.f32 %v542, %v556
      %v576 = vadd.f32 %v543, %v556
      %v577 = vadd.f32 %v544, %v556
      %v578 = vadd.f32 %v545, %v556
      %v579 = vadd.f32 %v546, %v556
      %v580 = vadd.f32 %v547, %v556
      %v581 = vadd.f32 %v548, %v556
      %v582 = vadd.f32 %v549, %v556
      %v583 = vadd.f32 %v550, %v556
      %v584 = vadd.f32 %v551, %v556
      %v585 = vadd.f32 %v552, %v556
      %v586 = vadd.f32 %v553, %v556
      %v587 = vadd.f32 %v554, %v556
      %v588 = vadd.f32 %v555, %v556
      %v590 = vperm.slane %v296, 0
      %v592 = vmul.f32 %v557, %v590
      %v593 = vmul.f32 %v558, %v590
      %v594 = vmul.f32 %v559, %v590
      %v595 = vmul.f32 %v560, %v590
      %v596 = vmul.f32 %v561, %v590
      %v597 = vmul.f32 %v562, %v590
      %v598 = vmul.f32 %v563, %v590
      %v599 = vmul.f32 %v564, %v590
      %v600 = vmul.f32 %v565, %v590
      %v601 = vmul.f32 %v566, %v590
      %v602 = vmul.f32 %v567, %v590
      %v603 = vmul.f32 %v568, %v590
      %v604 = vmul.f32 %v569, %v590
      %v605 = vmul.f32 %v570, %v590
      %v606 = vmul.f32 %v571, %v590
      %v607 = vmul.f32 %v572, %v590
      %v608 = vmul.f32 %v573, %v590
      %v609 = vmul.f32 %v574, %v590
      %v610 = vmul.f32 %v575, %v590
      %v611 = vmul.f32 %v576, %v590
      %v612 = vmul.f32 %v577, %v590
      %v613 = vmul.f32 %v578, %v590
      %v614 = vmul.f32 %v579, %v590
      %v615 = vmul.f32 %v580, %v590
      %v616 = vmul.f32 %v581, %v590
      %v617 = vmul.f32 %v582, %v590
      %v618 = vmul.f32 %v583, %v590
      %v619 = vmul.f32 %v584, %v590
      %v620 = vmul.f32 %v585, %v590
      %v621 = vmul.f32 %v586, %v590
      %v622 = vmul.f32 %v587, %v590
      %v623 = vmul.f32 %v588, %v590
      %v624 = vmax.f32 %v592, 0.0
      %v625 = vmax.f32 %v593, 0.0
      %v626 = vmax.f32 %v594, 0.0
      %v627 = vmax.f32 %v595, 0.0
      %v628 = vmax.f32 %v596, 0.0
      %v629 = vmax.f32 %v597, 0.0
      %v630 = vmax.f32 %v598, 0.0
      %v631 = vmax.f32 %v599, 0.0
      %v632 = vmax.f32 %v600, 0.0
      %v633 = vmax.f32 %v601, 0.0
      %v634 = vmax.f32 %v602, 0.0
      %v635 = vmax.f32 %v603, 0.0
      %v636 = vmax.f32 %v604, 0.0
      %v637 = vmax.f32 %v605, 0.0
      %v638 = vmax.f32 %v606, 0.0
      %v639 = vmax.f32 %v607, 0.0
      %v640 = vmax.f32 %v608, 0.0
      %v641 = vmax.f32 %v609, 0.0
      %v642 = vmax.f32 %v610, 0.0
      %v643 = vmax.f32 %v611, 0.0
      %v644 = vmax.f32 %v612, 0.0
      %v645 = vmax.f32 %v613, 0.0
      %v646 = vmax.f32 %v614, 0.0
      %v647 = vmax.f32 %v615, 0.0
      %v648 = vmax.f32 %v616, 0.0
      %v649 = vmax.f32 %v617, 0.0
      %v650 = vmax.f32 %v618, 0.0
      %v651 = vmax.f32 %v619, 0.0
      %v652 = vmax.f32 %v620, 0.0
      %v653 = vmax.f32 %v621, 0.0
      %v654 = vmax.f32 %v622, 0.0
      %v655 = vmax.f32 %v623, 0.0
      %v656 = vpack.c.bf16 %v624, %v624
      %v657 = vpack.c.bf16 %v625, %v625
      %v658 = vpack.c.bf16 %v626, %v626
      %v659 = vpack.c.bf16 %v627, %v627
      %v660 = vpack.c.bf16 %v628, %v628
      %v661 = vpack.c.bf16 %v629, %v629
      %v662 = vpack.c.bf16 %v630, %v630
      %v663 = vpack.c.bf16 %v631, %v631
      %v664 = vpack.c.bf16 %v632, %v632
      %v665 = vpack.c.bf16 %v633, %v633
      %v666 = vpack.c.bf16 %v634, %v634
      %v667 = vpack.c.bf16 %v635, %v635
      %v668 = vpack.c.bf16 %v636, %v636
      %v669 = vpack.c.bf16 %v637, %v637
      %v670 = vpack.c.bf16 %v638, %v638
      %v671 = vpack.c.bf16 %v639, %v639
      %v672 = vpack.c.bf16 %v640, %v640
      %v673 = vpack.c.bf16 %v641, %v641
      %v674 = vpack.c.bf16 %v642, %v642
      %v675 = vpack.c.bf16 %v643, %v643
      %v676 = vpack.c.bf16 %v644, %v644
      %v677 = vpack.c.bf16 %v645, %v645
      %v678 = vpack.c.bf16 %v646, %v646
      %v679 = vpack.c.bf16 %v647, %v647
      %v680 = vpack.c.bf16 %v648, %v648
      %v681 = vpack.c.bf16 %v649, %v649
      %v682 = vpack.c.bf16 %v650, %v650
      %v683 = vpack.c.bf16 %v651, %v651
      %v684 = vpack.c.bf16 %v652, %v652
      %v685 = vpack.c.bf16 %v653, %v653
      %v686 = vpack.c.bf16 %v654, %v654
      %v687 = vpack.c.bf16 %v655, %v655
      %688 = vst [vmem:[%s293] sm:$0xf] %v656
      %689 = vst [vmem:[%s293 + $0x4] sm:$0xf] %v657
      %690 = vst [vmem:[%s293 + $0x8] sm:$0xf] %v658
      %691 = vst [vmem:[%s293 + $0xc] sm:$0xf] %v659
      %692 = vst [vmem:[%s293 + $0x10] sm:$0xf] %v660
      %693 = vst [vmem:[%s293 + $0x14] sm:$0xf] %v661
      %694 = vst [vmem:[%s293 + $0x18] sm:$0xf] %v662
      %695 = vst [vmem:[%s293 + $0x1c] sm:$0xf] %v663
      %696 = vst [vmem:[%s293 + $0x20] sm:$0xf] %v664
      %697 = vst [vmem:[%s293 + $0x24] sm:$0xf] %v665
      %698 = vst [vmem:[%s293 + $0x28] sm:$0xf] %v666
      %699 = vst [vmem:[%s293 + $0x2c] sm:$0xf] %v667
      %700 = vst [vmem:[%s293 + $0x30] sm:$0xf] %v668
      %701 = vst [vmem:[%s293 + $0x34] sm:$0xf] %v669
      %702 = vst [vmem:[%s293 + $0x38] sm:$0xf] %v670
      %703 = vst [vmem:[%s293 + $0x3c] sm:$0xf] %v671
      %704 = vst [vmem:[%s293 + $0x40] sm:$0xf] %v672
      %705 = vst [vmem:[%s293 + $0x44] sm:$0xf] %v673
      %706 = vst [vmem:[%s293 + $0x48] sm:$0xf] %v674
      %707 = vst [vmem:[%s293 + $0x4c] sm:$0xf] %v675
      %708 = vst [vmem:[%s293 + $0x50] sm:$0xf] %v676
      %709 = vst [vmem:[%s293 + $0x54] sm:$0xf] %v677
      %710 = vst [vmem:[%s293 + $0x58] sm:$0xf] %v678
      %711 = vst [vmem:[%s293 + $0x5c] sm:$0xf] %v679
      %712 = vst [vmem:[%s293 + $0x60] sm:$0xf] %v680
      %713 = vst [vmem:[%s293 + $0x64] sm:$0xf] %v681
      %714 = vst [vmem:[%s293 + $0x68] sm:$0xf] %v682
      %715 = vst [vmem:[%s293 + $0x6c] sm:$0xf] %v683
      %716 = vst [vmem:[%s293 + $0x70] sm:$0xf] %v684
      %717 = vst [vmem:[%s293 + $0x74] sm:$0xf] %v685
      %718 = vst [vmem:[%s293 + $0x78] sm:$0xf] %v686
      %719 = vst [vmem:[%s293 + $0x7c] sm:$0xf] %v687
      %s720 = smul.u32 16, %s20
      %p721 = scmp.lt.s32.totalorder %s19, 1
      %s722 = scalar_select %p721, %s19, 1
      %p723 = scmp.lt.s32.totalorder %s720, 15
      %s724 = scalar_select %p723, %s720, 15
      %s725 = smul.addr %s724, 2
      %s726 = smul.addr %s722, 32
      %s727 = sadd.s32 %s725, %s726
      %s728 = smul.addr %s727, 4
      %s729 = scalar_lea.vmem %s4, %s728
      // Predicated region
      $region37: #{residual_block.5} parent=35 // pred_check
        %p730 = pneg %p150
      $region38: #{residual_block.5} parent=35 // pred_check_branch
        %732 = sbr.rel (%p730) target = $region40
      $region39: #{residual_block.5} parent=35 // pred_region
        %s733 = smul.u32 16, %s20
      $region40: #{residual_block.5} parent=35 // pred_fallthru
        _
    $region36: #{residual_block.5} parent=5 // pred_fallthru
      _
    %p734 = scmp.le.s32.totalorder 2, %s10
    // Predicated region
    $region41: #{residual_block.5} parent=5 // pred_check
      %p735 = pneg %p734
    $region42: #{residual_block.5} parent=5 // pred_check_branch
      %737 = sbr.rel (%p735) target = $region44
    $region43: #{residual_block.5} parent=5 // pred_region
      %s738 = ssub.s32 %s10, 2
      // Predicated region
      $region45: #{residual_block.5} parent=43 // pred_check
        %p739 = pneg %p156
      $region46: #{residual_block.5} parent=43 // pred_check_branch
        %741 = sbr.rel (%p739) target = $region48
      $region47: #{residual_block.5} parent=43 // pred_region
        %s742 = smul.u32 16, %s22
        %p743 = scmp.lt.s32.totalorder %s21, 1
        %s744 = scalar_select %p743, %s21, 1
        %p745 = scmp.lt.s32.totalorder %s742, 15
        %s746 = scalar_select %p745, %s742, 15
        %s747 = smul.addr %s746, 2
        %s748 = smul.addr %s744, 32
        %s749 = sadd.s32 %s747, %s748
        %s750 = smul.addr %s749, 4
        %s751 = scalar_lea.vmem %s4, %s750
      $region48: #{residual_block.5} parent=43 // pred_fallthru
        _
    $region44: #{residual_block.5} parent=5 // pred_fallthru
      _
  $region6: #{residual_block.5} parent=0 // loop_footer
    %s14 = sadd.s32 1, %s10
  $region7: #{residual_block.5} parent=0 // loop_footer_branch
    %9 = sbr.rel target = $region3
  $region8: #{residual_block.5} parent=0 // loop_exit
    _

// kernel: residual_block.4
$region0: #{residual_block.4}
  #allocation0 [shape = 'u32[]', space=smem, size = 0x4, offset = 0x4, fixed_abs, tag = 'smem constant byte address 0x4 - core index']
  #allocation1 [shape = 'u32[72,128]{1,0:T(1,128)}', space=vmem, size = 0x9000, scoped, tag = 'internal scratch']
  %s0 = inlined_call_operand.vmem [shape: bf16[2,16,16,128], index: 0, kind: input, shape index: {}, may-alias: {0,1,2}]
  %s1 = inlined_call_operand.vmem [shape: bf16[2,16,16,128], index: 1, kind: input, shape index: {}, may-alias: {0,1,2}]
  %s2 = inlined_call_operand.vmem [shape: bf16[2,16,16,128], index: 2, kind: input, shape index: {}, may-alias: {0,1,2}]
  %s3 = inlined_call_operand.vmem [shape: bf16[3,384,128], index: 3, kind: input, shape index: {}]
  %s4 = inlined_call_operand.vmem [shape: f32[2,128], index: 4, kind: input, shape index: {}]
  %s5 = inlined_call_operand.vmem [shape: bf16[2,16,16,128], index: 5, kind: output, shape index: {0}]
  %s6 = inlined_call_operand.vmem [shape: f32[2,1,2,128], index: 6, kind: output, shape index: {1}]
  %7 = xla_tuple %s5, %s6
  %s8 = sld [smem:[#allocation0]]
  $region61: #{residual_block.4} parent=0
    _
  %s10 = ssub.s32 1, %s8
  %s11 = scalar_select 0, %s10, %s8
  loop: start=0, step=1, limit=4
  $region2: #{residual_block.4} parent=0 // loop_pre_header
    _
  $region3: #{residual_block.4} parent=0 // loop_header
    %s13 = sphi 0, %s17
    %p14 = scmp.ge.s32.totalorder %s13, 4
    %s20 = sphi 0, %s32
    %s21 = sphi 0, %s28
    %s22 = sphi 0, %s20
    %s23 = sphi 0, %s21
    %s24 = sphi 0, %s22
    %s25 = sphi 0, %s23
    %s45 = sphi 0, %s47
    %s48 = sphi 0, %s45
    %s49 = sphi 0, %s48
    %s65 = sphi 0, %s49
    %s73 = sphi 0, %s75
    %s76 = sphi 0, %s73
    %s77 = sphi 0, %s76
    %s93 = sphi 0, %s77
    %s109 = sphi 0, %s111
    %s112 = sphi 0, %s109
    %s113 = sphi 0, %s112
    %s129 = sphi 0, %s113
    %s133 = sphi 0, %s133
    %s135 = sphi 0, %s133
    %s136 = sphi 0, %s135
    %s150 = sphi 0, %s136
    %s154 = sphi 0, %s154
    %s156 = sphi 0, %s154
    %s157 = sphi 0, %s156
    %s171 = sphi 0, %s157
    %s179 = sphi 0, %s181
    %s182 = sphi 0, %s179
    %s183 = sphi 0, %s182
    %s199 = sphi 0, %s183
    %s207 = sphi 0, %s209
    %s210 = sphi 0, %s207
    %s211 = sphi 0, %s210
    %s227 = sphi 0, %s211
  $region4: #{residual_block.4} parent=0 // loop_header_branch
    %16 = sbr.rel (%p14) target = $region8
  $region5: #{residual_block.4} parent=0 // loop_body
    %s18 = ssub.s32 %s13, 1
    %s19 = ssub.s32 %s13, 2
    %s26 = sadd.s32 1, %s21
    %p27 = scmp.ge.s32.totalorder %s26, 1
    %s28 = scalar_select %p27, 0, %s26
    %s29 = sadd.s32 1, %s20
    %s30 = scalar_select %p27, %s29, %s20
    %p31 = scmp.ge.s32.totalorder %s30, 2
    %s32 = scalar_select %p31, 0, %s30
    %s33 = smul.u32 %s21, 16
    %s34 = ssub.s32 %s33, 1
    %p35 = scmp.gt.s32.totalorder %s34, 0
    %s36 = scalar_select %p35, %s34, 0
    %s37 = smul.u32 %s28, 16
    %s38 = ssub.s32 %s37, 1
    %p39 = scmp.gt.s32.totalorder %s38, 0
    %s40 = scalar_select %p39, %s38, 0
    %s41 = ssub.s32 %s20, %s32
    %s42 = ssub.s32 %s36, %s40
    %s43 = sor.u32 %s41, %s42
    %p44 = scmp.eq.s32.totalorder %s43, 0
    %s46 = sadd.s32 %s45, 1
    %s47 = scalar_select %p44, %s45, %s46
    %p50 = pneg %p44
    %p51 = scmp.eq.s32.totalorder %s13, 1
    %p52 = por %p50, %p51
    %p53 = scmp.ne.s32.totalorder %s45, %s48
    %p54 = scmp.eq.s32.totalorder %s13, 0
    %p55 = por %p53, %p54
    %p56 = scmp.ne.s32.totalorder %s45, %s48
    %p57 = scmp.eq.s32.totalorder %s18, 1
    %p58 = por %p56, %p57
    %p59 = scmp.ne.s32.totalorder %s48, %s49
    %p60 = scmp.eq.s32.totalorder %s18, 0
    %p61 = por %p59, %p60
    %p62 = scmp.ne.s32.totalorder %s48, %s49
    %p63 = scmp.eq.s32.totalorder %s19, 1
    %p64 = por %p62, %p63
    %p66 = scmp.ne.s32.totalorder %s49, %s65
    %p67 = scmp.eq.s32.totalorder %s19, 0
    %p68 = por %p66, %p67
    %s69 = ssub.s32 %s20, %s32
    %s70 = ssub.s32 %s21, %s28
    %s71 = sor.u32 %s69, %s70
    %p72 = scmp.eq.s32.totalorder %s71, 0
    %s74 = sadd.s32 %s73, 1
    %s75 = scalar_select %p72, %s73, %s74
    %p78 = pneg %p72
    %p79 = scmp.eq.s32.totalorder %s13, 1
    %p80 = por %p78, %p79
    %p81 = scmp.ne.s32.totalorder %s73, %s76
    %p82 = scmp.eq.s32.totalorder %s13, 0
    %p83 = por %p81, %p82
    %p84 = scmp.ne.s32.totalorder %s73, %s76
    %p85 = scmp.eq.s32.totalorder %s18, 1
    %p86 = por %p84, %p85
    %p87 = scmp.ne.s32.totalorder %s76, %s77
    %p88 = scmp.eq.s32.totalorder %s18, 0
    %p89 = por %p87, %p88
    %p90 = scmp.ne.s32.totalorder %s76, %s77
    %p91 = scmp.eq.s32.totalorder %s19, 1
    %p92 = por %p90, %p91
    %p94 = scmp.ne.s32.totalorder %s77, %s93
    %p95 = scmp.eq.s32.totalorder %s19, 0
    %p96 = por %p94, %p95
    %s97 = sadd.s32 %s21, 1
    %s98 = smul.u32 %s97, 16
    %p99 = scmp.lt.s32.totalorder %s98, 15
    %s100 = scalar_select %p99, %s98, 15
    %s101 = sadd.s32 %s28, 1
    %s102 = smul.u32 %s101, 16
    %p103 = scmp.lt.s32.totalorder %s102, 15
    %s104 = scalar_select %p103, %s102, 15
    %s105 = ssub.s32 %s20, %s32
    %s106 = ssub.s32 %s100, %s104
    %s107 = sor.u32 %s105, %s106
    %p108 = scmp.eq.s32.totalorder %s107, 0
    %s110 = sadd.s32 %s109, 1
    %s111 = scalar_select %p108, %s109, %s110
    %p114 = pneg %p108
    %p115 = scmp.eq.s32.totalorder %s13, 1
    %p116 = por %p114, %p115
    %p117 = scmp.ne.s32.totalorder %s109, %s112
    %p118 = scmp.eq.s32.totalorder %s13, 0
    %p119 = por %p117, %p118
    %p120 = scmp.ne.s32.totalorder %s109, %s112
    %p121 = scmp.eq.s32.totalorder %s18, 1
    %p122 = por %p120, %p121
    %p123 = scmp.ne.s32.totalorder %s112, %s113
    %p124 = scmp.eq.s32.totalorder %s18, 0
    %p125 = por %p123, %p124
    %p126 = scmp.ne.s32.totalorder %s112, %s113
    %p127 = scmp.eq.s32.totalorder %s19, 1
    %p128 = por %p126, %p127
    %p130 = scmp.ne.s32.totalorder %s113, %s129
    %p131 = scmp.eq.s32.totalorder %s19, 0
    %p132 = por %p130, %p131
    %s134 = sadd.s32 %s133, 1
    %p137 = scmp.eq.s32.totalorder %s13, 1
    %p138 = scmp.ne.s32.totalorder %s133, %s135
    %p139 = scmp.eq.s32.totalorder %s13, 0
    %p140 = por %p138, %p139
    %p141 = scmp.ne.s32.totalorder %s133, %s135
    %p142 = scmp.eq.s32.totalorder %s18, 1
    %p143 = por %p141, %p142
    %p144 = scmp.ne.s32.totalorder %s135, %s136
    %p145 = scmp.eq.s32.totalorder %s18, 0
    %p146 = por %p144, %p145
    %p147 = scmp.ne.s32.totalorder %s135, %s136
    %p148 = scmp.eq.s32.totalorder %s19, 1
    %p149 = por %p147, %p148
    %p151 = scmp.ne.s32.totalorder %s136, %s150
    %p152 = scmp.eq.s32.totalorder %s19, 0
    %p153 = por %p151, %p152
    %s155 = sadd.s32 %s154, 1
    %p158 = scmp.eq.s32.totalorder %s13, 1
    %p159 = scmp.ne.s32.totalorder %s154, %s156
    %p160 = scmp.eq.s32.totalorder %s13, 0
    %p161 = por %p159, %p160
    %p162 = scmp.ne.s32.totalorder %s154, %s156
    %p163 = scmp.eq.s32.totalorder %s18, 1
    %p164 = por %p162, %p163
    %p165 = scmp.ne.s32.totalorder %s156, %s157
    %p166 = scmp.eq.s32.totalorder %s18, 0
    %p167 = por %p165, %p166
    %p168 = scmp.ne.s32.totalorder %s156, %s157
    %p169 = scmp.eq.s32.totalorder %s19, 1
    %p170 = por %p168, %p169
    %p172 = scmp.ne.s32.totalorder %s157, %s171
    %p173 = scmp.eq.s32.totalorder %s19, 0
    %p174 = por %p172, %p173
    %s175 = ssub.s32 %s20, %s32
    %s176 = ssub.s32 %s21, %s28
    %s177 = sor.u32 %s175, %s176
    %p178 = scmp.eq.s32.totalorder %s177, 0
    %s180 = sadd.s32 %s179, 1
    %s181 = scalar_select %p178, %s179, %s180
    %p184 = pneg %p178
    %p185 = scmp.eq.s32.totalorder %s13, 1
    %p186 = por %p184, %p185
    %p187 = scmp.ne.s32.totalorder %s179, %s182
    %p188 = scmp.eq.s32.totalorder %s13, 0
    %p189 = por %p187, %p188
    %p190 = scmp.ne.s32.totalorder %s179, %s182
    %p191 = scmp.eq.s32.totalorder %s18, 1
    %p192 = por %p190, %p191
    %p193 = scmp.ne.s32.totalorder %s182, %s183
    %p194 = scmp.eq.s32.totalorder %s18, 0
    %p195 = por %p193, %p194
    %p196 = scmp.ne.s32.totalorder %s182, %s183
    %p197 = scmp.eq.s32.totalorder %s19, 1
    %p198 = por %p196, %p197
    %p200 = scmp.ne.s32.totalorder %s183, %s199
    %p201 = scmp.eq.s32.totalorder %s19, 0
    %p202 = por %p200, %p201
    %s203 = ssub.s32 %s20, %s32
    %s204 = ssub.s32 %s21, %s28
    %s205 = sor.u32 %s203, %s204
    %p206 = scmp.eq.s32.totalorder %s205, 0
    %s208 = sadd.s32 %s207, 1
    %s209 = scalar_select %p206, %s207, %s208
    %p212 = pneg %p206
    %p213 = scmp.eq.s32.totalorder %s13, 1
    %p214 = por %p212, %p213
    %p215 = scmp.ne.s32.totalorder %s207, %s210
    %p216 = scmp.eq.s32.totalorder %s13, 0
    %p217 = por %p215, %p216
    %p218 = scmp.ne.s32.totalorder %s207, %s210
    %p219 = scmp.eq.s32.totalorder %s18, 1
    %p220 = por %p218, %p219
    %p221 = scmp.ne.s32.totalorder %s210, %s211
    %p222 = scmp.eq.s32.totalorder %s18, 0
    %p223 = por %p221, %p222
    %p224 = scmp.ne.s32.totalorder %s210, %s211
    %p225 = scmp.eq.s32.totalorder %s19, 1
    %p226 = por %p224, %p225
    %p228 = scmp.ne.s32.totalorder %s211, %s227
    %p229 = scmp.eq.s32.totalorder %s19, 0
    %p230 = por %p228, %p229
    %p231 = scmp.le.s32.totalorder 1, %s13
    %p232 = scmp.lt.s32.totalorder %s13, 3
    %p233 = pnand %p231, %p232
    %p234 = pneg %p233
    // Predicated region
    $region9: #{residual_block.4} parent=5 // pred_check
      _
    $region10: #{residual_block.4} parent=5 // pred_check_branch
      %236 = sbr.rel (%p233) target = $region12
    $region11: #{residual_block.4} parent=5 // pred_region
      %s237 = ssub.s32 %s13, 1
      // Predicated region
      $region13: #{residual_block.4} parent=11 // pred_check
        %p238 = pneg %p146
      $region14: #{residual_block.4} parent=11 // pred_check_branch
        %240 = sbr.rel (%p238) target = $region16
      $region15: #{residual_block.4} parent=11 // pred_region
        _
      $region16: #{residual_block.4} parent=11 // pred_fallthru
        _
      // Predicated region
      $region17: #{residual_block.4} parent=11 // pred_check
        %p241 = pneg %p167
      $region18: #{residual_block.4} parent=11 // pred_check_branch
        %243 = sbr.rel (%p241) target = $region20
      $region19: #{residual_block.4} parent=11 // pred_region
        _
      $region20: #{residual_block.4} parent=11 // pred_fallthru
        _
    $region12: #{residual_block.4} parent=5 // pred_fallthru
      _
    %p244 = scmp.lt.s32.totalorder %s13, 2
    // Predicated region
    $region21: #{residual_block.4} parent=5 // pred_check
      %p245 = pneg %p244
    $region22: #{residual_block.4} parent=5 // pred_check_branch
      %247 = sbr.rel (%p245) target = $region24
    $region23: #{residual_block.4} parent=5 // pred_region
      // Predicated region
      $region25: #{residual_block.4} parent=23 // pred_check
        %p248 = pneg %p55
      $region26: #{residual_block.4} parent=23 // pred_check_branch
        %250 = sbr.rel (%p248) target = $region28
      $region27: #{residual_block.4} parent=23 // pred_region
        %s251 = smul.u32 %s21, 16
        %s252 = ssub.s32 %s251, 1
        %p253 = scmp.gt.s32.totalorder %s252, 0
        %s254 = scalar_select %p253, %s252, 0
        %p255 = scmp.lt.s32.totalorder %s20, 1
        %s256 = scalar_select %p255, %s20, 1
        %p257 = scmp.lt.s32.totalorder %s254, 15
        %s258 = scalar_select %p257, %s254, 15
        %s259 = smul.addr %s258, 2
        %s260 = smul.addr %s256, 32
        %s261 = sadd.s32 %s259, %s260
        %s262 = smul.addr %s261, 4
        %s263 = scalar_lea.vmem %s0, %s262
        %s264 = smul.u32 %s21, 16
        %s265 = ssub.s32 %s264, 1
        %p266 = scmp.gt.s32.totalorder %s265, 0
        %s267 = scalar_select %p266, %s265, 0
      $region28: #{residual_block.4} parent=23 // pred_fallthru
        _
      // Predicated region
      $region29: #{residual_block.4} parent=23 // pred_check
        %p268 = pneg %p83
      $region30: #{residual_block.4} parent=23 // pred_check_branch
        %270 = sbr.rel (%p268) target = $region32
      $region31: #{residual_block.4} parent=23 // pred_region
        %s271 = smul.u32 16, %s21
        %p272 = scmp.lt.s32.totalorder %s20, 1
        %s273 = scalar_select %p272, %s20, 1
        %p274 = scmp.lt.s32.totalorder %s271, 15
        %s275 = scalar_select %p274, %s271, 15
        %s276 = smul.addr %s275, 2
        %s277 = smul.addr %s273, 32
        %s278 = sadd.s32 %s276, %s277
        %s279 = smul.addr %s278, 4
        %s280 = scalar_lea.vmem %s1, %s279
        %s281 = smul.u32 16, %s21
      $region32: #{residual_block.4} parent=23 // pred_fallthru
        _
      // Predicated region
      $region33: #{residual_block.4} parent=23 // pred_check
        %p282 = pneg %p119
      $region34: #{residual_block.4} parent=23 // pred_check_branch
        %284 = sbr.rel (%p282) target = $region36
      $region35: #{residual_block.4} parent=23 // pred_region
        %s285 = sadd.s32 %s21, 1
        %s286 = smul.u32 %s285, 16
        %p287 = scmp.lt.s32.totalorder %s286, 15
        %s288 = scalar_select %p287, %s286, 15
        %p289 = scmp.lt.s32.totalorder %s20, 1
        %s290 = scalar_select %p289, %s20, 1
        %p291 = scmp.lt.s32.totalorder %s288, 15
        %s292 = scalar_select %p291, %s288, 15
        %s293 = smul.addr %s292, 2
        %s294 = smul.addr %s290, 32
        %s295 = sadd.s32 %s293, %s294
        %s296 = smul.addr %s295, 4
        %s297 = scalar_lea.vmem %s2, %s296
        %s298 = sadd.s32 %s21, 1
        %s299 = smul.u32 %s298, 16
        %p300 = scmp.lt.s32.totalorder %s299, 15
        %s301 = scalar_select %p300, %s299, 15
      $region36: #{residual_block.4} parent=23 // pred_fallthru
        _
    $region24: #{residual_block.4} parent=5 // pred_fallthru
      _
    %p302 = scmp.le.s32.totalorder 1, %s13
    %p303 = scmp.lt.s32.totalorder %s13, 3
    %p304 = pnand %p302, %p303
    %p305 = pneg %p304
    // Predicated region
    $region37: #{residual_block.4} parent=5 // pred_check
      _
    $region38: #{residual_block.4} parent=5 // pred_check_branch
      %307 = sbr.rel (%p304) target = $region40
    $region39: #{residual_block.4} parent=5 // pred_region
      %s308 = ssub.s32 %s13, 1
      %s309 = smul.u32 %s23, 16
      %s310 = ssub.s32 %s309, 1
      %p311 = scmp.gt.s32.totalorder %s310, 0
      %s312 = scalar_select %p311, %s310, 0
      %p313 = scmp.lt.s32.totalorder %s22, 1
      %s314 = scalar_select %p313, %s22, 1
      %p315 = scmp.lt.s32.totalorder %s312, 15
      %s316 = scalar_select %p315, %s312, 15
      %s317 = smul.addr %s316, 2
      %s318 = smul.addr %s314, 32
      %s319 = sadd.s32 %s317, %s318
      %s320 = smul.addr %s319, 4
      %s321 = scalar_lea.vmem %s0, %s320
      %p322 = pneg %p61
      %p323 = pneg %p58
      %s324 = smul.u32 16, %s23
      %p325 = scmp.lt.s32.totalorder %s22, 1
      %s326 = scalar_select %p325, %s22, 1
      %p327 = scmp.lt.s32.totalorder %s324, 15
      %s328 = scalar_select %p327, %s324, 15
      %s329 = smul.addr %s328, 2
      %s330 = smul.addr %s326, 32
      %s331 = sadd.s32 %s329, %s330
      %s332 = smul.addr %s331, 4
      %s333 = scalar_lea.vmem %s1, %s332
      %p334 = pneg %p89
      %p335 = pneg %p86
      %s336 = sadd.s32 %s23, 1
      %s337 = smul.u32 %s336, 16
      %p338 = scmp.lt.s32.totalorder %s337, 15
      %s339 = scalar_select %p338, %s337, 15
      %p340 = scmp.lt.s32.totalorder %s22, 1
      %s341 = scalar_select %p340, %s22, 1
      %p342 = scmp.lt.s32.totalorder %s339, 15
      %s343 = scalar_select %p342, %s339, 15
      %s344 = smul.addr %s343, 2
      %s345 = smul.addr %s341, 32
      %s346 = sadd.s32 %s344, %s345
      %s347 = smul.addr %s346, 4
      %s348 = scalar_lea.vmem %s2, %s347
      %p349 = pneg %p125
      %p350 = pneg %p122
      %p351 = pneg %p146
      %p352 = pneg %p143
      %p353 = pneg %p167
      %p354 = pneg %p164
      %p355 = pneg %p195
      %p356 = pneg %p192
      %s357 = smul.u32 16, %s23
      %p358 = scmp.lt.s32.totalorder %s22, 1
      %s359 = scalar_select %p358, %s22, 1
      %p360 = scmp.lt.s32.totalorder %s357, 15
      %s361 = scalar_select %p360, %s357, 15
      %s362 = smul.addr %s361, 2
      %s363 = smul.addr %s359, 32
      %s364 = sadd.s32 %s362, %s363
      %s365 = smul.addr %s364, 4
      %s366 = scalar_lea.vmem %s5, %s365
      %p367 = pneg %p223
      %p368 = pneg %p220
      %p369 = scmp.lt.s32.totalorder %s22, 1
      %s370 = scalar_select %p369, %s22, 1
      %p371 = scmp.lt.s32.totalorder %s23, 0
      %s372 = scalar_select %p371, %s23, 0
      %s373 = sadd.s32 %s372, %s370
      %s374 = smul.addr %s373, 2
      %s375 = scalar_lea.vmem %s6, %s374
      %s376 = smul.u32 %s23, 16
      %s377 = ssub.s32 %s376, 1
      %p378 = scmp.gt.s32.totalorder %s377, 0
      %s379 = scalar_select %p378, %s377, 0
      %p380 = scmp.lt.s32.totalorder %s22, 1
      %s381 = scalar_select %p380, %s22, 1
      %p382 = scmp.lt.s32.totalorder %s379, 15
      %s383 = scalar_select %p382, %s379, 15
      %s384 = smul.addr %s383, 2
      %s385 = smul.addr %s381, 32
      %s386 = sadd.s32 %s384, %s385
      %s387 = smul.addr %s386, 4
      %s388 = scalar_lea.vmem %s0, %s387
      %s389 = smul.u32 %s23, 16
      %s390 = ssub.s32 %s389, 1
      %p391 = scmp.gt.s32.totalorder %s390, 0
      %s392 = scalar_select %p391, %s390, 0
      %s393 = smul.u32 16, %s23
      %p394 = scmp.lt.s32.totalorder %s22, 1
      %s395 = scalar_select %p394, %s22, 1
      %p396 = scmp.lt.s32.totalorder %s393, 15
      %s397 = scalar_select %p396, %s393, 15
      %s398 = smul.addr %s397, 2
      %s399 = smul.addr %s395, 32
      %s400 = sadd.s32 %s398, %s399
      %s401 = smul.addr %s400, 4
      %s402 = scalar_lea.vmem %s1, %s401
      %s403 = smul.u32 16, %s23
      %s404 = sadd.s32 %s23, 1
      %s405 = smul.u32 %s404, 16
      %p406 = scmp.lt.s32.totalorder %s405, 15
      %s407 = scalar_select %p406, %s405, 15
      %p408 = scmp.lt.s32.totalorder %s22, 1
      %s409 = scalar_select %p408, %s22, 1
      %p410 = scmp.lt.s32.totalorder %s407, 15
      %s411 = scalar_select %p410, %s407, 15
      %s412 = smul.addr %s411, 2
      %s413 = smul.addr %s409, 32
      %s414 = sadd.s32 %s412, %s413
      %s415 = smul.addr %s414, 4
      %s416 = scalar_lea.vmem %s2, %s415
      %s417 = sadd.s32 %s23, 1
      %s418 = smul.u32 %s417, 16
      %p419 = scmp.lt.s32.totalorder %s418, 15
      %s420 = scalar_select %p419, %s418, 15
      %s421 = smul.u32 16, %s23
      %p422 = scmp.lt.s32.totalorder %s22, 1
      %s423 = scalar_select %p422, %s22, 1
      %p424 = scmp.lt.s32.totalorder %s421, 15
      %s425 = scalar_select %p424, %s421, 15
      %s426 = smul.addr %s425, 2
      %s427 = smul.addr %s423, 32
      %s428 = sadd.s32 %s426, %s427
      %s429 = smul.addr %s428, 4
      %s430 = scalar_lea.vmem %s5, %s429
      %s431 = smul.u32 16, %s23
      %p432 = scmp.lt.s32.totalorder %s22, 1
      %s433 = scalar_select %p432, %s22, 1
      %p434 = scmp.lt.s32.totalorder %s23, 0
      %s435 = scalar_select %p434, %s23, 0
      %s436 = sadd.s32 %s435, %s433
      %s437 = smul.addr %s436, 2
      %s438 = scalar_lea.vmem %s6, %s437
      %v440 = vld [vmem:[%s4] sm:$0x1]
      %v441 = vld [vmem:[%s4 + $0x1] sm:$0x1]
      %p442 = scmp.gt.s32.totalorder %s23, 0
      %s443 = scalar_select %p442, 1, 0
      %s444 = scvt.s32.f32 %s443
      %p445 = scmp.lt.s32.totalorder %s23, 0
      %s446 = scalar_select %p445, 1, 0
      %s447 = scvt.s32.f32 %s446
      %v448 = vld [vmem:[%s388] sm:$0xf]
      %v449 = vld [vmem:[%s388 + $0x4] sm:$0xf]
      %v450 = vunpack.c.l.bf16 %v448
      %v451 = vunpack.c.l.bf16 %v449
      %v452 = vperm.slane %v440, 0
      %v453 = vmul.f32 %v450, %v452
      %v454 = vmul.f32 %v451, %v452
      %v455 = vperm.slane %v441, 0
      %v456 = vadd.f32 %v453, %v455
      %v457 = vadd.f32 %v454, %v455
      %v458 = vmax.f32 %v456, 0.0
      %v459 = vmax.f32 %v457, 0.0
      %v460 = vstv %s444
      %v461 = vmul.f32 %v458, %v460
      %v462 = vmul.f32 %v459, %v460
      %v463 = vld [vmem:[%s402] sm:$0xf]
      %v464 = vld [vmem:[%s402 + $0x4] sm:$0xf]
      %v465 = vld [vmem:[%s402 + $0x8] sm:$0xf]
      %v466 = vld [vmem:[%s402 + $0xc] sm:$0xf]
      %v467 = vld [vmem:[%s402 + $0x10] sm:$0xf]
      %v468 = vld [vmem:[%s402 + $0x14] sm:$0xf]
      %v469 = vld [vmem:[%s402 + $0x18] sm:$0xf]
      %v470 = vld [vmem:[%s402 + $0x1c] sm:$0xf]
      %v471 = vld [vmem:[%s402 + $0x20] sm:$0xf]
      %v472 = vld [vmem:[%s402 + $0x24] sm:$0xf]
      %v473 = vld [vmem:[%s402 + $0x28] sm:$0xf]
      %v474 = vld [vmem:[%s402 + $0x2c] sm:$0xf]
      %v475 = vld [vmem:[%s402 + $0x30] sm:$0xf]
      %v476 = vld [vmem:[%s402 + $0x34] sm:$0xf]
      %v477 = vld [vmem:[%s402 + $0x38] sm:$0xf]
      %v478 = vld [vmem:[%s402 + $0x3c] sm:$0xf]
      %v479 = vld [vmem:[%s402 + $0x40] sm:$0xf]
      %v480 = vld [vmem:[%s402 + $0x44] sm:$0xf]
      %v481 = vld [vmem:[%s402 + $0x48] sm:$0xf]
      %v482 = vld [vmem:[%s402 + $0x4c] sm:$0xf]
      %v483 = vld [vmem:[%s402 + $0x50] sm:$0xf]
      %v484 = vld [vmem:[%s402 + $0x54] sm:$0xf]
      %v485 = vld [vmem:[%s402 + $0x58] sm:$0xf]
      %v486 = vld [vmem:[%s402 + $0x5c] sm:$0xf]
      %v487 = vld [vmem:[%s402 + $0x60] sm:$0xf]
      %v488 = vld [vmem:[%s402 + $0x64] sm:$0xf]
      %v489 = vld [vmem:[%s402 + $0x68] sm:$0xf]
      %v490 = vld [vmem:[%s402 + $0x6c] sm:$0xf]
      %v491 = vld [vmem:[%s402 + $0x70] sm:$0xf]
      %v492 = vld [vmem:[%s402 + $0x74] sm:$0xf]
      %v493 = vld [vmem:[%s402 + $0x78] sm:$0xf]
      %v494 = vld [vmem:[%s402 + $0x7c] sm:$0xf]
      %v495 = vunpack.c.l.bf16 %v463
      %v496 = vunpack.c.l.bf16 %v464
      %v497 = vunpack.c.l.bf16 %v465
      %v498 = vunpack.c.l.bf16 %v466
      %v499 = vunpack.c.l.bf16 %v467
      %v500 = vunpack.c.l.bf16 %v468
      %v501 = vunpack.c.l.bf16 %v469
      %v502 = vunpack.c.l.bf16 %v470
      %v503 = vunpack.c.l.bf16 %v471
      %v504 = vunpack.c.l.bf16 %v472
      %v505 = vunpack.c.l.bf16 %v473
      %v506 = vunpack.c.l.bf16 %v474
      %v507 = vunpack.c.l.bf16 %v475
      %v508 = vunpack.c.l.bf16 %v476
      %v509 = vunpack.c.l.bf16 %v477
      %v510 = vunpack.c.l.bf16 %v478
      %v511 = vunpack.c.l.bf16 %v479
      %v512 = vunpack.c.l.bf16 %v480
      %v513 = vunpack.c.l.bf16 %v481
      %v514 = vunpack.c.l.bf16 %v482
      %v515 = vunpack.c.l.bf16 %v483
      %v516 = vunpack.c.l.bf16 %v484
      %v517 = vunpack.c.l.bf16 %v485
      %v518 = vunpack.c.l.bf16 %v486
      %v519 = vunpack.c.l.bf16 %v487
      %v520 = vunpack.c.l.bf16 %v488
      %v521 = vunpack.c.l.bf16 %v489
      %v522 = vunpack.c.l.bf16 %v490
      %v523 = vunpack.c.l.bf16 %v491
      %v524 = vunpack.c.l.bf16 %v492
      %v525 = vunpack.c.l.bf16 %v493
      %v526 = vunpack.c.l.bf16 %v494
      %v527 = vmul.f32 %v495, %v452
      %v528 = vmul.f32 %v496, %v452
      %v529 = vmul.f32 %v497, %v452
      %v530 = vmul.f32 %v498, %v452
      %v531 = vmul.f32 %v499, %v452
      %v532 = vmul.f32 %v500, %v452
      %v533 = vmul.f32 %v501, %v452
      %v534 = vmul.f32 %v502, %v452
      %v535 = vmul.f32 %v503, %v452
      %v536 = vmul.f32 %v504, %v452
      %v537 = vmul.f32 %v505, %v452
      %v538 = vmul.f32 %v506, %v452
      %v539 = vmul.f32 %v507, %v452
      %v540 = vmul.f32 %v508, %v452
      %v541 = vmul.f32 %v509, %v452
      %v542 = vmul.f32 %v510, %v452
      %v543 = vmul.f32 %v511, %v452
      %v544 = vmul.f32 %v512, %v452
      %v545 = vmul.f32 %v513, %v452
      %v546 = vmul.f32 %v514, %v452
      %v547 = vmul.f32 %v515, %v452
      %v548 = vmul.f32 %v516, %v452
      %v549 = vmul.f32 %v517, %v452
      %v550 = vmul.f32 %v518, %v452
      %v551 = vmul.f32 %v519, %v452
      %v552 = vmul.f32 %v520, %v452
      %v553 = vmul.f32 %v521, %v452
      %v554 = vmul.f32 %v522, %v452
      %v555 = vmul.f32 %v523, %v452
      %v556 = vmul.f32 %v524, %v452
      %v557 = vmul.f32 %v525, %v452
      %v558 = vmul.f32 %v526, %v452
      %v559 = vadd.f32 %v527, %v455
      %v560 = vadd.f32 %v528, %v455
      %v561 = vadd.f32 %v529, %v455
      %v562 = vadd.f32 %v530, %v455
      %v563 = vadd.f32 %v531, %v455
      %v564 = vadd.f32 %v532, %v455
      %v565 = vadd.f32 %v533, %v455
      %v566 = vadd.f32 %v534, %v455
      %v567 = vadd.f32 %v535, %v455
      %v568 = vadd.f32 %v536, %v455
      %v569 = vadd.f32 %v537, %v455
      %v570 = vadd.f32 %v538, %v455
      %v571 = vadd.f32 %v539, %v455
      %v572 = vadd.f32 %v540, %v455
      %v573 = vadd.f32 %v541, %v455
      %v574 = vadd.f32 %v542, %v455
      %v575 = vadd.f32 %v543, %v455
      %v576 = vadd.f32 %v544, %v455
      %v577 = vadd.f32 %v545, %v455
      %v578 = vadd.f32 %v546, %v455
      %v579 = vadd.f32 %v547, %v455
      %v580 = vadd.f32 %v548, %v455
      %v581 = vadd.f32 %v549, %v455
      %v582 = vadd.f32 %v550, %v455
      %v583 = vadd.f32 %v551, %v455
      %v584 = vadd.f32 %v552, %v455
      %v585 = vadd.f32 %v553, %v455
      %v586 = vadd.f32 %v554, %v455
      %v587 = vadd.f32 %v555, %v455
      %v588 = vadd.f32 %v556, %v455
      %v589 = vadd.f32 %v557, %v455
      %v590 = vadd.f32 %v558, %v455
      %v591 = vmax.f32 %v559, 0.0
      %v592 = vmax.f32 %v560, 0.0
      %v593 = vmax.f32 %v561, 0.0
      %v594 = vmax.f32 %v562, 0.0
      %v595 = vmax.f32 %v563, 0.0
      %v596 = vmax.f32 %v564, 0.0
      %v597 = vmax.f32 %v565, 0.0
      %v598 = vmax.f32 %v566, 0.0
      %v599 = vmax.f32 %v567, 0.0
      %v600 = vmax.f32 %v568, 0.0
      %v601 = vmax.f32 %v569, 0.0
      %v602 = vmax.f32 %v570, 0.0
      %v603 = vmax.f32 %v571, 0.0
      %v604 = vmax.f32 %v572, 0.0
      %v605 = vmax.f32 %v573, 0.0
      %v606 = vmax.f32 %v574, 0.0
      %v607 = vmax.f32 %v575, 0.0
      %v608 = vmax.f32 %v576, 0.0
      %v609 = vmax.f32 %v577, 0.0
      %v610 = vmax.f32 %v578, 0.0
      %v611 = vmax.f32 %v579, 0.0
      %v612 = vmax.f32 %v580, 0.0
      %v613 = vmax.f32 %v581, 0.0
      %v614 = vmax.f32 %v582, 0.0
      %v615 = vmax.f32 %v583, 0.0
      %v616 = vmax.f32 %v584, 0.0
      %v617 = vmax.f32 %v585, 0.0
      %v618 = vmax.f32 %v586, 0.0
      %v619 = vmax.f32 %v587, 0.0
      %v620 = vmax.f32 %v588, 0.0
      %v621 = vmax.f32 %v589, 0.0
      %v622 = vmax.f32 %v590, 0.0
      %v623 = vld [vmem:[%s416] sm:$0xf]
      %v624 = vld [vmem:[%s416 + $0x4] sm:$0xf]
      %v625 = vunpack.c.l.bf16 %v623
      %v626 = vunpack.c.l.bf16 %v624
      %v627 = vmul.f32 %v625, %v452
      %v628 = vmul.f32 %v626, %v452
      %v629 = vadd.f32 %v627, %v455
      %v630 = vadd.f32 %v628, %v455
      %v631 = vmax.f32 %v629, 0.0
      %v632 = vmax.f32 %v630, 0.0
      %v633 = vstv %s447
      %v634 = vmul.f32 %v631, %v633
      %v635 = vmul.f32 %v632, %v633
      %v636 = vpack.c.bf16 %v461, %v461
      %v637 = vpack.c.bf16 %v462, %v462
      %v638 = vpack.c.bf16 %v591, %v591
      %v639 = vpack.c.bf16 %v592, %v592
      %v640 = vpack.c.bf16 %v593, %v593
      %v641 = vpack.c.bf16 %v594, %v594
      %v642 = vpack.c.bf16 %v595, %v595
      %v643 = vpack.c.bf16 %v596, %v596
      %v644 = vpack.c.bf16 %v597, %v597
      %v645 = vpack.c.bf16 %v598, %v598
      %v646 = vpack.c.bf16 %v599, %v599
      %v647 = vpack.c.bf16 %v600, %v600
      %v648 = vpack.c.bf16 %v601, %v601
      %v649 = vpack.c.bf16 %v602, %v602
      %v650 = vpack.c.bf16 %v603, %v603
      %v651 = vpack.c.bf16 %v604, %v604
      %v652 = vpack.c.bf16 %v605, %v605
      %v653 = vpack.c.bf16 %v606, %v606
      %v654 = vpack.c.bf16 %v607, %v607
      %v655 = vpack.c.bf16 %v608, %v608
      %v656 = vpack.c.bf16 %v609, %v609
      %v657 = vpack.c.bf16 %v610, %v610
      %v658 = vpack.c.bf16 %v611, %v611
      %v659 = vpack.c.bf16 %v612, %v612
      %v660 = vpack.c.bf16 %v613, %v613
      %v661 = vpack.c.bf16 %v614, %v614
      %v662 = vpack.c.bf16 %v615, %v615
      %v663 = vpack.c.bf16 %v616, %v616
      %v664 = vpack.c.bf16 %v617, %v617
      %v665 = vpack.c.bf16 %v618, %v618
      %v666 = vpack.c.bf16 %v619, %v619
      %v667 = vpack.c.bf16 %v620, %v620
      %v668 = vpack.c.bf16 %v621, %v621
      %v669 = vpack.c.bf16 %v622, %v622
      %v670 = vpack.c.bf16 %v634, %v634
      %v671 = vpack.c.bf16 %v635, %v635
      %v708 = vunpack.c.l.b16 %v636
      %v709 = vunpack.c.l.b16 %v637
      %v710 = vunpack.c.l.b16 %v638
      %v711 = vunpack.c.l.b16 %v639
      %v712 = vunpack.c.l.b16 %v640
      %v713 = vunpack.c.l.b16 %v641
      %v714 = vunpack.c.l.b16 %v642
      %v715 = vunpack.c.l.b16 %v643
      %v716 = vunpack.c.l.b16 %v644
      %v717 = vunpack.c.l.b16 %v645
      %v718 = vunpack.c.l.b16 %v646
      %v719 = vunpack.c.l.b16 %v647
      %v720 = vunpack.c.l.b16 %v648
      %v721 = vunpack.c.l.b16 %v649
      %v722 = vunpack.c.l.b16 %v650
      %v723 = vunpack.c.l.b16 %v651
      %v724 = vunpack.c.l.b16 %v652
      %v725 = vunpack.c.l.b16 %v653
      %v726 = vunpack.c.l.b16 %v654
      %v727 = vunpack.c.l.b16 %v655
      %v728 = vunpack.c.l.b16 %v656
      %v729 = vunpack.c.l.b16 %v657
      %v730 = vunpack.c.l.b16 %v658
      %v731 = vunpack.c.l.b16 %v659
      %v732 = vunpack.c.l.b16 %v660
      %v733 = vunpack.c.l.b16 %v661
      %v734 = vunpack.c.l.b16 %v662
      %v735 = vunpack.c.l.b16 %v663
      %v736 = vunpack.c.l.b16 %v664
      %v737 = vunpack.c.l.b16 %v665
      %v738 = vunpack.c.l.b16 %v666
      %v739 = vunpack.c.l.b16 %v667
      %v740 = vunpack.c.l.b16 %v668
      %v741 = vunpack.c.l.b16 %v669
      %v742 = vunpack.c.l.b16 %v670
      %v743 = vunpack.c.l.b16 %v671
      %v744 = vpack.c.b16 %v709, %v708
      %v745 = vpack.c.b16 %v711, %v710
      %v746 = vpack.c.b16 %v713, %v712
      %v747 = vpack.c.b16 %v715, %v714
      %v748 = vpack.c.b16 %v717, %v716
      %v749 = vpack.c.b16 %v719, %v718
      %v750 = vpack.c.b16 %v721, %v720
      %v751 = vpack.c.b16 %v723, %v722
      %v752 = vpack.c.b16 %v725, %v724
      %v753 = vpack.c.b16 %v727, %v726
      %v754 = vpack.c.b16 %v729, %v728
      %v755 = vpack.c.b16 %v731, %v730
      %v756 = vpack.c.b16 %v733, %v732
      %v757 = vpack.c.b16 %v735, %v734
      %v758 = vpack.c.b16 %v737, %v736
      %v759 = vpack.c.b16 %v739, %v738
      %v760 = vpack.c.b16 %v741, %v740
      %v761 = vpack.c.b16 %v743, %v742
      %v763 = vshrl.u32 %v744, 16
      %v765 = vrot.slane %v763, 7
      %v766 = vshll.u32 %v744, 16
      %v768 = vor.u32 %v765, %v766
      %v770 = vshrl.u32 %v745, 16
      %v772 = vrot.slane %v770, 7
      %v773 = vshll.u32 %v745, 16
      %v775 = vor.u32 %v772, %v773
      %v777 = vshrl.u32 %v746, 16
      %v779 = vrot.slane %v777, 7
      %v780 = vshll.u32 %v746, 16
      %v782 = vor.u32 %v779, %v780
      %v784 = vshrl.u32 %v747, 16
      %v786 = vrot.slane %v784, 7
      %v787 = vshll.u32 %v747, 16
      %v789 = vor.u32 %v786, %v787
      %v791 = vshrl.u32 %v748, 16
      %v793 = vrot.slane %v791, 7
      %v794 = vshll.u32 %v748, 16
      %v796 = vor.u32 %v793, %v794
      %v798 = vshrl.u32 %v749, 16
      %v800 = vrot.slane %v798, 7
      %v801 = vshll.u32 %v749, 16
      %v803 = vor.u32 %v800, %v801
      %v805 = vshrl.u32 %v750, 16
      %v807 = vrot.slane %v805, 7
      %v808 = vshll.u32 %v750, 16
      %v810 = vor.u32 %v807, %v808
      %v812 = vshrl.u32 %v751, 16
      %v814 = vrot.slane %v812, 7
      %v815 = vshll.u32 %v751, 16
      %v817 = vor.u32 %v814, %v815
      %v819 = vshrl.u32 %v752, 16
      %v821 = vrot.slane %v819, 7
      %v822 = vshll.u32 %v752, 16
      %v824 = vor.u32 %v821, %v822
      %v826 = vshrl.u32 %v753, 16
      %v828 = vrot.slane %v826, 7
      %v829 = vshll.u32 %v753, 16
      %v831 = vor.u32 %v828, %v829
      %v833 = vshrl.u32 %v754, 16
      %v835 = vrot.slane %v833, 7
      %v836 = vshll.u32 %v754, 16
      %v838 = vor.u32 %v835, %v836
      %v840 = vshrl.u32 %v755, 16
      %v842 = vrot.slane %v840, 7
      %v843 = vshll.u32 %v755, 16
      %v845 = vor.u32 %v842, %v843
      %v847 = vshrl.u32 %v756, 16
      %v849 = vrot.slane %v847, 7
      %v850 = vshll.u32 %v756, 16
      %v852 = vor.u32 %v849, %v850
      %v854 = vshrl.u32 %v757, 16
      %v856 = vrot.slane %v854, 7
      %v857 = vshll.u32 %v757, 16
      %v859 = vor.u32 %v856, %v857
      %v861 = vshrl.u32 %v758, 16
      %v863 = vrot.slane %v861, 7
      %v864 = vshll.u32 %v758, 16
      %v866 = vor.u32 %v863, %v864
      %v868 = vshrl.u32 %v759, 16
      %v870 = vrot.slane %v868, 7
      %v871 = vshll.u32 %v759, 16
      %v873 = vor.u32 %v870, %v871
      %v875 = vshrl.u32 %v760, 16
      %v877 = vrot.slane %v875, 7
      %v878 = vshll.u32 %v760, 16
      %v880 = vor.u32 %v877, %v878
      %v882 = vshrl.u32 %v761, 16
      %v884 = vrot.slane %v882, 7
      %v885 = vshll.u32 %v761, 16
      %v887 = vor.u32 %v884, %v885
      %vm906 = vcmask 1040384
      %vm907 = vsmask.f32 256
      %vm908 = vmand %vm906, %vm907
      %v909 = vsel %vm908, 0, %v768
      %v910 = vsel %vm908, 0, %v775
      %v911 = vsel %vm908, 0, %v782
      %v912 = vsel %vm908, 0, %v789
      %v913 = vsel %vm908, 0, %v796
      %v914 = vsel %vm908, 0, %v803
      %v915 = vsel %vm908, 0, %v810
      %v916 = vsel %vm908, 0, %v817
      %v917 = vsel %vm908, 0, %v824
      %v918 = vsel %vm908, 0, %v831
      %v919 = vsel %vm908, 0, %v838
      %v920 = vsel %vm908, 0, %v845
      %v921 = vsel %vm908, 0, %v852
      %v922 = vsel %vm908, 0, %v859
      %v923 = vsel %vm908, 0, %v866
      %v924 = vsel %vm908, 0, %v873
      %v925 = vsel %vm908, 0, %v880
      %v926 = vsel %vm908, 0, %v887
      %v927 = vrot.slane %v766, 1
      %v928 = vor.u32 %v763, %v927
      %v929 = vrot.slane %v773, 1
      %v930 = vor.u32 %v770, %v929
      %v931 = vrot.slane %v780, 1
      %v932 = vor.u32 %v777, %v931
      %v933 = vrot.slane %v787, 1
      %v934 = vor.u32 %v784, %v933
      %v935 = vrot.slane %v794, 1
      %v936 = vor.u32 %v791, %v935
      %v937 = vrot.slane %v801, 1
      %v938 = vor.u32 %v798, %v937
      %v939 = vrot.slane %v808, 1
      %v940 = vor.u32 %v805, %v939
      %v941 = vrot.slane %v815, 1
      %v942 = vor.u32 %v812, %v941
      %v943 = vrot.slane %v822, 1
      %v944 = vor.u32 %v819, %v943
      %v945 = vrot.slane %v829, 1
      %v946 = vor.u32 %v826, %v945
      %v947 = vrot.slane %v836, 1
      %v948 = vor.u32 %v833, %v947
      %v949 = vrot.slane %v843, 1
      %v950 = vor.u32 %v840, %v949
      %v951 = vrot.slane %v850, 1
      %v952 = vor.u32 %v847, %v951
      %v953 = vrot.slane %v857, 1
      %v954 = vor.u32 %v854, %v953
      %v955 = vrot.slane %v864, 1
      %v956 = vor.u32 %v861, %v955
      %v957 = vrot.slane %v871, 1
      %v958 = vor.u32 %v868, %v957
      %v959 = vrot.slane %v878, 1
      %v960 = vor.u32 %v875, %v959
      %v961 = vrot.slane %v885, 1
      %v962 = vor.u32 %v882, %v961
      %vm981 = vcmask 1047552
      %vm982 = vsmask.f32 7424
      %vm983 = vmand %vm981, %vm982
      %v984 = vsel %vm983, %v928, 0
      %v985 = vsel %vm983, %v930, 0
      %v986 = vsel %vm983, %v932, 0
      %v987 = vsel %vm983, %v934, 0
      %v988 = vsel %vm983, %v936, 0
      %v989 = vsel %vm983, %v938, 0
      %v990 = vsel %vm983, %v940, 0
      %v991 = vsel %vm983, %v942, 0
      %v992 = vsel %vm983, %v944, 0
      %v993 = vsel %vm983, %v946, 0
      %v994 = vsel %vm983, %v948, 0
      %v995 = vsel %vm983, %v950, 0
      %v996 = vsel %vm983, %v952, 0
      %v997 = vsel %vm983, %v954, 0
      %v998 = vsel %vm983, %v956, 0
      %v999 = vsel %vm983, %v958, 0
      %v1000 = vsel %vm983, %v960, 0
      %v1001 = vsel %vm983, %v962, 0
      %v1020 = vld [vmem:[%s3] sm:$0xf]
      %v1021 = vld [vmem:[%s3 + $0x4] sm:$0xf]
      %v1022 = vld [vmem:[%s3 + $0x8] sm:$0xf]
      %v1023 = vld [vmem:[%s3 + $0xc] sm:$0xf]
      %v1024 = vld [vmem:[%s3 + $0x10] sm:$0xf]
      %v1025 = vld [vmem:[%s3 + $0x14] sm:$0xf]
      %v1026 = vld [vmem:[%s3 + $0x18] sm:$0xf]
      %v1027 = vld [vmem:[%s3 + $0x1c] sm:$0xf]
      %v1028 = vld [vmem:[%s3 + $0x20] sm:$0xf]
      %v1029 = vld [vmem:[%s3 + $0x24] sm:$0xf]
      %v1030 = vld [vmem:[%s3 + $0x28] sm:$0xf]
      %v1031 = vld [vmem:[%s3 + $0x2c] sm:$0xf]
      %v1032 = vld [vmem:[%s3 + $0x30] sm:$0xf]
      %v1033 = vld [vmem:[%s3 + $0x34] sm:$0xf]
      %v1034 = vld [vmem:[%s3 + $0x38] sm:$0xf]
      %v1035 = vld [vmem:[%s3 + $0x3c] sm:$0xf]
      %v1036 = vld [vmem:[%s3 + $0x40] sm:$0xf]
      %v1037 = vld [vmem:[%s3 + $0x44] sm:$0xf]
      %v1038 = vld [vmem:[%s3 + $0x48] sm:$0xf]
      %v1039 = vld [vmem:[%s3 + $0x4c] sm:$0xf]
      %v1040 = vld [vmem:[%s3 + $0x50] sm:$0xf]
      %v1041 = vld [vmem:[%s3 + $0x54] sm:$0xf]
      %v1042 = vld [vmem:[%s3 + $0x58] sm:$0xf]
      %v1043 = vld [vmem:[%s3 + $0x5c] sm:$0xf]
      %v1044 = vld [vmem:[%s3 + $0x60] sm:$0xf]
      %v1045 = vld [vmem:[%s3 + $0x64] sm:$0xf]
      %v1046 = vld [vmem:[%s3 + $0x68] sm:$0xf]
      %v1047 = vld [vmem:[%s3 + $0x6c] sm:$0xf]
      %v1048 = vld [vmem:[%s3 + $0x70] sm:$0xf]
      %v1049 = vld [vmem:[%s3 + $0x74] sm:$0xf]
      %v1050 = vld [vmem:[%s3 + $0x78] sm:$0xf]
      %v1051 = vld [vmem:[%s3 + $0x7c] sm:$0xf]
      %v1052 = vld [vmem:[%s3 + $0x80] sm:$0xf]
      %v1053 = vld [vmem:[%s3 + $0x84] sm:$0xf]
      %v1054 = vld [vmem:[%s3 + $0x88] sm:$0xf]
      %v1055 = vld [vmem:[%s3 + $0x8c] sm:$0xf]
      %v1056 = vld [vmem:[%s3 + $0x90] sm:$0xf]
      %v1057 = vld [vmem:[%s3 + $0x94] sm:$0xf]
      %v1058 = vld [vmem:[%s3 + $0x98] sm:$0xf]
      %v1059 = vld [vmem:[%s3 + $0x9c] sm:$0xf]
      %v1060 = vld [vmem:[%s3 + $0xa0] sm:$0xf]
      %v1061 = vld [vmem:[%s3 + $0xa4] sm:$0xf]
      %v1062 = vld [vmem:[%s3 + $0xa8] sm:$0xf]
      %v1063 = vld [vmem:[%s3 + $0xac] sm:$0xf]
      %v1064 = vld [vmem:[%s3 + $0xb0] sm:$0xf]
      %v1065 = vld [vmem:[%s3 + $0xb4] sm:$0xf]
      %v1066 = vld [vmem:[%s3 + $0xb8] sm:$0xf]
      %v1067 = vld [vmem:[%s3 + $0xbc] sm:$0xf]
      %s1068 = scalar_lea.vmem %s3, 192
      %v1069 = vld [vmem:[%s1068] sm:$0xf]
      %v1070 = vld [vmem:[%s1068 + $0x4] sm:$0xf]
      %v1071 = vld [vmem:[%s1068 + $0x8] sm:$0xf]
      %v1072 = vld [vmem:[%s1068 + $0xc] sm:$0xf]
      %v1073 = vld [vmem:[%s1068 + $0x10] sm:$0xf]
      %v1074 = vld [vmem:[%s1068 + $0x14] sm:$0xf]
      %v1075 = vld [vmem:[%s1068 + $0x18] sm:$0xf]
      %v1076 = vld [vmem:[%s1068 + $0x1c] sm:$0xf]
      %v1077 = vld [vmem:[%s1068 + $0x20] sm:$0xf]
      %v1078 = vld [vmem:[%s1068 + $0x24] sm:$0xf]
      %v1079 = vld [vmem:[%s1068 + $0x28] sm:$0xf]
      %v1080 = vld [vmem:[%s1068 + $0x2c] sm:$0xf]
      %v1081 = vld [vmem:[%s1068 + $0x30] sm:$0xf]
      %v1082 = vld [vmem:[%s1068 + $0x34] sm:$0xf]
      %v1083 = vld [vmem:[%s1068 + $0x38] sm:$0xf]
      %v1084 = vld [vmem:[%s1068 + $0x3c] sm:$0xf]
      %v1085 = vld [vmem:[%s1068 + $0x40] sm:$0xf]
      %v1086 = vld [vmem:[%s1068 + $0x44] sm:$0xf]
      %v1087 = vld [vmem:[%s1068 + $0x48] sm:$0xf]
      %v1088 = vld [vmem:[%s1068 + $0x4c] sm:$0xf]
      %v1089 = vld [vmem:[%s1068 + $0x50] sm:$0xf]
      %v1090 = vld [vmem:[%s1068 + $0x54] sm:$0xf]
      %v1091 = vld [vmem:[%s1068 + $0x58] sm:$0xf]
      %v1092 = vld [vmem:[%s1068 + $0x5c] sm:$0xf]
      %v1093 = vld [vmem:[%s1068 + $0x60] sm:$0xf]
      %v1094 = vld [vmem:[%s1068 + $0x64] sm:$0xf]
      %v1095 = vld [vmem:[%s1068 + $0x68] sm:$0xf]
      %v1096 = vld [vmem:[%s1068 + $0x6c] sm:$0xf]
      %v1097 = vld [vmem:[%s1068 + $0x70] sm:$0xf]
      %v1098 = vld [vmem:[%s1068 + $0x74] sm:$0xf]
      %v1099 = vld [vmem:[%s1068 + $0x78] sm:$0xf]
      %v1100 = vld [vmem:[%s1068 + $0x7c] sm:$0xf]
      %v1101 = vld [vmem:[%s1068 + $0x80] sm:$0xf]
      %v1102 = vld [vmem:[%s1068 + $0x84] sm:$0xf]
      %v1103 = vld [vmem:[%s1068 + $0x88] sm:$0xf]
      %v1104 = vld [vmem:[%s1068 + $0x8c] sm:$0xf]
      %v1105 = vld [vmem:[%s1068 + $0x90] sm:$0xf]
      %v1106 = vld [vmem:[%s1068 + $0x94] sm:$0xf]
      %v1107 = vld [vmem:[%s1068 + $0x98] sm:$0xf]
      %v1108 = vld [vmem:[%s1068 + $0x9c] sm:$0xf]
      %v1109 = vld [vmem:[%s1068 + $0xa0] sm:$0xf]
      %v1110 = vld [vmem:[%s1068 + $0xa4] sm:$0xf]
      %v1111 = vld [vmem:[%s1068 + $0xa8] sm:$0xf]
      %v1112 = vld [vmem:[%s1068 + $0xac] sm:$0xf]
      %v1113 = vld [vmem:[%s1068 + $0xb0] sm:$0xf]
      %v1114 = vld [vmem:[%s1068 + $0xb4] sm:$0xf]
      %v1115 = vld [vmem:[%s1068 + $0xb8] sm:$0xf]
      %v1116 = vld [vmem:[%s1068 + $0xbc] sm:$0xf]
      %v1165 = vunpack.c.l.b16 %v1069
      %v1166 = vunpack.c.l.b16 %v1070
      %v1167 = vunpack.c.l.b16 %v1071
      %v1168 = vunpack.c.l.b16 %v1072
      %v1169 = vunpack.c.l.b16 %v1073
      %v1170 = vunpack.c.l.b16 %v1074
      %v1171 = vunpack.c.l.b16 %v1075
      %v1172 = vunpack.c.l.b16 %v1076
      %v1173 = vunpack.c.l.b16 %v1077
      %v1174 = vunpack.c.l.b16 %v1078
      %v1175 = vunpack.c.l.b16 %v1079
      %v1176 = vunpack.c.l.b16 %v1080
      %v1177 = vunpack.c.l.b16 %v1081
      %v1178 = vunpack.c.l.b16 %v1082
      %v1179 = vunpack.c.l.b16 %v1083
      %v1180 = vunpack.c.l.b16 %v1084
      %v1181 = vunpack.c.l.b16 %v1085
      %v1182 = vunpack.c.l.b16 %v1086
      %v1183 = vunpack.c.l.b16 %v1087
      %v1184 = vunpack.c.l.b16 %v1088
      %v1185 = vunpack.c.l.b16 %v1089
      %v1186 = vunpack.c.l.b16 %v1090
      %v1187 = vunpack.c.l.b16 %v1091
      %v1188 = vunpack.c.l.b16 %v1092
      %v1189 = vunpack.c.l.b16 %v1093
      %v1190 = vunpack.c.l.b16 %v1094
      %v1191 = vunpack.c.l.b16 %v1095
      %v1192 = vunpack.c.l.b16 %v1096
      %v1193 = vunpack.c.l.b16 %v1097
      %v1194 = vunpack.c.l.b16 %v1098
      %v1195 = vunpack.c.l.b16 %v1099
      %v1196 = vunpack.c.l.b16 %v1100
      %v1197 = vunpack.c.l.b16 %v1101
      %v1198 = vunpack.c.l.b16 %v1102
      %v1199 = vunpack.c.l.b16 %v1103
      %v1200 = vunpack.c.l.b16 %v1104
      %v1201 = vunpack.c.l.b16 %v1105
      %v1202 = vunpack.c.l.b16 %v1106
      %v1203 = vunpack.c.l.b16 %v1107
      %v1204 = vunpack.c.l.b16 %v1108
      %v1205 = vunpack.c.l.b16 %v1109
      %v1206 = vunpack.c.l.b16 %v1110
      %v1207 = vunpack.c.l.b16 %v1111
      %v1208 = vunpack.c.l.b16 %v1112
      %v1209 = vunpack.c.l.b16 %v1113
      %v1210 = vunpack.c.l.b16 %v1114
      %v1211 = vunpack.c.l.b16 %v1115
      %v1212 = vunpack.c.l.b16 %v1116
      %v1213 = vpack.c.b16 %v1166, %v1165
      %v1214 = vpack.c.b16 %v1168, %v1167
      %v1215 = vpack.c.b16 %v1170, %v1169
      %v1216 = vpack.c.b16 %v1172, %v1171
      %v1217 = vpack.c.b16 %v1174, %v1173
      %v1218 = vpack.c.b16 %v1176, %v1175
      %v1219 = vpack.c.b16 %v1178, %v1177
      %v1220 = vpack.c.b16 %v1180, %v1179
      %v1221 = vpack.c.b16 %v1182, %v1181
      %v1222 = vpack.c.b16 %v1184, %v1183
      %v1223 = vpack.c.b16 %v1186, %v1185
      %v1224 = vpack.c.b16 %v1188, %v1187
      %v1225 = vpack.c.b16 %v1190, %v1189
      %v1226 = vpack.c.b16 %v1192, %v1191
      %v1227 = vpack.c.b16 %v1194, %v1193
      %v1228 = vpack.c.b16 %v1196, %v1195
      %v1229 = vpack.c.b16 %v1198, %v1197
      %v1230 = vpack.c.b16 %v1200, %v1199
      %v1231 = vpack.c.b16 %v1202, %v1201
      %v1232 = vpack.c.b16 %v1204, %v1203
      %v1233 = vpack.c.b16 %v1206, %v1205
      %v1234 = vpack.c.b16 %v1208, %v1207
      %v1235 = vpack.c.b16 %v1210, %v1209
      %v1236 = vpack.c.b16 %v1212, %v1211
      %1261 = vmatpush.bf16.msra.mxu0 %v1220
      %1262 = vmatpush.bf16.msra.mxu0 %v1219
      %1263 = vmatpush.bf16.msra.mxu0 %v1218
      %1264 = vmatpush.bf16.msra.mxu0 %v1217
      %1265 = vmatpush.bf16.msra.mxu0 %v1216
      %1266 = vmatpush.bf16.msra.mxu0 %v1215
      %1267 = vmatpush.bf16.msra.mxu0 %v1214
      %1268 = vmatpush.bf16.msra.mxu0 %v1213
      %1269 = vmatmul.bf16.gmra.mxu0 %v910
      %v1270 = vpop.f32.mrf.mxu0
      %v1271 = vadd.f32 0.0, %v1270
      %v1272 = vpop.f32.mrf.mxu0
      %v1273 = vadd.f32 0.0, %v1272
      %1274 = vmatmul.bf16.gmra.mxu0 %v911
      %v1275 = vpop.f32.mrf.mxu0
      %v1276 = vadd.f32 0.0, %v1275
      %v1277 = vpop.f32.mrf.mxu0
      %v1278 = vadd.f32 0.0, %v1277
      %1279 = vmatmul.bf16.gmra.mxu0 %v912
      %v1280 = vpop.f32.mrf.mxu0
      %v1281 = vadd.f32 0.0, %v1280
      %v1282 = vpop.f32.mrf.mxu0
      %v1283 = vadd.f32 0.0, %v1282
      %1284 = vmatmul.bf16.gmra.mxu0 %v913
      %v1285 = vpop.f32.mrf.mxu0
      %v1286 = vadd.f32 0.0, %v1285
      %v1287 = vpop.f32.mrf.mxu0
      %v1288 = vadd.f32 0.0, %v1287
      %1289 = vmatmul.bf16.gmra.mxu0 %v914
      %v1290 = vpop.f32.mrf.mxu0
      %v1291 = vadd.f32 0.0, %v1290
      %v1292 = vpop.f32.mrf.mxu0
      %v1293 = vadd.f32 0.0, %v1292
      %1294 = vmatmul.bf16.gmra.mxu0 %v915
      %v1295 = vpop.f32.mrf.mxu0
      %v1296 = vadd.f32 0.0, %v1295
      %v1297 = vpop.f32.mrf.mxu0
      %v1298 = vadd.f32 0.0, %v1297
      %1299 = vmatmul.bf16.gmra.mxu0 %v916
      %v1300 = vpop.f32.mrf.mxu0
      %v1301 = vadd.f32 0.0, %v1300
      %v1302 = vpop.f32.mrf.mxu0
      %v1303 = vadd.f32 0.0, %v1302
      %1304 = vmatmul.bf16.gmra.mxu0 %v917
      %v1305 = vpop.f32.mrf.mxu0
      %v1306 = vadd.f32 0.0, %v1305
      %v1307 = vpop.f32.mrf.mxu0
      %v1308 = vadd.f32 0.0, %v1307
      %1309 = vmatmul.bf16.gmra.mxu0 %v918
      %v1310 = vpop.f32.mrf.mxu0
      %v1311 = vadd.f32 0.0, %v1310
      %v1312 = vpop.f32.mrf.mxu0
      %v1313 = vadd.f32 0.0, %v1312
      %1314 = vmatmul.bf16.gmra.mxu0 %v919
      %v1315 = vpop.f32.mrf.mxu0
      %v1316 = vadd.f32 0.0, %v1315
      %v1317 = vpop.f32.mrf.mxu0
      %v1318 = vadd.f32 0.0, %v1317
      %1319 = vmatmul.bf16.gmra.mxu0 %v920
      %v1320 = vpop.f32.mrf.mxu0
      %v1321 = vadd.f32 0.0, %v1320
      %v1322 = vpop.f32.mrf.mxu0
      %v1323 = vadd.f32 0.0, %v1322
      %1324 = vmatmul.bf16.gmra.mxu0 %v921
      %v1325 = vpop.f32.mrf.mxu0
      %v1326 = vadd.f32 0.0, %v1325
      %v1327 = vpop.f32.mrf.mxu0
      %v1328 = vadd.f32 0.0, %v1327
      %1329 = vmatmul.bf16.gmra.mxu0 %v922
      %v1330 = vpop.f32.mrf.mxu0
      %v1331 = vadd.f32 0.0, %v1330
      %v1332 = vpop.f32.mrf.mxu0
      %v1333 = vadd.f32 0.0, %v1332
      %1334 = vmatmul.bf16.gmra.mxu0 %v923
      %v1335 = vpop.f32.mrf.mxu0
      %v1336 = vadd.f32 0.0, %v1335
      %v1337 = vpop.f32.mrf.mxu0
      %v1338 = vadd.f32 0.0, %v1337
      %1339 = vmatmul.bf16.gmra.mxu0 %v924
      %v1340 = vpop.f32.mrf.mxu0
      %v1341 = vadd.f32 0.0, %v1340
      %v1342 = vpop.f32.mrf.mxu0
      %v1343 = vadd.f32 0.0, %v1342
      %1344 = vmatmul.bf16.gmra.mxu0 %v925
      %v1345 = vpop.f32.mrf.mxu0
      %v1346 = vadd.f32 0.0, %v1345
      %v1347 = vpop.f32.mrf.mxu0
      %v1348 = vadd.f32 0.0, %v1347
      %1349 = vdwg.mxu0
      %1350 = vmatpush.bf16.msra.mxu0 %v1228
      %1351 = vmatpush.bf16.msra.mxu0 %v1227
      %1352 = vmatpush.bf16.msra.mxu0 %v1226
      %1353 = vmatpush.bf16.msra.mxu0 %v1225
      %1354 = vmatpush.bf16.msra.mxu0 %v1224
      %1355 = vmatpush.bf16.msra.mxu0 %v1223
      %1356 = vmatpush.bf16.msra.mxu0 %v1222
      %1357 = vmatpush.bf16.msra.mxu0 %v1221
      %1358 = vmatmul.bf16.gmra.mxu0 %v745
      %v1359 = vpop.f32.mrf.mxu0
      %v1360 = vadd.f32 %v1271, %v1359
      %v1361 = vpop.f32.mrf.mxu0
      %v1362 = vadd.f32 %v1273, %v1361
      %1363 = vmatmul.bf16.gmra.mxu0 %v746
      %v1364 = vpop.f32.mrf.mxu0
      %v1365 = vadd.f32 %v1276, %v1364
      %v1366 = vpop.f32.mrf.mxu0
      %v1367 = vadd.f32 %v1278, %v1366
      %1368 = vmatmul.bf16.gmra.mxu0 %v747
      %v1369 = vpop.f32.mrf.mxu0
      %v1370 = vadd.f32 %v1281, %v1369
      %v1371 = vpop.f32.mrf.mxu0
      %v1372 = vadd.f32 %v1283, %v1371
      %1373 = vmatmul.bf16.gmra.mxu0 %v748
      %v1374 = vpop.f32.mrf.mxu0
      %v1375 = vadd.f32 %v1286, %v1374
      %v1376 = vpop.f32.mrf.mxu0
      %v1377 = vadd.f32 %v1288, %v1376
      %1378 = vmatmul.bf16.gmra.mxu0 %v749
      %v1379 = vpop.f32.mrf.mxu0
      %v1380 = vadd.f32 %v1291, %v1379
      %v1381 = vpop.f32.mrf.mxu0
      %v1382 = vadd.f32 %v1293, %v1381
      %1383 = vmatmul.bf16.gmra.mxu0 %v750
      %v1384 = vpop.f32.mrf.mxu0
      %v1385 = vadd.f32 %v1296, %v1384
      %v1386 = vpop.f32.mrf.mxu0
      %v1387 = vadd.f32 %v1298, %v1386
      %1388 = vmatmul.bf16.gmra.mxu0 %v751
      %v1389 = vpop.f32.mrf.mxu0
      %v1390 = vadd.f32 %v1301, %v1389
      %v1391 = vpop.f32.mrf.mxu0
      %v1392 = vadd.f32 %v1303, %v1391
      %1393 = vmatmul.bf16.gmra.mxu0 %v752
      %v1394 = vpop.f32.mrf.mxu0
      %v1395 = vadd.f32 %v1306, %v1394
      %v1396 = vpop.f32.mrf.mxu0
      %v1397 = vadd.f32 %v1308, %v1396
      %1398 = vmatmul.bf16.gmra.mxu0 %v753
      %v1399 = vpop.f32.mrf.mxu0
      %v1400 = vadd.f32 %v1311, %v1399
      %v1401 = vpop.f32.mrf.mxu0
      %v1402 = vadd.f32 %v1313, %v1401
      %1403 = vmatmul.bf16.gmra.mxu0 %v754
      %v1404 = vpop.f32.mrf.mxu0
      %v1405 = vadd.f32 %v1316, %v1404
      %v1406 = vpop.f32.mrf.mxu0
      %v1407 = vadd.f32 %v1318, %v1406
      %1408 = vmatmul.bf16.gmra.mxu0 %v755
      %v1409 = vpop.f32.mrf.mxu0
      %v1410 = vadd.f32 %v1321, %v1409
      %v1411 = vpop.f32.mrf.mxu0
      %v1412 = vadd.f32 %v1323, %v1411
      %1413 = vmatmul.bf16.gmra.mxu0 %v756
      %v1414 = vpop.f32.mrf.mxu0
      %v1415 = vadd.f32 %v1326, %v1414
      %v1416 = vpop.f32.mrf.mxu0
      %v1417 = vadd.f32 %v1328, %v1416
      %1418 = vmatmul.bf16.gmra.mxu0 %v757
      %v1419 = vpop.f32.mrf.mxu0
      %v1420 = vadd.f32 %v1331, %v1419
      %v1421 = vpop.f32.mrf.mxu0
      %v1422 = vadd.f32 %v1333, %v1421
      %1423 = vmatmul.bf16.gmra.mxu0 %v758
      %v1424 = vpop.f32.mrf.mxu0
      %v1425 = vadd.f32 %v1336, %v1424
      %v1426 = vpop.f32.mrf.mxu0
      %v1427 = vadd.f32 %v1338, %v1426
      %1428 = vmatmul.bf16.gmra.mxu0 %v759
      %v1429 = vpop.f32.mrf.mxu0
      %v1430 = vadd.f32 %v1341, %v1429
      %v1431 = vpop.f32.mrf.mxu0
      %v1432 = vadd.f32 %v1343, %v1431
      %1433 = vmatmul.bf16.gmra.mxu0 %v760
      %v1434 = vpop.f32.mrf.mxu0
      %v1435 = vadd.f32 %v1346, %v1434
      %v1436 = vpop.f32.mrf.mxu0
      %v1437 = vadd.f32 %v1348, %v1436
      %1438 = vdwg.mxu0
      %1439 = vmatpush.bf16.msra.mxu0 %v1236
      %1440 = vmatpush.bf16.msra.mxu0 %v1235
      %1441 = vmatpush.bf16.msra.mxu0 %v1234
      %1442 = vmatpush.bf16.msra.mxu0 %v1233
      %1443 = vmatpush.bf16.msra.mxu0 %v1232
      %1444 = vmatpush.bf16.msra.mxu0 %v1231
      %1445 = vmatpush.bf16.msra.mxu0 %v1230
      %1446 = vmatpush.bf16.msra.mxu0 %v1229
      %1447 = vmatmul.bf16.gmra.mxu0 %v985
      %v1448 = vpop.f32.mrf.mxu0
      %v1449 = vadd.f32 %v1360, %v1448
      %v1450 = vpop.f32.mrf.mxu0
      %v1451 = vadd.f32 %v1362, %v1450
      %1452 = vmatmul.bf16.gmra.mxu0 %v986
      %v1453 = vpop.f32.mrf.mxu0
      %v1454 = vadd.f32 %v1365, %v1453
      %v1455 = vpop.f32.mrf.mxu0
      %v1456 = vadd.f32 %v1367, %v1455
      %1457 = vmatmul.bf16.gmra.mxu0 %v987
      %v1458 = vpop.f32.mrf.mxu0
      %v1459 = vadd.f32 %v1370, %v1458
      %v1460 = vpop.f32.mrf.mxu0
      %v1461 = vadd.f32 %v1372, %v1460
      %1462 = vmatmul.bf16.gmra.mxu0 %v988
      %v1463 = vpop.f32.mrf.mxu0
      %v1464 = vadd.f32 %v1375, %v1463
      %v1465 = vpop.f32.mrf.mxu0
      %v1466 = vadd.f32 %v1377, %v1465
      %1467 = vmatmul.bf16.gmra.mxu0 %v989
      %v1468 = vpop.f32.mrf.mxu0
      %v1469 = vadd.f32 %v1380, %v1468
      %v1470 = vpop.f32.mrf.mxu0
      %v1471 = vadd.f32 %v1382, %v1470
      %1472 = vmatmul.bf16.gmra.mxu0 %v990
      %v1473 = vpop.f32.mrf.mxu0
      %v1474 = vadd.f32 %v1385, %v1473
      %v1475 = vpop.f32.mrf.mxu0
      %v1476 = vadd.f32 %v1387, %v1475
      %1477 = vmatmul.bf16.gmra.mxu0 %v991
      %v1478 = vpop.f32.mrf.mxu0
      %v1479 = vadd.f32 %v1390, %v1478
      %v1480 = vpop.f32.mrf.mxu0
      %v1481 = vadd.f32 %v1392, %v1480
      %1482 = vmatmul.bf16.gmra.mxu0 %v992
      %v1483 = vpop.f32.mrf.mxu0
      %v1484 = vadd.f32 %v1395, %v1483
      %v1485 = vpop.f32.mrf.mxu0
      %v1486 = vadd.f32 %v1397, %v1485
      %1487 = vmatmul.bf16.gmra.mxu0 %v993
      %v1488 = vpop.f32.mrf.mxu0
      %v1489 = vadd.f32 %v1400, %v1488
      %v1490 = vpop.f32.mrf.mxu0
      %v1491 = vadd.f32 %v1402, %v1490
      %1492 = vmatmul.bf16.gmra.mxu0 %v994
      %v1493 = vpop.f32.mrf.mxu0
      %v1494 = vadd.f32 %v1405, %v1493
      %v1495 = vpop.f32.mrf.mxu0
      %v1496 = vadd.f32 %v1407, %v1495
      %1497 = vmatmul.bf16.gmra.mxu0 %v995
      %v1498 = vpop.f32.mrf.mxu0
      %v1499 = vadd.f32 %v1410, %v1498
      %v1500 = vpop.f32.mrf.mxu0
      %v1501 = vadd.f32 %v1412, %v1500
      %1502 = vmatmul.bf16.gmra.mxu0 %v996
      %v1503 = vpop.f32.mrf.mxu0
      %v1504 = vadd.f32 %v1415, %v1503
      %v1505 = vpop.f32.mrf.mxu0
      %v1506 = vadd.f32 %v1417, %v1505
      %1507 = vmatmul.bf16.gmra.mxu0 %v997
      %v1508 = vpop.f32.mrf.mxu0
      %v1509 = vadd.f32 %v1420, %v1508
      %v1510 = vpop.f32.mrf.mxu0
      %v1511 = vadd.f32 %v1422, %v1510
      %1512 = vmatmul.bf16.gmra.mxu0 %v998
      %v1513 = vpop.f32.mrf.mxu0
      %v1514 = vadd.f32 %v1425, %v1513
      %v1515 = vpop.f32.mrf.mxu0
      %v1516 = vadd.f32 %v1427, %v1515
      %1517 = vmatmul.bf16.gmra.mxu0 %v999
      %v1518 = vpop.f32.mrf.mxu0
      %v1519 = vadd.f32 %v1430, %v1518
      %v1520 = vpop.f32.mrf.mxu0
      %v1521 = vadd.f32 %v1432, %v1520
      %1522 = vmatmul.bf16.gmra.mxu0 %v1000
      %v1523 = vpop.f32.mrf.mxu0
      %v1524 = vadd.f32 %v1435, %v1523
      %v1525 = vpop.f32.mrf.mxu0
      %v1526 = vadd.f32 %v1437, %v1525
      %1527 = vdwg.mxu0
      %v1576 = vunpack.c.l.b16 %v1020
      %v1577 = vunpack.c.l.b16 %v1021
      %v1578 = vunpack.c.l.b16 %v1022
      %v1579 = vunpack.c.l.b16 %v1023
      %v1580 = vunpack.c.l.b16 %v1024
      %v1581 = vunpack.c.l.b16 %v1025
      %v1582 = vunpack.c.l.b16 %v1026
      %v1583 = vunpack.c.l.b16 %v1027
      %v1584 = vunpack.c.l.b16 %v1028
      %v1585 = vunpack.c.l.b16 %v1029
      %v1586 = vunpack.c.l.b16 %v1030
      %v1587 = vunpack.c.l.b16 %v1031
      %v1588 = vunpack.c.l.b16 %v1032
      %v1589 = vunpack.c.l.b16 %v1033
      %v1590 = vunpack.c.l.b16 %v1034
      %v1591 = vunpack.c.l.b16 %v1035
      %v1592 = vunpack.c.l.b16 %v1036
      %v1593 = vunpack.c.l.b16 %v1037
      %v1594 = vunpack.c.l.b16 %v1038
      %v1595 = vunpack.c.l.b16 %v1039
      %v1596 = vunpack.c.l.b16 %v1040
      %v1597 = vunpack.c.l.b16 %v1041
      %v1598 = vunpack.c.l.b16 %v1042
      %v1599 = vunpack.c.l.b16 %v1043
      %v1600 = vunpack.c.l.b16 %v1044
      %v1601 = vunpack.c.l.b16 %v1045
      %v1602 = vunpack.c.l.b16 %v1046
      %v1603 = vunpack.c.l.b16 %v1047
      %v1604 = vunpack.c.l.b16 %v1048
      %v1605 = vunpack.c.l.b16 %v1049
      %v1606 = vunpack.c.l.b16 %v1050
      %v1607 = vunpack.c.l.b16 %v1051
      %v1608 = vunpack.c.l.b16 %v1052
      %v1609 = vunpack.c.l.b16 %v1053
      %v1610 = vunpack.c.l.b16 %v1054
      %v1611 = vunpack.c.l.b16 %v1055
      %v1612 = vunpack.c.l.b16 %v1056
      %v1613 = vunpack.c.l.b16 %v1057
      %v1614 = vunpack.c.l.b16 %v1058
      %v1615 = vunpack.c.l.b16 %v1059
      %v1616 = vunpack.c.l.b16 %v1060
      %v1617 = vunpack.c.l.b16 %v1061
      %v1618 = vunpack.c.l.b16 %v1062
      %v1619 = vunpack.c.l.b16 %v1063
      %v1620 = vunpack.c.l.b16 %v1064
      %v1621 = vunpack.c.l.b16 %v1065
      %v1622 = vunpack.c.l.b16 %v1066
      %v1623 = vunpack.c.l.b16 %v1067
      %v1624 = vpack.c.b16 %v1577, %v1576
      %v1625 = vpack.c.b16 %v1579, %v1578
      %v1626 = vpack.c.b16 %v1581, %v1580
      %v1627 = vpack.c.b16 %v1583, %v1582
      %v1628 = vpack.c.b16 %v1585, %v1584
      %v1629 = vpack.c.b16 %v1587, %v1586
      %v1630 = vpack.c.b16 %v1589, %v1588
      %v1631 = vpack.c.b16 %v1591, %v1590
      %v1632 = vpack.c.b16 %v1593, %v1592
      %v1633 = vpack.c.b16 %v1595, %v1594
      %v1634 = vpack.c.b16 %v1597, %v1596
      %v1635 = vpack.c.b16 %v1599, %v1598
      %v1636 = vpack.c.b16 %v1601, %v1600
      %v1637 = vpack.c.b16 %v1603, %v1602
      %v1638 = vpack.c.b16 %v1605, %v1604
      %v1639 = vpack.c.b16 %v1607, %v1606
      %v1640 = vpack.c.b16 %v1609, %v1608
      %v1641 = vpack.c.b16 %v1611, %v1610
      %v1642 = vpack.c.b16 %v1613, %v1612
      %v1643 = vpack.c.b16 %v1615, %v1614
      %v1644 = vpack.c.b16 %v1617, %v1616
      %v1645 = vpack.c.b16 %v1619, %v1618
      %v1646 = vpack.c.b16 %v1621, %v1620
      %v1647 = vpack.c.b16 %v1623, %v1622
      %1672 = vmatpush.bf16.msra.mxu0 %v1631
      %1673 = vmatpush.bf16.msra.mxu0 %v1630
      %1674 = vmatpush.bf16.msra.mxu0 %v1629
      %1675 = vmatpush.bf16.msra.mxu0 %v1628
      %1676 = vmatpush.bf16.msra.mxu0 %v1627
      %1677 = vmatpush.bf16.msra.mxu0 %v1626
      %1678 = vmatpush.bf16.msra.mxu0 %v1625
      %1679 = vmatpush.bf16.msra.mxu0 %v1624
      %1680 = vmatmul.bf16.gmra.mxu0 %v909
      %v1681 = vpop.f32.mrf.mxu0
      %v1682 = vadd.f32 %v1449, %v1681
      %v1683 = vpop.f32.mrf.mxu0
      %v1684 = vadd.f32 %v1451, %v1683
      %1685 = vmatmul.bf16.gmra.mxu0 %v910
      %v1686 = vpop.f32.mrf.mxu0
      %v1687 = vadd.f32 %v1454, %v1686
      %v1688 = vpop.f32.mrf.mxu0
      %v1689 = vadd.f32 %v1456, %v1688
      %1690 = vmatmul.bf16.gmra.mxu0 %v911
      %v1691 = vpop.f32.mrf.mxu0
      %v1692 = vadd.f32 %v1459, %v1691
      %v1693 = vpop.f32.mrf.mxu0
      %v1694 = vadd.f32 %v1461, %v1693
      %1695 = vmatmul.bf16.gmra.mxu0 %v912
      %v1696 = vpop.f32.mrf.mxu0
      %v1697 = vadd.f32 %v1464, %v1696
      %v1698 = vpop.f32.mrf.mxu0
      %v1699 = vadd.f32 %v1466, %v1698
      %1700 = vmatmul.bf16.gmra.mxu0 %v913
      %v1701 = vpop.f32.mrf.mxu0
      %v1702 = vadd.f32 %v1469, %v1701
      %v1703 = vpop.f32.mrf.mxu0
      %v1704 = vadd.f32 %v1471, %v1703
      %1705 = vmatmul.bf16.gmra.mxu0 %v914
      %v1706 = vpop.f32.mrf.mxu0
      %v1707 = vadd.f32 %v1474, %v1706
      %v1708 = vpop.f32.mrf.mxu0
      %v1709 = vadd.f32 %v1476, %v1708
      %1710 = vmatmul.bf16.gmra.mxu0 %v915
      %v1711 = vpop.f32.mrf.mxu0
      %v1712 = vadd.f32 %v1479, %v1711
      %v1713 = vpop.f32.mrf.mxu0
      %v1714 = vadd.f32 %v1481, %v1713
      %1715 = vmatmul.bf16.gmra.mxu0 %v916
      %v1716 = vpop.f32.mrf.mxu0
      %v1717 = vadd.f32 %v1484, %v1716
      %v1718 = vpop.f32.mrf.mxu0
      %v1719 = vadd.f32 %v1486, %v1718
      %1720 = vmatmul.bf16.gmra.mxu0 %v917
      %v1721 = vpop.f32.mrf.mxu0
      %v1722 = vadd.f32 %v1489, %v1721
      %v1723 = vpop.f32.mrf.mxu0
      %v1724 = vadd.f32 %v1491, %v1723
      %1725 = vmatmul.bf16.gmra.mxu0 %v918
      %v1726 = vpop.f32.mrf.mxu0
      %v1727 = vadd.f32 %v1494, %v1726
      %v1728 = vpop.f32.mrf.mxu0
      %v1729 = vadd.f32 %v1496, %v1728
      %1730 = vmatmul.bf16.gmra.mxu0 %v919
      %v1731 = vpop.f32.mrf.mxu0
      %v1732 = vadd.f32 %v1499, %v1731
      %v1733 = vpop.f32.mrf.mxu0
      %v1734 = vadd.f32 %v1501, %v1733
      %1735 = vmatmul.bf16.gmra.mxu0 %v920
      %v1736 = vpop.f32.mrf.mxu0
      %v1737 = vadd.f32 %v1504, %v1736
      %v1738 = vpop.f32.mrf.mxu0
      %v1739 = vadd.f32 %v1506, %v1738
      %1740 = vmatmul.bf16.gmra.mxu0 %v921
      %v1741 = vpop.f32.mrf.mxu0
      %v1742 = vadd.f32 %v1509, %v1741
      %v1743 = vpop.f32.mrf.mxu0
      %v1744 = vadd.f32 %v1511, %v1743
      %1745 = vmatmul.bf16.gmra.mxu0 %v922
      %v1746 = vpop.f32.mrf.mxu0
      %v1747 = vadd.f32 %v1514, %v1746
      %v1748 = vpop.f32.mrf.mxu0
      %v1749 = vadd.f32 %v1516, %v1748
      %1750 = vmatmul.bf16.gmra.mxu0 %v923
      %v1751 = vpop.f32.mrf.mxu0
      %v1752 = vadd.f32 %v1519, %v1751
      %v1753 = vpop.f32.mrf.mxu0
      %v1754 = vadd.f32 %v1521, %v1753
      %1755 = vmatmul.bf16.gmra.mxu0 %v924
      %v1756 = vpop.f32.mrf.mxu0
      %v1757 = vadd.f32 %v1524, %v1756
      %v1758 = vpop.f32.mrf.mxu0
      %v1759 = vadd.f32 %v1526, %v1758
      %1760 = vdwg.mxu0
      %1761 = vmatpush.bf16.msra.mxu0 %v1639
      %1762 = vmatpush.bf16.msra.mxu0 %v1638
      %1763 = vmatpush.bf16.msra.mxu0 %v1637
      %1764 = vmatpush.bf16.msra.mxu0 %v1636
      %1765 = vmatpush.bf16.msra.mxu0 %v1635
      %1766 = vmatpush.bf16.msra.mxu0 %v1634
      %1767 = vmatpush.bf16.msra.mxu0 %v1633
      %1768 = vmatpush.bf16.msra.mxu0 %v1632
      %1769 = vmatmul.bf16.gmra.mxu0 %v744
      %v1770 = vpop.f32.mrf.mxu0
      %v1771 = vadd.f32 %v1682, %v1770
      %v1772 = vpop.f32.mrf.mxu0
      %v1773 = vadd.f32 %v1684, %v1772
      %1774 = vmatmul.bf16.gmra.mxu0 %v745
      %v1775 = vpop.f32.mrf.mxu0
      %v1776 = vadd.f32 %v1687, %v1775
      %v1777 = vpop.f32.mrf.mxu0
      %v1778 = vadd.f32 %v1689, %v1777
      %1779 = vmatmul.bf16.gmra.mxu0 %v746
      %v1780 = vpop.f32.mrf.mxu0
      %v1781 = vadd.f32 %v1692, %v1780
      %v1782 = vpop.f32.mrf.mxu0
      %v1783 = vadd.f32 %v1694, %v1782
      %1784 = vmatmul.bf16.gmra.mxu0 %v747
      %v1785 = vpop.f32.mrf.mxu0
      %v1786 = vadd.f32 %v1697, %v1785
      %v1787 = vpop.f32.mrf.mxu0
      %v1788 = vadd.f32 %v1699, %v1787
      %1789 = vmatmul.bf16.gmra.mxu0 %v748
      %v1790 = vpop.f32.mrf.mxu0
      %v1791 = vadd.f32 %v1702, %v1790
      %v1792 = vpop.f32.mrf.mxu0
      %v1793 = vadd.f32 %v1704, %v1792
      %1794 = vmatmul.bf16.gmra.mxu0 %v749
      %v1795 = vpop.f32.mrf.mxu0
      %v1796 = vadd.f32 %v1707, %v1795
      %v1797 = vpop.f32.mrf.mxu0
      %v1798 = vadd.f32 %v1709, %v1797
      %1799 = vmatmul.bf16.gmra.mxu0 %v750
      %v1800 = vpop.f32.mrf.mxu0
      %v1801 = vadd.f32 %v1712, %v1800
      %v1802 = vpop.f32.mrf.mxu0
      %v1803 = vadd.f32 %v1714, %v1802
      %1804 = vmatmul.bf16.gmra.mxu0 %v751
      %v1805 = vpop.f32.mrf.mxu0
      %v1806 = vadd.f32 %v1717, %v1805
      %v1807 = vpop.f32.mrf.mxu0
      %v1808 = vadd.f32 %v1719, %v1807
      %1809 = vmatmul.bf16.gmra.mxu0 %v752
      %v1810 = vpop.f32.mrf.mxu0
      %v1811 = vadd.f32 %v1722, %v1810
      %v1812 = vpop.f32.mrf.mxu0
      %v1813 = vadd.f32 %v1724, %v1812
      %1814 = vmatmul.bf16.gmra.mxu0 %v753
      %v1815 = vpop.f32.mrf.mxu0
      %v1816 = vadd.f32 %v1727, %v1815
      %v1817 = vpop.f32.mrf.mxu0
      %v1818 = vadd.f32 %v1729, %v1817
      %1819 = vmatmul.bf16.gmra.mxu0 %v754
      %v1820 = vpop.f32.mrf.mxu0
      %v1821 = vadd.f32 %v1732, %v1820
      %v1822 = vpop.f32.mrf.mxu0
      %v1823 = vadd.f32 %v1734, %v1822
      %1824 = vmatmul.bf16.gmra.mxu0 %v755
      %v1825 = vpop.f32.mrf.mxu0
      %v1826 = vadd.f32 %v1737, %v1825
      %v1827 = vpop.f32.mrf.mxu0
      %v1828 = vadd.f32 %v1739, %v1827
      %1829 = vmatmul.bf16.gmra.mxu0 %v756
      %v1830 = vpop.f32.mrf.mxu0
      %v1831 = vadd.f32 %v1742, %v1830
      %v1832 = vpop.f32.mrf.mxu0
      %v1833 = vadd.f32 %v1744, %v1832
      %1834 = vmatmul.bf16.gmra.mxu0 %v757
      %v1835 = vpop.f32.mrf.mxu0
      %v1836 = vadd.f32 %v1747, %v1835
      %v1837 = vpop.f32.mrf.mxu0
      %v1838 = vadd.f32 %v1749, %v1837
      %1839 = vmatmul.bf16.gmra.mxu0 %v758
      %v1840 = vpop.f32.mrf.mxu0
      %v1841 = vadd.f32 %v1752, %v1840
      %v1842 = vpop.f32.mrf.mxu0
      %v1843 = vadd.f32 %v1754, %v1842
      %1844 = vmatmul.bf16.gmra.mxu0 %v759
      %v1845 = vpop.f32.mrf.mxu0
      %v1846 = vadd.f32 %v1757, %v1845
      %v1847 = vpop.f32.mrf.mxu0
      %v1848 = vadd.f32 %v1759, %v1847
      %1849 = vdwg.mxu0
      %1850 = vmatpush.bf16.msra.mxu0 %v1647
      %1851 = vmatpush.bf16.msra.mxu0 %v1646
      %1852 = vmatpush.bf16.msra.mxu0 %v1645
      %1853 = vmatpush.bf16.msra.mxu0 %v1644
      %1854 = vmatpush.bf16.msra.mxu0 %v1643
      %1855 = vmatpush.bf16.msra.mxu0 %v1642
      %1856 = vmatpush.bf16.msra.mxu0 %v1641
      %1857 = vmatpush.bf16.msra.mxu0 %v1640
      %1858 = vmatmul.bf16.gmra.mxu0 %v984
      %v1859 = vpop.f32.mrf.mxu0
      %v1860 = vadd.f32 %v1771, %v1859
      %v1861 = vpop.f32.mrf.mxu0
      %v1862 = vadd.f32 %v1773, %v1861
      %1863 = vmatmul.bf16.gmra.mxu0 %v985
      %v1864 = vpop.f32.mrf.mxu0
      %v1865 = vadd.f32 %v1776, %v1864
      %v1866 = vpop.f32.mrf.mxu0
      %v1867 = vadd.f32 %v1778, %v1866
      %1868 = vmatmul.bf16.gmra.mxu0 %v986
      %v1869 = vpop.f32.mrf.mxu0
      %v1870 = vadd.f32 %v1781, %v1869
      %v1871 = vpop.f32.mrf.mxu0
      %v1872 = vadd.f32 %v1783, %v1871
      %1873 = vmatmul.bf16.gmra.mxu0 %v987
      %v1874 = vpop.f32.mrf.mxu0
      %v1875 = vadd.f32 %v1786, %v1874
      %v1876 = vpop.f32.mrf.mxu0
      %v1877 = vadd.f32 %v1788, %v1876
      %1878 = vmatmul.bf16.gmra.mxu0 %v988
      %v1879 = vpop.f32.mrf.mxu0
      %v1880 = vadd.f32 %v1791, %v1879
      %v1881 = vpop.f32.mrf.mxu0
      %v1882 = vadd.f32 %v1793, %v1881
      %1883 = vmatmul.bf16.gmra.mxu0 %v989
      %v1884 = vpop.f32.mrf.mxu0
      %v1885 = vadd.f32 %v1796, %v1884
      %v1886 = vpop.f32.mrf.mxu0
      %v1887 = vadd.f32 %v1798, %v1886
      %1888 = vmatmul.bf16.gmra.mxu0 %v990
      %v1889 = vpop.f32.mrf.mxu0
      %v1890 = vadd.f32 %v1801, %v1889
      %v1891 = vpop.f32.mrf.mxu0
      %v1892 = vadd.f32 %v1803, %v1891
      %1893 = vmatmul.bf16.gmra.mxu0 %v991
      %v1894 = vpop.f32.mrf.mxu0
      %v1895 = vadd.f32 %v1806, %v1894
      %v1896 = vpop.f32.mrf.mxu0
      %v1897 = vadd.f32 %v1808, %v1896
      %1898 = vmatmul.bf16.gmra.mxu0 %v992
      %v1899 = vpop.f32.mrf.mxu0
      %v1900 = vadd.f32 %v1811, %v1899
      %v1901 = vpop.f32.mrf.mxu0
      %v1902 = vadd.f32 %v1813, %v1901
      %1903 = vmatmul.bf16.gmra.mxu0 %v993
      %v1904 = vpop.f32.mrf.mxu0
      %v1905 = vadd.f32 %v1816, %v1904
      %v1906 = vpop.f32.mrf.mxu0
      %v1907 = vadd.f32 %v1818, %v1906
      %1908 = vmatmul.bf16.gmra.mxu0 %v994
      %v1909 = vpop.f32.mrf.mxu0
      %v1910 = vadd.f32 %v1821, %v1909
      %v1911 = vpop.f32.mrf.mxu0
      %v1912 = vadd.f32 %v1823, %v1911
      %1913 = vmatmul.bf16.gmra.mxu0 %v995
      %v1914 = vpop.f32.mrf.mxu0
      %v1915 = vadd.f32 %v1826, %v1914
      %v1916 = vpop.f32.mrf.mxu0
      %v1917 = vadd.f32 %v1828, %v1916
      %1918 = vmatmul.bf16.gmra.mxu0 %v996
      %v1919 = vpop.f32.mrf.mxu0
      %v1920 = vadd.f32 %v1831, %v1919
      %v1921 = vpop.f32.mrf.mxu0
      %v1922 = vadd.f32 %v1833, %v1921
      %1923 = vmatmul.bf16.gmra.mxu0 %v997
      %v1924 = vpop.f32.mrf.mxu0
      %v1925 = vadd.f32 %v1836, %v1924
      %v1926 = vpop.f32.mrf.mxu0
      %v1927 = vadd.f32 %v1838, %v1926
      %1928 = vmatmul.bf16.gmra.mxu0 %v998
      %v1929 = vpop.f32.mrf.mxu0
      %v1930 = vadd.f32 %v1841, %v1929
      %v1931 = vpop.f32.mrf.mxu0
      %v1932 = vadd.f32 %v1843, %v1931
      %1933 = vmatmul.bf16.gmra.mxu0 %v999
      %v1934 = vpop.f32.mrf.mxu0
      %v1935 = vadd.f32 %v1846, %v1934
      %v1936 = vpop.f32.mrf.mxu0
      %v1937 = vadd.f32 %v1848, %v1936
      %1938 = vdwg.mxu0
      %s1939 = scalar_lea.vmem %s3, 384
      %v1940 = vld [vmem:[%s1939] sm:$0xf]
      %v1941 = vld [vmem:[%s1939 + $0x4] sm:$0xf]
      %v1942 = vld [vmem:[%s1939 + $0x8] sm:$0xf]
      %v1943 = vld [vmem:[%s1939 + $0xc] sm:$0xf]
      %v1944 = vld [vmem:[%s1939 + $0x10] sm:$0xf]
      %v1945 = vld [vmem:[%s1939 + $0x14] sm:$0xf]
      %v1946 = vld [vmem:[%s1939 + $0x18] sm:$0xf]
      %v1947 = vld [vmem:[%s1939 + $0x1c] sm:$0xf]
      %v1948 = vld [vmem:[%s1939 + $0x20] sm:$0xf]
      %v1949 = vld [vmem:[%s1939 + $0x24] sm:$0xf]
      %v1950 = vld [vmem:[%s1939 + $0x28] sm:$0xf]
      %v1951 = vld [vmem:[%s1939 + $0x2c] sm:$0xf]
      %v1952 = vld [vmem:[%s1939 + $0x30] sm:$0xf]
      %v1953 = vld [vmem:[%s1939 + $0x34] sm:$0xf]
      %v1954 = vld [vmem:[%s1939 + $0x38] sm:$0xf]
      %v1955 = vld [vmem:[%s1939 + $0x3c] sm:$0xf]
      %v1956 = vld [vmem:[%s1939 + $0x40] sm:$0xf]
      %v1957 = vld [vmem:[%s1939 + $0x44] sm:$0xf]
      %v1958 = vld [vmem:[%s1939 + $0x48] sm:$0xf]
      %v1959 = vld [vmem:[%s1939 + $0x4c] sm:$0xf]
      %v1960 = vld [vmem:[%s1939 + $0x50] sm:$0xf]
      %v1961 = vld [vmem:[%s1939 + $0x54] sm:$0xf]
      %v1962 = vld [vmem:[%s1939 + $0x58] sm:$0xf]
      %v1963 = vld [vmem:[%s1939 + $0x5c] sm:$0xf]
      %v1964 = vld [vmem:[%s1939 + $0x60] sm:$0xf]
      %v1965 = vld [vmem:[%s1939 + $0x64] sm:$0xf]
      %v1966 = vld [vmem:[%s1939 + $0x68] sm:$0xf]
      %v1967 = vld [vmem:[%s1939 + $0x6c] sm:$0xf]
      %v1968 = vld [vmem:[%s1939 + $0x70] sm:$0xf]
      %v1969 = vld [vmem:[%s1939 + $0x74] sm:$0xf]
      %v1970 = vld [vmem:[%s1939 + $0x78] sm:$0xf]
      %v1971 = vld [vmem:[%s1939 + $0x7c] sm:$0xf]
      %v1972 = vld [vmem:[%s1939 + $0x80] sm:$0xf]
      %v1973 = vld [vmem:[%s1939 + $0x84] sm:$0xf]
      %v1974 = vld [vmem:[%s1939 + $0x88] sm:$0xf]
      %v1975 = vld [vmem:[%s1939 + $0x8c] sm:$0xf]
      %v1976 = vld [vmem:[%s1939 + $0x90] sm:$0xf]
      %v1977 = vld [vmem:[%s1939 + $0x94] sm:$0xf]
      %v1978 = vld [vmem:[%s1939 + $0x98] sm:$0xf]
      %v1979 = vld [vmem:[%s1939 + $0x9c] sm:$0xf]
      %v1980 = vld [vmem:[%s1939 + $0xa0] sm:$0xf]
      %v1981 = vld [vmem:[%s1939 + $0xa4] sm:$0xf]
      %v1982 = vld [vmem:[%s1939 + $0xa8] sm:$0xf]
      %v1983 = vld [vmem:[%s1939 + $0xac] sm:$0xf]
      %v1984 = vld [vmem:[%s1939 + $0xb0] sm:$0xf]
      %v1985 = vld [vmem:[%s1939 + $0xb4] sm:$0xf]
      %v1986 = vld [vmem:[%s1939 + $0xb8] sm:$0xf]
      %v1987 = vld [vmem:[%s1939 + $0xbc] sm:$0xf]
      %v2036 = vunpack.c.l.b16 %v1940
      %v2037 = vunpack.c.l.b16 %v1941
      %v2038 = vunpack.c.l.b16 %v1942
      %v2039 = vunpack.c.l.b16 %v1943
      %v2040 = vunpack.c.l.b16 %v1944
      %v2041 = vunpack.c.l.b16 %v1945
      %v2042 = vunpack.c.l.b16 %v1946
      %v2043 = vunpack.c.l.b16 %v1947
      %v2044 = vunpack.c.l.b16 %v1948
      %v2045 = vunpack.c.l.b16 %v1949
      %v2046 = vunpack.c.l.b16 %v1950
      %v2047 = vunpack.c.l.b16 %v1951
      %v2048 = vunpack.c.l.b16 %v1952
      %v2049 = vunpack.c.l.b16 %v1953
      %v2050 = vunpack.c.l.b16 %v1954
      %v2051 = vunpack.c.l.b16 %v1955
      %v2052 = vunpack.c.l.b16 %v1956
      %v2053 = vunpack.c.l.b16 %v1957
      %v2054 = vunpack.c.l.b16 %v1958
      %v2055 = vunpack.c.l.b16 %v1959
      %v2056 = vunpack.c.l.b16 %v1960
      %v2057 = vunpack.c.l.b16 %v1961
      %v2058 = vunpack.c.l.b16 %v1962
      %v2059 = vunpack.c.l.b16 %v1963
      %v2060 = vunpack.c.l.b16 %v1964
      %v2061 = vunpack.c.l.b16 %v1965
      %v2062 = vunpack.c.l.b16 %v1966
      %v2063 = vunpack.c.l.b16 %v1967
      %v2064 = vunpack.c.l.b16 %v1968
      %v2065 = vunpack.c.l.b16 %v1969
      %v2066 = vunpack.c.l.b16 %v1970
      %v2067 = vunpack.c.l.b16 %v1971
      %v2068 = vunpack.c.l.b16 %v1972
      %v2069 = vunpack.c.l.b16 %v1973
      %v2070 = vunpack.c.l.b16 %v1974
      %v2071 = vunpack.c.l.b16 %v1975
      %v2072 = vunpack.c.l.b16 %v1976
      %v2073 = vunpack.c.l.b16 %v1977
      %v2074 = vunpack.c.l.b16 %v1978
      %v2075 = vunpack.c.l.b16 %v1979
      %v2076 = vunpack.c.l.b16 %v1980
      %v2077 = vunpack.c.l.b16 %v1981
      %v2078 = vunpack.c.l.b16 %v1982
      %v2079 = vunpack.c.l.b16 %v1983
      %v2080 = vunpack.c.l.b16 %v1984
      %v2081 = vunpack.c.l.b16 %v1985
      %v2082 = vunpack.c.l.b16 %v1986
      %v2083 = vunpack.c.l.b16 %v1987
      %v2084 = vpack.c.b16 %v2037, %v2036
      %v2085 = vpack.c.b16 %v2039, %v2038
      %v2086 = vpack.c.b16 %v2041, %v2040
      %v2087 = vpack.c.b16 %v2043, %v2042
      %v2088 = vpack.c.b16 %v2045, %v2044
      %v2089 = vpack.c.b16 %v2047, %v2046
      %v2090 = vpack.c.b16 %v2049, %v2048
      %v2091 = vpack.c.b16 %v2051, %v2050
      %v2092 = vpack.c.b16 %v2053, %v2052
      %v2093 = vpack.c.b16 %v2055, %v2054
      %v2094 = vpack.c.b16 %v2057, %v2056
      %v2095 = vpack.c.b16 %v2059, %v2058
      %v2096 = vpack.c.b16 %v2061, %v2060
      %v2097 = vpack.c.b16 %v2063, %v2062
      %v2098 = vpack.c.b16 %v2065, %v2064
      %v2099 = vpack.c.b16 %v2067, %v2066
      %v2100 = vpack.c.b16 %v2069, %v2068
      %v2101 = vpack.c.b16 %v2071, %v2070
      %v2102 = vpack.c.b16 %v2073, %v2072
      %v2103 = vpack.c.b16 %v2075, %v2074
      %v2104 = vpack.c.b16 %v2077, %v2076
      %v2105 = vpack.c.b16 %v2079, %v2078
      %v2106 = vpack.c.b16 %v2081, %v2080
      %v2107 = vpack.c.b16 %v2083, %v2082
      %2132 = vmatpush.bf16.msra.mxu0 %v2091
      %2133 = vmatpush.bf16.msra.mxu0 %v2090
      %2134 = vmatpush.bf16.msra.mxu0 %v2089
      %2135 = vmatpush.bf16.msra.mxu0 %v2088
      %2136 = vmatpush.bf16.msra.mxu0 %v2087
      %2137 = vmatpush.bf16.msra.mxu0 %v2086
      %2138 = vmatpush.bf16.msra.mxu0 %v2085
      %2139 = vmatpush.bf16.msra.mxu0 %v2084
      %2140 = vmatmul.bf16.gmra.mxu0 %v911
      %v2141 = vpop.f32.mrf.mxu0
      %v2142 = vadd.f32 0.0, %v2141
      %v2143 = vpop.f32.mrf.mxu0
      %v2144 = vadd.f32 0.0, %v2143
      %2145 = vmatmul.bf16.gmra.mxu0 %v912
      %v2146 = vpop.f32.mrf.mxu0
      %v2147 = vadd.f32 0.0, %v2146
      %v2148 = vpop.f32.mrf.mxu0
      %v2149 = vadd.f32 0.0, %v2148
      %2150 = vmatmul.bf16.gmra.mxu0 %v913
      %v2151 = vpop.f32.mrf.mxu0
      %v2152 = vadd.f32 0.0, %v2151
      %v2153 = vpop.f32.mrf.mxu0
      %v2154 = vadd.f32 0.0, %v2153
      %2155 = vmatmul.bf16.gmra.mxu0 %v914
      %v2156 = vpop.f32.mrf.mxu0
      %v2157 = vadd.f32 0.0, %v2156
      %v2158 = vpop.f32.mrf.mxu0
      %v2159 = vadd.f32 0.0, %v2158
      %2160 = vmatmul.bf16.gmra.mxu0 %v915
      %v2161 = vpop.f32.mrf.mxu0
      %v2162 = vadd.f32 0.0, %v2161
      %v2163 = vpop.f32.mrf.mxu0
      %v2164 = vadd.f32 0.0, %v2163
      %2165 = vmatmul.bf16.gmra.mxu0 %v916
      %v2166 = vpop.f32.mrf.mxu0
      %v2167 = vadd.f32 0.0, %v2166
      %v2168 = vpop.f32.mrf.mxu0
      %v2169 = vadd.f32 0.0, %v2168
      %2170 = vmatmul.bf16.gmra.mxu0 %v917
      %v2171 = vpop.f32.mrf.mxu0
      %v2172 = vadd.f32 0.0, %v2171
      %v2173 = vpop.f32.mrf.mxu0
      %v2174 = vadd.f32 0.0, %v2173
      %2175 = vmatmul.bf16.gmra.mxu0 %v918
      %v2176 = vpop.f32.mrf.mxu0
      %v2177 = vadd.f32 0.0, %v2176
      %v2178 = vpop.f32.mrf.mxu0
      %v2179 = vadd.f32 0.0, %v2178
      %2180 = vmatmul.bf16.gmra.mxu0 %v919
      %v2181 = vpop.f32.mrf.mxu0
      %v2182 = vadd.f32 0.0, %v2181
      %v2183 = vpop.f32.mrf.mxu0
      %v2184 = vadd.f32 0.0, %v2183
      %2185 = vmatmul.bf16.gmra.mxu0 %v920
      %v2186 = vpop.f32.mrf.mxu0
      %v2187 = vadd.f32 0.0, %v2186
      %v2188 = vpop.f32.mrf.mxu0
      %v2189 = vadd.f32 0.0, %v2188
      %2190 = vmatmul.bf16.gmra.mxu0 %v921
      %v2191 = vpop.f32.mrf.mxu0
      %v2192 = vadd.f32 0.0, %v2191
      %v2193 = vpop.f32.mrf.mxu0
      %v2194 = vadd.f32 0.0, %v2193
      %2195 = vmatmul.bf16.gmra.mxu0 %v922
      %v2196 = vpop.f32.mrf.mxu0
      %v2197 = vadd.f32 0.0, %v2196
      %v2198 = vpop.f32.mrf.mxu0
      %v2199 = vadd.f32 0.0, %v2198
      %2200 = vmatmul.bf16.gmra.mxu0 %v923
      %v2201 = vpop.f32.mrf.mxu0
      %v2202 = vadd.f32 0.0, %v2201
      %v2203 = vpop.f32.mrf.mxu0
      %v2204 = vadd.f32 0.0, %v2203
      %2205 = vmatmul.bf16.gmra.mxu0 %v924
      %v2206 = vpop.f32.mrf.mxu0
      %v2207 = vadd.f32 0.0, %v2206
      %v2208 = vpop.f32.mrf.mxu0
      %v2209 = vadd.f32 0.0, %v2208
      %2210 = vmatmul.bf16.gmra.mxu0 %v925
      %v2211 = vpop.f32.mrf.mxu0
      %v2212 = vadd.f32 0.0, %v2211
      %v2213 = vpop.f32.mrf.mxu0
      %v2214 = vadd.f32 0.0, %v2213
      %2215 = vmatmul.bf16.gmra.mxu0 %v926
      %v2216 = vpop.f32.mrf.mxu0
      %v2217 = vadd.f32 0.0, %v2216
      %v2218 = vpop.f32.mrf.mxu0
      %v2219 = vadd.f32 0.0, %v2218
      %2220 = vdwg.mxu0
      %2221 = vmatpush.bf16.msra.mxu0 %v2099
      %2222 = vmatpush.bf16.msra.mxu0 %v2098
      %2223 = vmatpush.bf16.msra.mxu0 %v2097
      %2224 = vmatpush.bf16.msra.mxu0 %v2096
      %2225 = vmatpush.bf16.msra.mxu0 %v2095
      %2226 = vmatpush.bf16.msra.mxu0 %v2094
      %2227 = vmatpush.bf16.msra.mxu0 %v2093
      %2228 = vmatpush.bf16.msra.mxu0 %v2092
      %2229 = vmatmul.bf16.gmra.mxu0 %v746
      %v2230 = vpop.f32.mrf.mxu0
      %v2231 = vadd.f32 %v2142, %v2230
      %v2232 = vpop.f32.mrf.mxu0
      %v2233 = vadd.f32 %v2144, %v2232
      %2234 = vmatmul.bf16.gmra.mxu0 %v747
      %v2235 = vpop.f32.mrf.mxu0
      %v2236 = vadd.f32 %v2147, %v2235
      %v2237 = vpop.f32.mrf.mxu0
      %v2238 = vadd.f32 %v2149, %v2237
      %2239 = vmatmul.bf16.gmra.mxu0 %v748
      %v2240 = vpop.f32.mrf.mxu0
      %v2241 = vadd.f32 %v2152, %v2240
      %v2242 = vpop.f32.mrf.mxu0
      %v2243 = vadd.f32 %v2154, %v2242
      %2244 = vmatmul.bf16.gmra.mxu0 %v749
      %v2245 = vpop.f32.mrf.mxu0
      %v2246 = vadd.f32 %v2157, %v2245
      %v2247 = vpop.f32.mrf.mxu0
      %v2248 = vadd.f32 %v2159, %v2247
      %2249 = vmatmul.bf16.gmra.mxu0 %v750
      %v2250 = vpop.f32.mrf.mxu0
      %v2251 = vadd.f32 %v2162, %v2250
      %v2252 = vpop.f32.mrf.mxu0
      %v2253 = vadd.f32 %v2164, %v2252
      %2254 = vmatmul.bf16.gmra.mxu0 %v751
      %v2255 = vpop.f32.mrf.mxu0
      %v2256 = vadd.f32 %v2167, %v2255
      %v2257 = vpop.f32.mrf.mxu0
      %v2258 = vadd.f32 %v2169, %v2257
      %2259 = vmatmul.bf16.gmra.mxu0 %v752
      %v2260 = vpop.f32.mrf.mxu0
      %v2261 = vadd.f32 %v2172, %v2260
      %v2262 = vpop.f32.mrf.mxu0
      %v2263 = vadd.f32 %v2174, %v2262
      %2264 = vmatmul.bf16.gmra.mxu0 %v753
      %v2265 = vpop.f32.mrf.mxu0
      %v2266 = vadd.f32 %v2177, %v2265
      %v2267 = vpop.f32.mrf.mxu0
      %v2268 = vadd.f32 %v2179, %v2267
      %2269 = vmatmul.bf16.gmra.mxu0 %v754
      %v2270 = vpop.f32.mrf.mxu0
      %v2271 = vadd.f32 %v2182, %v2270
      %v2272 = vpop.f32.mrf.mxu0
      %v2273 = vadd.f32 %v2184, %v2272
      %2274 = vmatmul.bf16.gmra.mxu0 %v755
      %v2275 = vpop.f32.mrf.mxu0
      %v2276 = vadd.f32 %v2187, %v2275
      %v2277 = vpop.f32.mrf.mxu0
      %v2278 = vadd.f32 %v2189, %v2277
      %2279 = vmatmul.bf16.gmra.mxu0 %v756
      %v2280 = vpop.f32.mrf.mxu0
      %v2281 = vadd.f32 %v2192, %v2280
      %v2282 = vpop.f32.mrf.mxu0
      %v2283 = vadd.f32 %v2194, %v2282
      %2284 = vmatmul.bf16.gmra.mxu0 %v757
      %v2285 = vpop.f32.mrf.mxu0
      %v2286 = vadd.f32 %v2197, %v2285
      %v2287 = vpop.f32.mrf.mxu0
      %v2288 = vadd.f32 %v2199, %v2287
      %2289 = vmatmul.bf16.gmra.mxu0 %v758
      %v2290 = vpop.f32.mrf.mxu0
      %v2291 = vadd.f32 %v2202, %v2290
      %v2292 = vpop.f32.mrf.mxu0
      %v2293 = vadd.f32 %v2204, %v2292
      %2294 = vmatmul.bf16.gmra.mxu0 %v759
      %v2295 = vpop.f32.mrf.mxu0
      %v2296 = vadd.f32 %v2207, %v2295
      %v2297 = vpop.f32.mrf.mxu0
      %v2298 = vadd.f32 %v2209, %v2297
      %2299 = vmatmul.bf16.gmra.mxu0 %v760
      %v2300 = vpop.f32.mrf.mxu0
      %v2301 = vadd.f32 %v2212, %v2300
      %v2302 = vpop.f32.mrf.mxu0
      %v2303 = vadd.f32 %v2214, %v2302
      %2304 = vmatmul.bf16.gmra.mxu0 %v761
      %v2305 = vpop.f32.mrf.mxu0
      %v2306 = vadd.f32 %v2217, %v2305
      %v2307 = vpop.f32.mrf.mxu0
      %v2308 = vadd.f32 %v2219, %v2307
      %2309 = vdwg.mxu0
      %2310 = vmatpush.bf16.msra.mxu0 %v2107
      %2311 = vmatpush.bf16.msra.mxu0 %v2106
      %2312 = vmatpush.bf16.msra.mxu0 %v2105
      %2313 = vmatpush.bf16.msra.mxu0 %v2104
      %2314 = vmatpush.bf16.msra.mxu0 %v2103
      %2315 = vmatpush.bf16.msra.mxu0 %v2102
      %2316 = vmatpush.bf16.msra.mxu0 %v2101
      %2317 = vmatpush.bf16.msra.mxu0 %v2100
      %2318 = vmatmul.bf16.gmra.mxu0 %v986
      %v2319 = vpop.f32.mrf.mxu0
      %v2320 = vadd.f32 %v2231, %v2319
      %v2321 = vpop.f32.mrf.mxu0
      %v2322 = vadd.f32 %v2233, %v2321
      %2323 = vmatmul.bf16.gmra.mxu0 %v987
      %v2324 = vpop.f32.mrf.mxu0
      %v2325 = vadd.f32 %v2236, %v2324
      %v2326 = vpop.f32.mrf.mxu0
      %v2327 = vadd.f32 %v2238, %v2326
      %2328 = vmatmul.bf16.gmra.mxu0 %v988
      %v2329 = vpop.f32.mrf.mxu0
      %v2330 = vadd.f32 %v2241, %v2329
      %v2331 = vpop.f32.mrf.mxu0
      %v2332 = vadd.f32 %v2243, %v2331
      %2333 = vmatmul.bf16.gmra.mxu0 %v989
      %v2334 = vpop.f32.mrf.mxu0
      %v2335 = vadd.f32 %v2246, %v2334
      %v2336 = vpop.f32.mrf.mxu0
      %v2337 = vadd.f32 %v2248, %v2336
      %2338 = vmatmul.bf16.gmra.mxu0 %v990
      %v2339 = vpop.f32.mrf.mxu0
      %v2340 = vadd.f32 %v2251, %v2339
      %v2341 = vpop.f32.mrf.mxu0
      %v2342 = vadd.f32 %v2253, %v2341
      %2343 = vmatmul.bf16.gmra.mxu0 %v991
      %v2344 = vpop.f32.mrf.mxu0
      %v2345 = vadd.f32 %v2256, %v2344
      %v2346 = vpop.f32.mrf.mxu0
      %v2347 = vadd.f32 %v2258, %v2346
      %2348 = vmatmul.bf16.gmra.mxu0 %v992
      %v2349 = vpop.f32.mrf.mxu0
      %v2350 = vadd.f32 %v2261, %v2349
      %v2351 = vpop.f32.mrf.mxu0
      %v2352 = vadd.f32 %v2263, %v2351
      %2353 = vmatmul.bf16.gmra.mxu0 %v993
      %v2354 = vpop.f32.mrf.mxu0
      %v2355 = vadd.f32 %v2266, %v2354
      %v2356 = vpop.f32.mrf.mxu0
      %v2357 = vadd.f32 %v2268, %v2356
      %2358 = vmatmul.bf16.gmra.mxu0 %v994
      %v2359 = vpop.f32.mrf.mxu0
      %v2360 = vadd.f32 %v2271, %v2359
      %v2361 = vpop.f32.mrf.mxu0
      %v2362 = vadd.f32 %v2273, %v2361
      %2363 = vmatmul.bf16.gmra.mxu0 %v995
      %v2364 = vpop.f32.mrf.mxu0
      %v2365 = vadd.f32 %v2276, %v2364
      %v2366 = vpop.f32.mrf.mxu0
      %v2367 = vadd.f32 %v2278, %v2366
      %2368 = vmatmul.bf16.gmra.mxu0 %v996
      %v2369 = vpop.f32.mrf.mxu0
      %v2370 = vadd.f32 %v2281, %v2369
      %v2371 = vpop.f32.mrf.mxu0
      %v2372 = vadd.f32 %v2283, %v2371
      %2373 = vmatmul.bf16.gmra.mxu0 %v997
      %v2374 = vpop.f32.mrf.mxu0
      %v2375 = vadd.f32 %v2286, %v2374
      %v2376 = vpop.f32.mrf.mxu0
      %v2377 = vadd.f32 %v2288, %v2376
      %2378 = vmatmul.bf16.gmra.mxu0 %v998
      %v2379 = vpop.f32.mrf.mxu0
      %v2380 = vadd.f32 %v2291, %v2379
      %v2381 = vpop.f32.mrf.mxu0
      %v2382 = vadd.f32 %v2293, %v2381
      %2383 = vmatmul.bf16.gmra.mxu0 %v999
      %v2384 = vpop.f32.mrf.mxu0
      %v2385 = vadd.f32 %v2296, %v2384
      %v2386 = vpop.f32.mrf.mxu0
      %v2387 = vadd.f32 %v2298, %v2386
      %2388 = vmatmul.bf16.gmra.mxu0 %v1000
      %v2389 = vpop.f32.mrf.mxu0
      %v2390 = vadd.f32 %v2301, %v2389
      %v2391 = vpop.f32.mrf.mxu0
      %v2392 = vadd.f32 %v2303, %v2391
      %2393 = vmatmul.bf16.gmra.mxu0 %v1001
      %v2394 = vpop.f32.mrf.mxu0
      %v2395 = vadd.f32 %v2306, %v2394
      %v2396 = vpop.f32.mrf.mxu0
      %v2397 = vadd.f32 %v2308, %v2396
      %2398 = vdwg.mxu0
      %v2399 = vadd.f32 %v1860, %v2320
      %v2400 = vadd.f32 %v1862, %v2322
      %v2401 = vadd.f32 %v1865, %v2325
      %v2402 = vadd.f32 %v1867, %v2327
      %v2403 = vadd.f32 %v1870, %v2330
      %v2404 = vadd.f32 %v1872, %v2332
      %v2405 = vadd.f32 %v1875, %v2335
      %v2406 = vadd.f32 %v1877, %v2337
      %v2407 = vadd.f32 %v1880, %v2340
      %v2408 = vadd.f32 %v1882, %v2342
      %v2409 = vadd.f32 %v1885, %v2345
      %v2410 = vadd.f32 %v1887, %v2347
      %v2411 = vadd.f32 %v1890, %v2350
      %v2412 = vadd.f32 %v1892, %v2352
      %v2413 = vadd.f32 %v1895, %v2355
      %v2414 = vadd.f32 %v1897, %v2357
      %v2415 = vadd.f32 %v1900, %v2360
      %v2416 = vadd.f32 %v1902, %v2362
      %v2417 = vadd.f32 %v1905, %v2365
      %v2418 = vadd.f32 %v1907, %v2367
      %v2419 = vadd.f32 %v1910, %v2370
      %v2420 = vadd.f32 %v1912, %v2372
      %v2421 = vadd.f32 %v1915, %v2375
      %v2422 = vadd.f32 %v1917, %v2377
      %v2423 = vadd.f32 %v1920, %v2380
      %v2424 = vadd.f32 %v1922, %v2382
      %v2425 = vadd.f32 %v1925, %v2385
      %v2426 = vadd.f32 %v1927, %v2387
      %v2427 = vadd.f32 %v1930, %v2390
      %v2428 = vadd.f32 %v1932, %v2392
      %v2429 = vadd.f32 %v1935, %v2395
      %v2430 = vadd.f32 %v1937, %v2397
      %v2431 = vpack.c.bf16 %v2399, %v2399
      %v2432 = vpack.c.bf16 %v2400, %v2400
      %v2433 = vpack.c.bf16 %v2401, %v2401
      %v2434 = vpack.c.bf16 %v2402, %v2402
      %v2435 = vpack.c.bf16 %v2403, %v2403
      %v2436 = vpack.c.bf16 %v2404, %v2404
      %v2437 = vpack.c.bf16 %v2405, %v2405
      %v2438 = vpack.c.bf16 %v2406, %v2406
      %v2439 = vpack.c.bf16 %v2407, %v2407
      %v2440 = vpack.c.bf16 %v2408, %v2408
      %v2441 = vpack.c.bf16 %v2409, %v2409
      %v2442 = vpack.c.bf16 %v2410, %v2410
      %v2443 = vpack.c.bf16 %v2411, %v2411
      %v2444 = vpack.c.bf16 %v2412, %v2412
      %v2445 = vpack.c.bf16 %v2413, %v2413
      %v2446 = vpack.c.bf16 %v2414, %v2414
      %v2447 = vpack.c.bf16 %v2415, %v2415
      %v2448 = vpack.c.bf16 %v2416, %v2416
      %v2449 = vpack.c.bf16 %v2417, %v2417
      %v2450 = vpack.c.bf16 %v2418, %v2418
      %v2451 = vpack.c.bf16 %v2419, %v2419
      %v2452 = vpack.c.bf16 %v2420, %v2420
      %v2453 = vpack.c.bf16 %v2421, %v2421
      %v2454 = vpack.c.bf16 %v2422, %v2422
      %v2455 = vpack.c.bf16 %v2423, %v2423
      %v2456 = vpack.c.bf16 %v2424, %v2424
      %v2457 = vpack.c.bf16 %v2425, %v2425
      %v2458 = vpack.c.bf16 %v2426, %v2426
      %v2459 = vpack.c.bf16 %v2427, %v2427
      %v2460 = vpack.c.bf16 %v2428, %v2428
      %v2461 = vpack.c.bf16 %v2429, %v2429
      %v2462 = vpack.c.bf16 %v2430, %v2430
      %2463 = vst [vmem:[%s430] sm:$0xf] %v2431
      %2464 = vst [vmem:[%s430 + $0x4] sm:$0xf] %v2432
      %2465 = vst [vmem:[%s430 + $0x8] sm:$0xf] %v2433
      %2466 = vst [vmem:[%s430 + $0xc] sm:$0xf] %v2434
      %2467 = vst [vmem:[%s430 + $0x10] sm:$0xf] %v2435
      %2468 = vst [vmem:[%s430 + $0x14] sm:$0xf] %v2436
      %2469 = vst [vmem:[%s430 + $0x18] sm:$0xf] %v2437
      %2470 = vst [vmem:[%s430 + $0x1c] sm:$0xf] %v2438
      %2471 = vst [vmem:[%s430 + $0x20] sm:$0xf] %v2439
      %2472 = vst [vmem:[%s430 + $0x24] sm:$0xf] %v2440
      %2473 = vst [vmem:[%s430 + $0x28] sm:$0xf] %v2441
      %2474 = vst [vmem:[%s430 + $0x2c] sm:$0xf] %v2442
      %2475 = vst [vmem:[%s430 + $0x30] sm:$0xf] %v2443
      %2476 = vst [vmem:[%s430 + $0x34] sm:$0xf] %v2444
      %2477 = vst [vmem:[%s430 + $0x38] sm:$0xf] %v2445
      %2478 = vst [vmem:[%s430 + $0x3c] sm:$0xf] %v2446
      %2479 = vst [vmem:[%s430 + $0x40] sm:$0xf] %v2447
      %2480 = vst [vmem:[%s430 + $0x44] sm:$0xf] %v2448
      %2481 = vst [vmem:[%s430 + $0x48] sm:$0xf] %v2449
      %2482 = vst [vmem:[%s430 + $0x4c] sm:$0xf] %v2450
      %2483 = vst [vmem:[%s430 + $0x50] sm:$0xf] %v2451
      %2484 = vst [vmem:[%s430 + $0x54] sm:$0xf] %v2452
      %2485 = vst [vmem:[%s430 + $0x58] sm:$0xf] %v2453
      %2486 = vst [vmem:[%s430 + $0x5c] sm:$0xf] %v2454
      %2487 = vst [vmem:[%s430 + $0x60] sm:$0xf] %v2455
      %2488 = vst [vmem:[%s430 + $0x64] sm:$0xf] %v2456
      %2489 = vst [vmem:[%s430 + $0x68] sm:$0xf] %v2457
      %2490 = vst [vmem:[%s430 + $0x6c] sm:$0xf] %v2458
      %2491 = vst [vmem:[%s430 + $0x70] sm:$0xf] %v2459
      %2492 = vst [vmem:[%s430 + $0x74] sm:$0xf] %v2460
      %2493 = vst [vmem:[%s430 + $0x78] sm:$0xf] %v2461
      %2494 = vst [vmem:[%s430 + $0x7c] sm:$0xf] %v2462
      %v2495 = vadd.f32 %v2399, %v2400
      %v2496 = vadd.f32 %v2495, %v2401
      %v2497 = vadd.f32 %v2496, %v2402
      %v2498 = vadd.f32 %v2497, %v2403
      %v2499 = vadd.f32 %v2498, %v2404
      %v2500 = vadd.f32 %v2499, %v2405
      %v2501 = vadd.f32 %v2500, %v2406
      %v2502 = vadd.f32 %v2501, %v2407
      %v2503 = vadd.f32 %v2502, %v2408
      %v2504 = vadd.f32 %v2503, %v2409
      %v2505 = vadd.f32 %v2504, %v2410
      %v2506 = vadd.f32 %v2505, %v2411
      %v2507 = vadd.f32 %v2506, %v2412
      %v2508 = vadd.f32 %v2507, %v2413
      %v2509 = vadd.f32 %v2508, %v2414
      %v2510 = vadd.f32 %v2509, %v2415
      %v2511 = vadd.f32 %v2510, %v2416
      %v2512 = vadd.f32 %v2511, %v2417
      %v2513 = vadd.f32 %v2512, %v2418
      %v2514 = vadd.f32 %v2513, %v2419
      %v2515 = vadd.f32 %v2514, %v2420
      %v2516 = vadd.f32 %v2515, %v2421
      %v2517 = vadd.f32 %v2516, %v2422
      %v2518 = vadd.f32 %v2517, %v2423
      %v2519 = vadd.f32 %v2518, %v2424
      %v2520 = vadd.f32 %v2519, %v2425
      %v2521 = vadd.f32 %v2520, %v2426
      %v2522 = vadd.f32 %v2521, %v2427
      %v2523 = vadd.f32 %v2522, %v2428
      %v2524 = vadd.f32 %v2523, %v2429
      %v2525 = vadd.f32 %v2524, %v2430
      %v2526 = vrot.slane %v2525, 4
      %v2527 = vadd.f32 %v2525, %v2526
      %v2528 = vrot.slane %v2527, 2
      %v2529 = vadd.f32 %v2527, %v2528
      %v2530 = vrot.slane %v2529, 1
      %v2531 = vadd.f32 %v2529, %v2530
      %v2532 = vmul.f32 %v2399, %v2399
      %v2533 = vmul.f32 %v2400, %v2400
      %v2534 = vmul.f32 %v2401, %v2401
      %v2535 = vmul.f32 %v2402, %v2402
      %v2536 = vmul.f32 %v2403, %v2403
      %v2537 = vmul.f32 %v2404, %v2404
      %v2538 = vmul.f32 %v2405, %v2405
      %v2539 = vmul.f32 %v2406, %v2406
      %v2540 = vmul.f32 %v2407, %v2407
      %v2541 = vmul.f32 %v2408, %v2408
      %v2542 = vmul.f32 %v2409, %v2409
      %v2543 = vmul.f32 %v2410, %v2410
      %v2544 = vmul.f32 %v2411, %v2411
      %v2545 = vmul.f32 %v2412, %v2412
      %v2546 = vmul.f32 %v2413, %v2413
      %v2547 = vmul.f32 %v2414, %v2414
      %v2548 = vmul.f32 %v2415, %v2415
      %v2549 = vmul.f32 %v2416, %v2416
      %v2550 = vmul.f32 %v2417, %v2417
      %v2551 = vmul.f32 %v2418, %v2418
      %v2552 = vmul.f32 %v2419, %v2419
      %v2553 = vmul.f32 %v2420, %v2420
      %v2554 = vmul.f32 %v2421, %v2421
      %v2555 = vmul.f32 %v2422, %v2422
      %v2556 = vmul.f32 %v2423, %v2423
      %v2557 = vmul.f32 %v2424, %v2424
      %v2558 = vmul.f32 %v2425, %v2425
      %v2559 = vmul.f32 %v2426, %v2426
      %v2560 = vmul.f32 %v2427, %v2427
      %v2561 = vmul.f32 %v2428, %v2428
      %v2562 = vmul.f32 %v2429, %v2429
      %v2563 = vmul.f32 %v2430, %v2430
      %v2564 = vadd.f32 %v2532, %v2533
      %v2565 = vadd.f32 %v2564, %v2534
      %v2566 = vadd.f32 %v2565, %v2535
      %v2567 = vadd.f32 %v2566, %v2536
      %v2568 = vadd.f32 %v2567, %v2537
      %v2569 = vadd.f32 %v2568, %v2538
      %v2570 = vadd.f32 %v2569, %v2539
      %v2571 = vadd.f32 %v2570, %v2540
      %v2572 = vadd.f32 %v2571, %v2541
      %v2573 = vadd.f32 %v2572, %v2542
      %v2574 = vadd.f32 %v2573, %v2543
      %v2575 = vadd.f32 %v2574, %v2544
      %v2576 = vadd.f32 %v2575, %v2545
      %v2577 = vadd.f32 %v2576, %v2546
      %v2578 = vadd.f32 %v2577, %v2547
      %v2579 = vadd.f32 %v2578, %v2548
      %v2580 = vadd.f32 %v2579, %v2549
      %v2581 = vadd.f32 %v2580, %v2550
      %v2582 = vadd.f32 %v2581, %v2551
      %v2583 = vadd.f32 %v2582, %v2552
      %v2584 = vadd.f32 %v2583, %v2553
      %v2585 = vadd.f32 %v2584, %v2554
      %v2586 = vadd.f32 %v2585, %v2555
      %v2587 = vadd.f32 %v2586, %v2556
      %v2588 = vadd.f32 %v2587, %v2557
      %v2589 = vadd.f32 %v2588, %v2558
      %v2590 = vadd.f32 %v2589, %v2559
      %v2591 = vadd.f32 %v2590, %v2560
      %v2592 = vadd.f32 %v2591, %v2561
      %v2593 = vadd.f32 %v2592, %v2562
      %v2594 = vadd.f32 %v2593, %v2563
      %v2595 = vrot.slane %v2594, 4
      %v2596 = vadd.f32 %v2594, %v2595
      %v2597 = vrot.slane %v2596, 2
      %v2598 = vadd.f32 %v2596, %v2597
      %v2599 = vrot.slane %v2598, 1
      %v2600 = vadd.f32 %v2598, %v2599
      %vm2601 = vcmask 1040384
      %v2602 = vsel %vm2601, %v2531, %v2600
      %2603 = vst [vmem:[%s438] sm:$0x3] %v2602
      %s2604 = smul.u32 16, %s23
      %p2605 = scmp.lt.s32.totalorder %s22, 1
      %s2606 = scalar_select %p2605, %s22, 1
      %p2607 = scmp.lt.s32.totalorder %s2604, 15
      %s2608 = scalar_select %p2607, %s2604, 15
      %s2609 = smul.addr %s2608, 2
      %s2610 = smul.addr %s2606, 32
      %s2611 = sadd.s32 %s2609, %s2610
      %s2612 = smul.addr %s2611, 4
      %s2613 = scalar_lea.vmem %s5, %s2612
      %p2614 = scmp.lt.s32.totalorder %s22, 1
      %s2615 = scalar_select %p2614, %s22, 1
      %p2616 = scmp.lt.s32.totalorder %s23, 0
      %s2617 = scalar_select %p2616, %s23, 0
      %s2618 = sadd.s32 %s2617, %s2615
      %s2619 = smul.addr %s2618, 2
      %s2620 = scalar_lea.vmem %s6, %s2619
      // Predicated region
      $region41: #{residual_block.4} parent=39 // pred_check
        %p2621 = pneg %p192
      $region42: #{residual_block.4} parent=39 // pred_check_branch
        %2623 = sbr.rel (%p2621) target = $region44
      $region43: #{residual_block.4} parent=39 // pred_region
        %s2624 = smul.u32 16, %s23
      $region44: #{residual_block.4} parent=39 // pred_fallthru
        _
      // Predicated region
      $region45: #{residual_block.4} parent=39 // pred_check
        %p2625 = pneg %p220
      $region46: #{residual_block.4} parent=39 // pred_check_branch
        %2627 = sbr.rel (%p2625) target = $region48
      $region47: #{residual_block.4} parent=39 // pred_region
        _
      $region48: #{residual_block.4} parent=39 // pred_fallthru
        _
    $region40: #{residual_block.4} parent=5 // pred_fallthru
      _
    %p2628 = scmp.le.s32.totalorder 2, %s13
    // Predicated region
    $region49: #{residual_block.4} parent=5 // pred_check
      %p2629 = pneg %p2628
    $region50: #{residual_block.4} parent=5 // pred_check_branch
      %2631 = sbr.rel (%p2629) target = $region52
    $region51: #{residual_block.4} parent=5 // pred_region
      %s2632 = ssub.s32 %s13, 2
      // Predicated region
      $region53: #{residual_block.4} parent=51 // pred_check
        %p2633 = pneg %p198
      $region54: #{residual_block.4} parent=51 // pred_check_branch
        %2635 = sbr.rel (%p2633) target = $region56
      $region55: #{residual_block.4} parent=51 // pred_region
        %s2636 = smul.u32 16, %s25
        %p2637 = scmp.lt.s32.totalorder %s24, 1
        %s2638 = scalar_select %p2637, %s24, 1
        %p2639 = scmp.lt.s32.totalorder %s2636, 15
        %s2640 = scalar_select %p2639, %s2636, 15
        %s2641 = smul.addr %s2640, 2
        %s2642 = smul.addr %s2638, 32
        %s2643 = sadd.s32 %s2641, %s2642
        %s2644 = smul.addr %s2643, 4
        %s2645 = scalar_lea.vmem %s5, %s2644
      $region56: #{residual_block.4} parent=51 // pred_fallthru
        _
      // Predicated region
      $region57: #{residual_block.4} parent=51 // pred_check
        %p2646 = pneg %p226
      $region58: #{residual_block.4} parent=51 // pred_check_branch
        %2648 = sbr.rel (%p2646) target = $region60
      $region59: #{residual_block.4} parent=51 // pred_region
        %p2649 = scmp.lt.s32.totalorder %s24, 1
        %s2650 = scalar_select %p2649, %s24, 1
        %p2651 = scmp.lt.s32.totalorder %s25, 0
        %s2652 = scalar_select %p2651, %s25, 0
        %s2653 = sadd.s32 %s2652, %s2650
        %s2654 = smul.addr %s2653, 2
        %s2655 = scalar_lea.vmem %s6, %s2654
      $region60: #{residual_block.4} parent=51 // pred_fallthru
        _
    $region52: #{residual_block.4} parent=5 // pred_fallthru
      _
  $region6: #{residual_block.4} parent=0 // loop_footer
    %s17 = sadd.s32 1, %s13
  $region7: #{residual_block.4} parent=0 // loop_footer_branch
    %12 = sbr.rel target = $region3
  $region8: #{residual_block.4} parent=0 // loop_exit
    _

// kernel: residual_block.3
$region0: #{residual_block.3}
  #allocation0 [shape = 'u32[]', space=smem, size = 0x4, offset = 0x4, fixed_abs, tag = 'smem constant byte address 0x4 - core index']
  #allocation1 [shape = 'u32[72,128]{1,0:T(1,128)}', space=vmem, size = 0x9000, scoped, tag = 'internal scratch']
  %s0 = inlined_call_operand.vmem [shape: bf16[2,16,16,128], index: 0, kind: input, shape index: {}, may-alias: {0,1,2}]
  %s1 = inlined_call_operand.vmem [shape: bf16[2,16,16,128], index: 1, kind: input, shape index: {}, may-alias: {0,1,2}]
  %s2 = inlined_call_operand.vmem [shape: bf16[2,16,16,128], index: 2, kind: input, shape index: {}, may-alias: {0,1,2}]
  %s3 = inlined_call_operand.vmem [shape: bf16[3,384,128], index: 3, kind: input, shape index: {}]
  %s4 = inlined_call_operand.vmem [shape: bf16[128,128], index: 4, kind: input, shape index: {}]
  %s5 = inlined_call_operand.vmem [shape: bf16[2,16,16,128], index: 5, kind: output, shape index: {0}]
  %s6 = inlined_call_operand.vmem [shape: bf16[2,16,16,128], index: 6, kind: output, shape index: {1}]
  %s7 = inlined_call_operand.vmem [shape: f32[2,1,4,128], index: 7, kind: output, shape index: {2}]
  %8 = xla_tuple %s5, %s6, %s7
  %s9 = sld [smem:[#allocation0]]
  $region69: #{residual_block.3} parent=0
    _
  %s11 = ssub.s32 1, %s9
  %s12 = scalar_select 0, %s11, %s9
  loop: start=0, step=1, limit=4
  $region2: #{residual_block.3} parent=0 // loop_pre_header
    _
  $region3: #{residual_block.3} parent=0 // loop_header
    %s14 = sphi 0, %s18
    %p15 = scmp.ge.s32.totalorder %s14, 4
    %s21 = sphi 0, %s33
    %s22 = sphi 0, %s29
    %s23 = sphi 0, %s21
    %s24 = sphi 0, %s22
    %s25 = sphi 0, %s23
    %s26 = sphi 0, %s24
    %s46 = sphi 0, %s48
    %s49 = sphi 0, %s46
    %s50 = sphi 0, %s49
    %s66 = sphi 0, %s50
    %s74 = sphi 0, %s76
    %s77 = sphi 0, %s74
    %s78 = sphi 0, %s77
    %s94 = sphi 0, %s78
    %s110 = sphi 0, %s112
    %s113 = sphi 0, %s110
    %s114 = sphi 0, %s113
    %s130 = sphi 0, %s114
    %s134 = sphi 0, %s134
    %s136 = sphi 0, %s134
    %s137 = sphi 0, %s136
    %s151 = sphi 0, %s137
    %s155 = sphi 0, %s155
    %s157 = sphi 0, %s155
    %s158 = sphi 0, %s157
    %s172 = sphi 0, %s158
    %s180 = sphi 0, %s182
    %s183 = sphi 0, %s180
    %s184 = sphi 0, %s183
    %s200 = sphi 0, %s184
    %s208 = sphi 0, %s210
    %s211 = sphi 0, %s208
    %s212 = sphi 0, %s211
    %s228 = sphi 0, %s212
    %s236 = sphi 0, %s238
    %s239 = sphi 0, %s236
    %s240 = sphi 0, %s239
    %s256 = sphi 0, %s240
  $region4: #{residual_block.3} parent=0 // loop_header_branch
    %17 = sbr.rel (%p15) target = $region8
  $region5: #{residual_block.3} parent=0 // loop_body
    %s19 = ssub.s32 %s14, 1
    %s20 = ssub.s32 %s14, 2
    %s27 = sadd.s32 1, %s22
    %p28 = scmp.ge.s32.totalorder %s27, 1
    %s29 = scalar_select %p28, 0, %s27
    %s30 = sadd.s32 1, %s21
    %s31 = scalar_select %p28, %s30, %s21
    %p32 = scmp.ge.s32.totalorder %s31, 2
    %s33 = scalar_select %p32, 0, %s31
    %s34 = smul.u32 %s22, 16
    %s35 = ssub.s32 %s34, 1
    %p36 = scmp.gt.s32.totalorder %s35, 0
    %s37 = scalar_select %p36, %s35, 0
    %s38 = smul.u32 %s29, 16
    %s39 = ssub.s32 %s38, 1
    %p40 = scmp.gt.s32.totalorder %s39, 0
    %s41 = scalar_select %p40, %s39, 0
    %s42 = ssub.s32 %s21, %s33
    %s43 = ssub.s32 %s37, %s41
    %s44 = sor.u32 %s42, %s43
    %p45 = scmp.eq.s32.totalorder %s44, 0
    %s47 = sadd.s32 %s46, 1
    %s48 = scalar_select %p45, %s46, %s47
    %p51 = pneg %p45
    %p52 = scmp.eq.s32.totalorder %s14, 1
    %p53 = por %p51, %p52
    %p54 = scmp.ne.s32.totalorder %s46, %s49
    %p55 = scmp.eq.s32.totalorder %s14, 0
    %p56 = por %p54, %p55
    %p57 = scmp.ne.s32.totalorder %s46, %s49
    %p58 = scmp.eq.s32.totalorder %s19, 1
    %p59 = por %p57, %p58
    %p60 = scmp.ne.s32.totalorder %s49, %s50
    %p61 = scmp.eq.s32.totalorder %s19, 0
    %p62 = por %p60, %p61
    %p63 = scmp.ne.s32.totalorder %s49, %s50
    %p64 = scmp.eq.s32.totalorder %s20, 1
    %p65 = por %p63, %p64
    %p67 = scmp.ne.s32.totalorder %s50, %s66
    %p68 = scmp.eq.s32.totalorder %s20, 0
    %p69 = por %p67, %p68
    %s70 = ssub.s32 %s21, %s33
    %s71 = ssub.s32 %s22, %s29
    %s72 = sor.u32 %s70, %s71
    %p73 = scmp.eq.s32.totalorder %s72, 0
    %s75 = sadd.s32 %s74, 1
    %s76 = scalar_select %p73, %s74, %s75
    %p79 = pneg %p73
    %p80 = scmp.eq.s32.totalorder %s14, 1
    %p81 = por %p79, %p80
    %p82 = scmp.ne.s32.totalorder %s74, %s77
    %p83 = scmp.eq.s32.totalorder %s14, 0
    %p84 = por %p82, %p83
    %p85 = scmp.ne.s32.totalorder %s74, %s77
    %p86 = scmp.eq.s32.totalorder %s19, 1
    %p87 = por %p85, %p86
    %p88 = scmp.ne.s32.totalorder %s77, %s78
    %p89 = scmp.eq.s32.totalorder %s19, 0
    %p90 = por %p88, %p89
    %p91 = scmp.ne.s32.totalorder %s77, %s78
    %p92 = scmp.eq.s32.totalorder %s20, 1
    %p93 = por %p91, %p92
    %p95 = scmp.ne.s32.totalorder %s78, %s94
    %p96 = scmp.eq.s32.totalorder %s20, 0
    %p97 = por %p95, %p96
    %s98 = sadd.s32 %s22, 1
    %s99 = smul.u32 %s98, 16
    %p100 = scmp.lt.s32.totalorder %s99, 15
    %s101 = scalar_select %p100, %s99, 15
    %s102 = sadd.s32 %s29, 1
    %s103 = smul.u32 %s102, 16
    %p104 = scmp.lt.s32.totalorder %s103, 15
    %s105 = scalar_select %p104, %s103, 15
    %s106 = ssub.s32 %s21, %s33
    %s107 = ssub.s32 %s101, %s105
    %s108 = sor.u32 %s106, %s107
    %p109 = scmp.eq.s32.totalorder %s108, 0
    %s111 = sadd.s32 %s110, 1
    %s112 = scalar_select %p109, %s110, %s111
    %p115 = pneg %p109
    %p116 = scmp.eq.s32.totalorder %s14, 1
    %p117 = por %p115, %p116
    %p118 = scmp.ne.s32.totalorder %s110, %s113
    %p119 = scmp.eq.s32.totalorder %s14, 0
    %p120 = por %p118, %p119
    %p121 = scmp.ne.s32.totalorder %s110, %s113
    %p122 = scmp.eq.s32.totalorder %s19, 1
    %p123 = por %p121, %p122
    %p124 = scmp.ne.s32.totalorder %s113, %s114
    %p125 = scmp.eq.s32.totalorder %s19, 0
    %p126 = por %p124, %p125
    %p127 = scmp.ne.s32.totalorder %s113, %s114
    %p128 = scmp.eq.s32.totalorder %s20, 1
    %p129 = por %p127, %p128
    %p131 = scmp.ne.s32.totalorder %s114, %s130
    %p132 = scmp.eq.s32.totalorder %s20, 0
    %p133 = por %p131, %p132
    %s135 = sadd.s32 %s134, 1
    %p138 = scmp.eq.s32.totalorder %s14, 1
    %p139 = scmp.ne.s32.totalorder %s134, %s136
    %p140 = scmp.eq.s32.totalorder %s14, 0
    %p141 = por %p139, %p140
    %p142 = scmp.ne.s32.totalorder %s134, %s136
    %p143 = scmp.eq.s32.totalorder %s19, 1
    %p144 = por %p142, %p143
    %p145 = scmp.ne.s32.totalorder %s136, %s137
    %p146 = scmp.eq.s32.totalorder %s19, 0
    %p147 = por %p145, %p146
    %p148 = scmp.ne.s32.totalorder %s136, %s137
    %p149 = scmp.eq.s32.totalorder %s20, 1
    %p150 = por %p148, %p149
    %p152 = scmp.ne.s32.totalorder %s137, %s151
    %p153 = scmp.eq.s32.totalorder %s20, 0
    %p154 = por %p152, %p153
    %s156 = sadd.s32 %s155, 1
    %p159 = scmp.eq.s32.totalorder %s14, 1
    %p160 = scmp.ne.s32.totalorder %s155, %s157
    %p161 = scmp.eq.s32.totalorder %s14, 0
    %p162 = por %p160, %p161
    %p163 = scmp.ne.s32.totalorder %s155, %s157
    %p164 = scmp.eq.s32.totalorder %s19, 1
    %p165 = por %p163, %p164
    %p166 = scmp.ne.s32.totalorder %s157, %s158
    %p167 = scmp.eq.s32.totalorder %s19, 0
    %p168 = por %p166, %p167
    %p169 = scmp.ne.s32.totalorder %s157, %s158
    %p170 = scmp.eq.s32.totalorder %s20, 1
    %p171 = por %p169, %p170
    %p173 = scmp.ne.s32.totalorder %s158, %s172
    %p174 = scmp.eq.s32.totalorder %s20, 0
    %p175 = por %p173, %p174
    %s176 = ssub.s32 %s21, %s33
    %s177 = ssub.s32 %s22, %s29
    %s178 = sor.u32 %s176, %s177
    %p179 = scmp.eq.s32.totalorder %s178, 0
    %s181 = sadd.s32 %s180, 1
    %s182 = scalar_select %p179, %s180, %s181
    %p185 = pneg %p179
    %p186 = scmp.eq.s32.totalorder %s14, 1
    %p187 = por %p185, %p186
    %p188 = scmp.ne.s32.totalorder %s180, %s183
    %p189 = scmp.eq.s32.totalorder %s14, 0
    %p190 = por %p188, %p189
    %p191 = scmp.ne.s32.totalorder %s180, %s183
    %p192 = scmp.eq.s32.totalorder %s19, 1
    %p193 = por %p191, %p192
    %p194 = scmp.ne.s32.totalorder %s183, %s184
    %p195 = scmp.eq.s32.totalorder %s19, 0
    %p196 = por %p194, %p195
    %p197 = scmp.ne.s32.totalorder %s183, %s184
    %p198 = scmp.eq.s32.totalorder %s20, 1
    %p199 = por %p197, %p198
    %p201 = scmp.ne.s32.totalorder %s184, %s200
    %p202 = scmp.eq.s32.totalorder %s20, 0
    %p203 = por %p201, %p202
    %s204 = ssub.s32 %s21, %s33
    %s205 = ssub.s32 %s22, %s29
    %s206 = sor.u32 %s204, %s205
    %p207 = scmp.eq.s32.totalorder %s206, 0
    %s209 = sadd.s32 %s208, 1
    %s210 = scalar_select %p207, %s208, %s209
    %p213 = pneg %p207
    %p214 = scmp.eq.s32.totalorder %s14, 1
    %p215 = por %p213, %p214
    %p216 = scmp.ne.s32.totalorder %s208, %s211
    %p217 = scmp.eq.s32.totalorder %s14, 0
    %p218 = por %p216, %p217
    %p219 = scmp.ne.s32.totalorder %s208, %s211
    %p220 = scmp.eq.s32.totalorder %s19, 1
    %p221 = por %p219, %p220
    %p222 = scmp.ne.s32.totalorder %s211, %s212
    %p223 = scmp.eq.s32.totalorder %s19, 0
    %p224 = por %p222, %p223
    %p225 = scmp.ne.s32.totalorder %s211, %s212
    %p226 = scmp.eq.s32.totalorder %s20, 1
    %p227 = por %p225, %p226
    %p229 = scmp.ne.s32.totalorder %s212, %s228
    %p230 = scmp.eq.s32.totalorder %s20, 0
    %p231 = por %p229, %p230
    %s232 = ssub.s32 %s21, %s33
    %s233 = ssub.s32 %s22, %s29
    %s234 = sor.u32 %s232, %s233
    %p235 = scmp.eq.s32.totalorder %s234, 0
    %s237 = sadd.s32 %s236, 1
    %s238 = scalar_select %p235, %s236, %s237
    %p241 = pneg %p235
    %p242 = scmp.eq.s32.totalorder %s14, 1
    %p243 = por %p241, %p242
    %p244 = scmp.ne.s32.totalorder %s236, %s239
    %p245 = scmp.eq.s32.totalorder %s14, 0
    %p246 = por %p244, %p245
    %p247 = scmp.ne.s32.totalorder %s236, %s239
    %p248 = scmp.eq.s32.totalorder %s19, 1
    %p249 = por %p247, %p248
    %p250 = scmp.ne.s32.totalorder %s239, %s240
    %p251 = scmp.eq.s32.totalorder %s19, 0
    %p252 = por %p250, %p251
    %p253 = scmp.ne.s32.totalorder %s239, %s240
    %p254 = scmp.eq.s32.totalorder %s20, 1
    %p255 = por %p253, %p254
    %p257 = scmp.ne.s32.totalorder %s240, %s256
    %p258 = scmp.eq.s32.totalorder %s20, 0
    %p259 = por %p257, %p258
    %p260 = scmp.le.s32.totalorder 1, %s14
    %p261 = scmp.lt.s32.totalorder %s14, 3
    %p262 = pnand %p260, %p261
    %p263 = pneg %p262
    // Predicated region
    $region9: #{residual_block.3} parent=5 // pred_check
      _
    $region10: #{residual_block.3} parent=5 // pred_check_branch
      %265 = sbr.rel (%p262) target = $region12
    $region11: #{residual_block.3} parent=5 // pred_region
      %s266 = ssub.s32 %s14, 1
      // Predicated region
      $region13: #{residual_block.3} parent=11 // pred_check
        %p267 = pneg %p147
      $region14: #{residual_block.3} parent=11 // pred_check_branch
        %269 = sbr.rel (%p267) target = $region16
      $region15: #{residual_block.3} parent=11 // pred_region
        _
      $region16: #{residual_block.3} parent=11 // pred_fallthru
        _
      // Predicated region
      $region17: #{residual_block.3} parent=11 // pred_check
        %p270 = pneg %p168
      $region18: #{residual_block.3} parent=11 // pred_check_branch
        %272 = sbr.rel (%p270) target = $region20
      $region19: #{residual_block.3} parent=11 // pred_region
        _
      $region20: #{residual_block.3} parent=11 // pred_fallthru
        _
    $region12: #{residual_block.3} parent=5 // pred_fallthru
      _
    %p273 = scmp.lt.s32.totalorder %s14, 2
    // Predicated region
    $region21: #{residual_block.3} parent=5 // pred_check
      %p274 = pneg %p273
    $region22: #{residual_block.3} parent=5 // pred_check_branch
      %276 = sbr.rel (%p274) target = $region24
    $region23: #{residual_block.3} parent=5 // pred_region
      // Predicated region
      $region25: #{residual_block.3} parent=23 // pred_check
        %p277 = pneg %p56
      $region26: #{residual_block.3} parent=23 // pred_check_branch
        %279 = sbr.rel (%p277) target = $region28
      $region27: #{residual_block.3} parent=23 // pred_region
        %s280 = smul.u32 %s22, 16
        %s281 = ssub.s32 %s280, 1
        %p282 = scmp.gt.s32.totalorder %s281, 0
        %s283 = scalar_select %p282, %s281, 0
        %p284 = scmp.lt.s32.totalorder %s21, 1
        %s285 = scalar_select %p284, %s21, 1
        %p286 = scmp.lt.s32.totalorder %s283, 15
        %s287 = scalar_select %p286, %s283, 15
        %s288 = smul.addr %s287, 2
        %s289 = smul.addr %s285, 32
        %s290 = sadd.s32 %s288, %s289
        %s291 = smul.addr %s290, 4
        %s292 = scalar_lea.vmem %s0, %s291
        %s293 = smul.u32 %s22, 16
        %s294 = ssub.s32 %s293, 1
        %p295 = scmp.gt.s32.totalorder %s294, 0
        %s296 = scalar_select %p295, %s294, 0
      $region28: #{residual_block.3} parent=23 // pred_fallthru
        _
      // Predicated region
      $region29: #{residual_block.3} parent=23 // pred_check
        %p297 = pneg %p84
      $region30: #{residual_block.3} parent=23 // pred_check_branch
        %299 = sbr.rel (%p297) target = $region32
      $region31: #{residual_block.3} parent=23 // pred_region
        %s300 = smul.u32 16, %s22
        %p301 = scmp.lt.s32.totalorder %s21, 1
        %s302 = scalar_select %p301, %s21, 1
        %p303 = scmp.lt.s32.totalorder %s300, 15
        %s304 = scalar_select %p303, %s300, 15
        %s305 = smul.addr %s304, 2
        %s306 = smul.addr %s302, 32
        %s307 = sadd.s32 %s305, %s306
        %s308 = smul.addr %s307, 4
        %s309 = scalar_lea.vmem %s1, %s308
        %s310 = smul.u32 16, %s22
      $region32: #{residual_block.3} parent=23 // pred_fallthru
        _
      // Predicated region
      $region33: #{residual_block.3} parent=23 // pred_check
        %p311 = pneg %p120
      $region34: #{residual_block.3} parent=23 // pred_check_branch
        %313 = sbr.rel (%p311) target = $region36
      $region35: #{residual_block.3} parent=23 // pred_region
        %s314 = sadd.s32 %s22, 1
        %s315 = smul.u32 %s314, 16
        %p316 = scmp.lt.s32.totalorder %s315, 15
        %s317 = scalar_select %p316, %s315, 15
        %p318 = scmp.lt.s32.totalorder %s21, 1
        %s319 = scalar_select %p318, %s21, 1
        %p320 = scmp.lt.s32.totalorder %s317, 15
        %s321 = scalar_select %p320, %s317, 15
        %s322 = smul.addr %s321, 2
        %s323 = smul.addr %s319, 32
        %s324 = sadd.s32 %s322, %s323
        %s325 = smul.addr %s324, 4
        %s326 = scalar_lea.vmem %s2, %s325
        %s327 = sadd.s32 %s22, 1
        %s328 = smul.u32 %s327, 16
        %p329 = scmp.lt.s32.totalorder %s328, 15
        %s330 = scalar_select %p329, %s328, 15
      $region36: #{residual_block.3} parent=23 // pred_fallthru
        _
    $region24: #{residual_block.3} parent=5 // pred_fallthru
      _
    %p331 = scmp.le.s32.totalorder 1, %s14
    %p332 = scmp.lt.s32.totalorder %s14, 3
    %p333 = pnand %p331, %p332
    %p334 = pneg %p333
    // Predicated region
    $region37: #{residual_block.3} parent=5 // pred_check
      _
    $region38: #{residual_block.3} parent=5 // pred_check_branch
      %336 = sbr.rel (%p333) target = $region40
    $region39: #{residual_block.3} parent=5 // pred_region
      %s337 = ssub.s32 %s14, 1
      %s338 = smul.u32 %s24, 16
      %s339 = ssub.s32 %s338, 1
      %p340 = scmp.gt.s32.totalorder %s339, 0
      %s341 = scalar_select %p340, %s339, 0
      %p342 = scmp.lt.s32.totalorder %s23, 1
      %s343 = scalar_select %p342, %s23, 1
      %p344 = scmp.lt.s32.totalorder %s341, 15
      %s345 = scalar_select %p344, %s341, 15
      %s346 = smul.addr %s345, 2
      %s347 = smul.addr %s343, 32
      %s348 = sadd.s32 %s346, %s347
      %s349 = smul.addr %s348, 4
      %s350 = scalar_lea.vmem %s0, %s349
      %p351 = pneg %p62
      %p352 = pneg %p59
      %s353 = smul.u32 16, %s24
      %p354 = scmp.lt.s32.totalorder %s23, 1
      %s355 = scalar_select %p354, %s23, 1
      %p356 = scmp.lt.s32.totalorder %s353, 15
      %s357 = scalar_select %p356, %s353, 15
      %s358 = smul.addr %s357, 2
      %s359 = smul.addr %s355, 32
      %s360 = sadd.s32 %s358, %s359
      %s361 = smul.addr %s360, 4
      %s362 = scalar_lea.vmem %s1, %s361
      %p363 = pneg %p90
      %p364 = pneg %p87
      %s365 = sadd.s32 %s24, 1
      %s366 = smul.u32 %s365, 16
      %p367 = scmp.lt.s32.totalorder %s366, 15
      %s368 = scalar_select %p367, %s366, 15
      %p369 = scmp.lt.s32.totalorder %s23, 1
      %s370 = scalar_select %p369, %s23, 1
      %p371 = scmp.lt.s32.totalorder %s368, 15
      %s372 = scalar_select %p371, %s368, 15
      %s373 = smul.addr %s372, 2
      %s374 = smul.addr %s370, 32
      %s375 = sadd.s32 %s373, %s374
      %s376 = smul.addr %s375, 4
      %s377 = scalar_lea.vmem %s2, %s376
      %p378 = pneg %p126
      %p379 = pneg %p123
      %p380 = pneg %p147
      %p381 = pneg %p144
      %p382 = pneg %p168
      %p383 = pneg %p165
      %p384 = pneg %p196
      %p385 = pneg %p193
      %s386 = smul.u32 16, %s24
      %p387 = scmp.lt.s32.totalorder %s23, 1
      %s388 = scalar_select %p387, %s23, 1
      %p389 = scmp.lt.s32.totalorder %s386, 15
      %s390 = scalar_select %p389, %s386, 15
      %s391 = smul.addr %s390, 2
      %s392 = smul.addr %s388, 32
      %s393 = sadd.s32 %s391, %s392
      %s394 = smul.addr %s393, 4
      %s395 = scalar_lea.vmem %s5, %s394
      %p396 = pneg %p224
      %p397 = pneg %p221
      %s398 = smul.u32 16, %s24
      %p399 = scmp.lt.s32.totalorder %s23, 1
      %s400 = scalar_select %p399, %s23, 1
      %p401 = scmp.lt.s32.totalorder %s398, 15
      %s402 = scalar_select %p401, %s398, 15
      %s403 = smul.addr %s402, 2
      %s404 = smul.addr %s400, 32
      %s405 = sadd.s32 %s403, %s404
      %s406 = smul.addr %s405, 4
      %s407 = scalar_lea.vmem %s6, %s406
      %p408 = pneg %p252
      %p409 = pneg %p249
      %p410 = scmp.lt.s32.totalorder %s23, 1
      %s411 = scalar_select %p410, %s23, 1
      %p412 = scmp.lt.s32.totalorder %s24, 0
      %s413 = scalar_select %p412, %s24, 0
      %s414 = sadd.s32 %s413, %s411
      %s415 = smul.addr %s414, 4
      %s416 = scalar_lea.vmem %s7, %s415
      %s417 = smul.u32 %s24, 16
      %s418 = ssub.s32 %s417, 1
      %p419 = scmp.gt.s32.totalorder %s418, 0
      %s420 = scalar_select %p419, %s418, 0
      %p421 = scmp.lt.s32.totalorder %s23, 1
      %s422 = scalar_select %p421, %s23, 1
      %p423 = scmp.lt.s32.totalorder %s420, 15
      %s424 = scalar_select %p423, %s420, 15
      %s425 = smul.addr %s424, 2
      %s426 = smul.addr %s422, 32
      %s427 = sadd.s32 %s425, %s426
      %s428 = smul.addr %s427, 4
      %s429 = scalar_lea.vmem %s0, %s428
      %s430 = smul.u32 %s24, 16
      %s431 = ssub.s32 %s430, 1
      %p432 = scmp.gt.s32.totalorder %s431, 0
      %s433 = scalar_select %p432, %s431, 0
      %s434 = smul.u32 16, %s24
      %p435 = scmp.lt.s32.totalorder %s23, 1
      %s436 = scalar_select %p435, %s23, 1
      %p437 = scmp.lt.s32.totalorder %s434, 15
      %s438 = scalar_select %p437, %s434, 15
      %s439 = smul.addr %s438, 2
      %s440 = smul.addr %s436, 32
      %s441 = sadd.s32 %s439, %s440
      %s442 = smul.addr %s441, 4
      %s443 = scalar_lea.vmem %s1, %s442
      %s444 = smul.u32 16, %s24
      %s445 = sadd.s32 %s24, 1
      %s446 = smul.u32 %s445, 16
      %p447 = scmp.lt.s32.totalorder %s446, 15
      %s448 = scalar_select %p447, %s446, 15
      %p449 = scmp.lt.s32.totalorder %s23, 1
      %s450 = scalar_select %p449, %s23, 1
      %p451 = scmp.lt.s32.totalorder %s448, 15
      %s452 = scalar_select %p451, %s448, 15
      %s453 = smul.addr %s452, 2
      %s454 = smul.addr %s450, 32
      %s455 = sadd.s32 %s453, %s454
      %s456 = smul.addr %s455, 4
      %s457 = scalar_lea.vmem %s2, %s456
      %s458 = sadd.s32 %s24, 1
      %s459 = smul.u32 %s458, 16
      %p460 = scmp.lt.s32.totalorder %s459, 15
      %s461 = scalar_select %p460, %s459, 15
      %s462 = smul.u32 16, %s24
      %p463 = scmp.lt.s32.totalorder %s23, 1
      %s464 = scalar_select %p463, %s23, 1
      %p465 = scmp.lt.s32.totalorder %s462, 15
      %s466 = scalar_select %p465, %s462, 15
      %s467 = smul.addr %s466, 2
      %s468 = smul.addr %s464, 32
      %s469 = sadd.s32 %s467, %s468
      %s470 = smul.addr %s469, 4
      %s471 = scalar_lea.vmem %s5, %s470
      %s472 = smul.u32 16, %s24
      %s473 = smul.u32 16, %s24
      %p474 = scmp.lt.s32.totalorder %s23, 1
      %s475 = scalar_select %p474, %s23, 1
      %p476 = scmp.lt.s32.totalorder %s473, 15
      %s477 = scalar_select %p476, %s473, 15
      %s478 = smul.addr %s477, 2
      %s479 = smul.addr %s475, 32
      %s480 = sadd.s32 %s478, %s479
      %s481 = smul.addr %s480, 4
      %s482 = scalar_lea.vmem %s6, %s481
      %s483 = smul.u32 16, %s24
      %p484 = scmp.lt.s32.totalorder %s23, 1
      %s485 = scalar_select %p484, %s23, 1
      %p486 = scmp.lt.s32.totalorder %s24, 0
      %s487 = scalar_select %p486, %s24, 0
      %s488 = sadd.s32 %s487, %s485
      %s489 = smul.addr %s488, 4
      %s490 = scalar_lea.vmem %s7, %s489
      %p492 = scmp.gt.s32.totalorder %s24, 0
      %s493 = scalar_select %p492, 1, 0
      %s494 = scvt.s32.f32 %s493
      %p496 = scmp.ne.f32.partialorder %s494, %s494
      %s497 = sshrl.u32 %s494, 16
      %s498 = sand.u32 %s497, 1
      %s499 = sadd.s32 32767, %s498
      %s500 = sadd.s32 %s494, %s499
      %s501 = sand.u32 %s500, 4294901760
      %s502 = scalar_select %p496, 2143289344, %s501
      %s504 = sshrl.u32 %s502, 16
      %p505 = scmp.lt.s32.totalorder %s24, 0
      %s506 = scalar_select %p505, 1, 0
      %s507 = scvt.s32.f32 %s506
      %p509 = scmp.ne.f32.partialorder %s507, %s507
      %s510 = sshrl.u32 %s507, 16
      %s511 = sand.u32 %s510, 1
      %s512 = sadd.s32 32767, %s511
      %s513 = sadd.s32 %s507, %s512
      %s514 = sand.u32 %s513, 4294901760
      %s515 = scalar_select %p509, 2143289344, %s514
      %s517 = sshrl.u32 %s515, 16
      %v518 = vld [vmem:[%s429] sm:$0xf]
      %v519 = vld [vmem:[%s429 + $0x4] sm:$0xf]
      %s520 = sshll.u32 %s504, 16
      %s521 = sor.u32 %s504, %s520
      %v522 = vstv %s521
      %v524 = vunpack.c.l.bf16 %v518
      %v525 = vunpack.c.l.bf16 %v519
      %v526 = vunpack.c.l.bf16 %v522
      %v527 = vmul.f32 %v524, %v526
      %v528 = vmul.f32 %v525, %v526
      %v529 = vpack.c.bf16 %v527, %v527
      %v530 = vpack.c.bf16 %v528, %v528
      %v531 = vld [vmem:[%s443] sm:$0xf]
      %v532 = vld [vmem:[%s443 + $0x4] sm:$0xf]
      %v533 = vld [vmem:[%s443 + $0x8] sm:$0xf]
      %v534 = vld [vmem:[%s443 + $0xc] sm:$0xf]
      %v535 = vld [vmem:[%s443 + $0x10] sm:$0xf]
      %v536 = vld [vmem:[%s443 + $0x14] sm:$0xf]
      %v537 = vld [vmem:[%s443 + $0x18] sm:$0xf]
      %v538 = vld [vmem:[%s443 + $0x1c] sm:$0xf]
      %v539 = vld [vmem:[%s443 + $0x20] sm:$0xf]
      %v540 = vld [vmem:[%s443 + $0x24] sm:$0xf]
      %v541 = vld [vmem:[%s443 + $0x28] sm:$0xf]
      %v542 = vld [vmem:[%s443 + $0x2c] sm:$0xf]
      %v543 = vld [vmem:[%s443 + $0x30] sm:$0xf]
      %v544 = vld [vmem:[%s443 + $0x34] sm:$0xf]
      %v545 = vld [vmem:[%s443 + $0x38] sm:$0xf]
      %v546 = vld [vmem:[%s443 + $0x3c] sm:$0xf]
      %v547 = vld [vmem:[%s443 + $0x40] sm:$0xf]
      %v548 = vld [vmem:[%s443 + $0x44] sm:$0xf]
      %v549 = vld [vmem:[%s443 + $0x48] sm:$0xf]
      %v550 = vld [vmem:[%s443 + $0x4c] sm:$0xf]
      %v551 = vld [vmem:[%s443 + $0x50] sm:$0xf]
      %v552 = vld [vmem:[%s443 + $0x54] sm:$0xf]
      %v553 = vld [vmem:[%s443 + $0x58] sm:$0xf]
      %v554 = vld [vmem:[%s443 + $0x5c] sm:$0xf]
      %v555 = vld [vmem:[%s443 + $0x60] sm:$0xf]
      %v556 = vld [vmem:[%s443 + $0x64] sm:$0xf]
      %v557 = vld [vmem:[%s443 + $0x68] sm:$0xf]
      %v558 = vld [vmem:[%s443 + $0x6c] sm:$0xf]
      %v559 = vld [vmem:[%s443 + $0x70] sm:$0xf]
      %v560 = vld [vmem:[%s443 + $0x74] sm:$0xf]
      %v561 = vld [vmem:[%s443 + $0x78] sm:$0xf]
      %v562 = vld [vmem:[%s443 + $0x7c] sm:$0xf]
      %v563 = vld [vmem:[%s457] sm:$0xf]
      %v564 = vld [vmem:[%s457 + $0x4] sm:$0xf]
      %s565 = sshll.u32 %s517, 16
      %s566 = sor.u32 %s517, %s565
      %v567 = vstv %s566
      %v569 = vunpack.c.l.bf16 %v563
      %v570 = vunpack.c.l.bf16 %v564
      %v571 = vunpack.c.l.bf16 %v567
      %v572 = vmul.f32 %v569, %v571
      %v573 = vmul.f32 %v570, %v571
      %v574 = vpack.c.bf16 %v572, %v572
      %v575 = vpack.c.bf16 %v573, %v573
      %v612 = vunpack.c.l.b16 %v529
      %v613 = vunpack.c.l.b16 %v530
      %v614 = vunpack.c.l.b16 %v531
      %v615 = vunpack.c.l.b16 %v532
      %v616 = vunpack.c.l.b16 %v533
      %v617 = vunpack.c.l.b16 %v534
      %v618 = vunpack.c.l.b16 %v535
      %v619 = vunpack.c.l.b16 %v536
      %v620 = vunpack.c.l.b16 %v537
      %v621 = vunpack.c.l.b16 %v538
      %v622 = vunpack.c.l.b16 %v539
      %v623 = vunpack.c.l.b16 %v540
      %v624 = vunpack.c.l.b16 %v541
      %v625 = vunpack.c.l.b16 %v542
      %v626 = vunpack.c.l.b16 %v543
      %v627 = vunpack.c.l.b16 %v544
      %v628 = vunpack.c.l.b16 %v545
      %v629 = vunpack.c.l.b16 %v546
      %v630 = vunpack.c.l.b16 %v547
      %v631 = vunpack.c.l.b16 %v548
      %v632 = vunpack.c.l.b16 %v549
      %v633 = vunpack.c.l.b16 %v550
      %v634 = vunpack.c.l.b16 %v551
      %v635 = vunpack.c.l.b16 %v552
      %v636 = vunpack.c.l.b16 %v553
      %v637 = vunpack.c.l.b16 %v554
      %v638 = vunpack.c.l.b16 %v555
      %v639 = vunpack.c.l.b16 %v556
      %v640 = vunpack.c.l.b16 %v557
      %v641 = vunpack.c.l.b16 %v558
      %v642 = vunpack.c.l.b16 %v559
      %v643 = vunpack.c.l.b16 %v560
      %v644 = vunpack.c.l.b16 %v561
      %v645 = vunpack.c.l.b16 %v562
      %v646 = vunpack.c.l.b16 %v574
      %v647 = vunpack.c.l.b16 %v575
      %v648 = vpack.c.b16 %v613, %v612
      %v649 = vpack.c.b16 %v615, %v614
      %v650 = vpack.c.b16 %v617, %v616
      %v651 = vpack.c.b16 %v619, %v618
      %v652 = vpack.c.b16 %v621, %v620
      %v653 = vpack.c.b16 %v623, %v622
      %v654 = vpack.c.b16 %v625, %v624
      %v655 = vpack.c.b16 %v627, %v626
      %v656 = vpack.c.b16 %v629, %v628
      %v657 = vpack.c.b16 %v631, %v630
      %v658 = vpack.c.b16 %v633, %v632
      %v659 = vpack.c.b16 %v635, %v634
      %v660 = vpack.c.b16 %v637, %v636
      %v661 = vpack.c.b16 %v639, %v638
      %v662 = vpack.c.b16 %v641, %v640
      %v663 = vpack.c.b16 %v643, %v642
      %v664 = vpack.c.b16 %v645, %v644
      %v665 = vpack.c.b16 %v647, %v646
      %v667 = vshrl.u32 %v648, 16
      %v669 = vrot.slane %v667, 7
      %v670 = vshll.u32 %v648, 16
      %v672 = vor.u32 %v669, %v670
      %v674 = vshrl.u32 %v649, 16
      %v676 = vrot.slane %v674, 7
      %v677 = vshll.u32 %v649, 16
      %v679 = vor.u32 %v676, %v677
      %v681 = vshrl.u32 %v650, 16
      %v683 = vrot.slane %v681, 7
      %v684 = vshll.u32 %v650, 16
      %v686 = vor.u32 %v683, %v684
      %v688 = vshrl.u32 %v651, 16
      %v690 = vrot.slane %v688, 7
      %v691 = vshll.u32 %v651, 16
      %v693 = vor.u32 %v690, %v691
      %v695 = vshrl.u32 %v652, 16
      %v697 = vrot.slane %v695, 7
      %v698 = vshll.u32 %v652, 16
      %v700 = vor.u32 %v697, %v698
      %v702 = vshrl.u32 %v653, 16
      %v704 = vrot.slane %v702, 7
      %v705 = vshll.u32 %v653, 16
      %v707 = vor.u32 %v704, %v705
      %v709 = vshrl.u32 %v654, 16
      %v711 = vrot.slane %v709, 7
      %v712 = vshll.u32 %v654, 16
      %v714 = vor.u32 %v711, %v712
      %v716 = vshrl.u32 %v655, 16
      %v718 = vrot.slane %v716, 7
      %v719 = vshll.u32 %v655, 16
      %v721 = vor.u32 %v718, %v719
      %v723 = vshrl.u32 %v656, 16
      %v725 = vrot.slane %v723, 7
      %v726 = vshll.u32 %v656, 16
      %v728 = vor.u32 %v725, %v726
      %v730 = vshrl.u32 %v657, 16
      %v732 = vrot.slane %v730, 7
      %v733 = vshll.u32 %v657, 16
      %v735 = vor.u32 %v732, %v733
      %v737 = vshrl.u32 %v658, 16
      %v739 = vrot.slane %v737, 7
      %v740 = vshll.u32 %v658, 16
      %v742 = vor.u32 %v739, %v740
      %v744 = vshrl.u32 %v659, 16
      %v746 = vrot.slane %v744, 7
      %v747 = vshll.u32 %v659, 16
      %v749 = vor.u32 %v746, %v747
      %v751 = vshrl.u32 %v660, 16
      %v753 = vrot.slane %v751, 7
      %v754 = vshll.u32 %v660, 16
      %v756 = vor.u32 %v753, %v754
      %v758 = vshrl.u32 %v661, 16
      %v760 = vrot.slane %v758, 7
      %v761 = vshll.u32 %v661, 16
      %v763 = vor.u32 %v760, %v761
      %v765 = vshrl.u32 %v662, 16
      %v767 = vrot.slane %v765, 7
      %v768 = vshll.u32 %v662, 16
      %v770 = vor.u32 %v767, %v768
      %v772 = vshrl.u32 %v663, 16
      %v774 = vrot.slane %v772, 7
      %v775 = vshll.u32 %v663, 16
      %v777 = vor.u32 %v774, %v775
      %v779 = vshrl.u32 %v664, 16
      %v781 = vrot.slane %v779, 7
      %v782 = vshll.u32 %v664, 16
      %v784 = vor.u32 %v781, %v782
      %v786 = vshrl.u32 %v665, 16
      %v788 = vrot.slane %v786, 7
      %v789 = vshll.u32 %v665, 16
      %v791 = vor.u32 %v788, %v789
      %vm810 = vcmask 1040384
      %vm811 = vsmask.f32 256
      %vm812 = vmand %vm810, %vm811
      %v813 = vsel %vm812, 0, %v672
      %v814 = vsel %vm812, 0, %v679
      %v815 = vsel %vm812, 0, %v686
      %v816 = vsel %vm812, 0, %v693
      %v817 = vsel %vm812, 0, %v700
      %v818 = vsel %vm812, 0, %v707
      %v819 = vsel %vm812, 0, %v714
      %v820 = vsel %vm812, 0, %v721
      %v821 = vsel %vm812, 0, %v728
      %v822 = vsel %vm812, 0, %v735
      %v823 = vsel %vm812, 0, %v742
      %v824 = vsel %vm812, 0, %v749
      %v825 = vsel %vm812, 0, %v756
      %v826 = vsel %vm812, 0, %v763
      %v827 = vsel %vm812, 0, %v770
      %v828 = vsel %vm812, 0, %v777
      %v829 = vsel %vm812, 0, %v784
      %v830 = vsel %vm812, 0, %v791
      %v831 = vrot.slane %v670, 1
      %v832 = vor.u32 %v667, %v831
      %v833 = vrot.slane %v677, 1
      %v834 = vor.u32 %v674, %v833
      %v835 = vrot.slane %v684, 1
      %v836 = vor.u32 %v681, %v835
      %v837 = vrot.slane %v691, 1
      %v838 = vor.u32 %v688, %v837
      %v839 = vrot.slane %v698, 1
      %v840 = vor.u32 %v695, %v839
      %v841 = vrot.slane %v705, 1
      %v842 = vor.u32 %v702, %v841
      %v843 = vrot.slane %v712, 1
      %v844 = vor.u32 %v709, %v843
      %v845 = vrot.slane %v719, 1
      %v846 = vor.u32 %v716, %v845
      %v847 = vrot.slane %v726, 1
      %v848 = vor.u32 %v723, %v847
      %v849 = vrot.slane %v733, 1
      %v850 = vor.u32 %v730, %v849
      %v851 = vrot.slane %v740, 1
      %v852 = vor.u32 %v737, %v851
      %v853 = vrot.slane %v747, 1
      %v854 = vor.u32 %v744, %v853
      %v855 = vrot.slane %v754, 1
      %v856 = vor.u32 %v751, %v855
      %v857 = vrot.slane %v761, 1
      %v858 = vor.u32 %v758, %v857
      %v859 = vrot.slane %v768, 1
      %v860 = vor.u32 %v765, %v859
      %v861 = vrot.slane %v775, 1
      %v862 = vor.u32 %v772, %v861
      %v863 = vrot.slane %v782, 1
      %v864 = vor.u32 %v779, %v863
      %v865 = vrot.slane %v789, 1
      %v866 = vor.u32 %v786, %v865
      %vm885 = vcmask 1047552
      %vm886 = vsmask.f32 7424
      %vm887 = vmand %vm885, %vm886
      %v888 = vsel %vm887, %v832, 0
      %v889 = vsel %vm887, %v834, 0
      %v890 = vsel %vm887, %v836, 0
      %v891 = vsel %vm887, %v838, 0
      %v892 = vsel %vm887, %v840, 0
      %v893 = vsel %vm887, %v842, 0
      %v894 = vsel %vm887, %v844, 0
      %v895 = vsel %vm887, %v846, 0
      %v896 = vsel %vm887, %v848, 0
      %v897 = vsel %vm887, %v850, 0
      %v898 = vsel %vm887, %v852, 0
      %v899 = vsel %vm887, %v854, 0
      %v900 = vsel %vm887, %v856, 0
      %v901 = vsel %vm887, %v858, 0
      %v902 = vsel %vm887, %v860, 0
      %v903 = vsel %vm887, %v862, 0
      %v904 = vsel %vm887, %v864, 0
      %v905 = vsel %vm887, %v866, 0
      %v924 = vld [vmem:[%s3] sm:$0xf]
      %v925 = vld [vmem:[%s3 + $0x4] sm:$0xf]
      %v926 = vld [vmem:[%s3 + $0x8] sm:$0xf]
      %v927 = vld [vmem:[%s3 + $0xc] sm:$0xf]
      %v928 = vld [vmem:[%s3 + $0x10] sm:$0xf]
      %v929 = vld [vmem:[%s3 + $0x14] sm:$0xf]
      %v930 = vld [vmem:[%s3 + $0x18] sm:$0xf]
      %v931 = vld [vmem:[%s3 + $0x1c] sm:$0xf]
      %v932 = vld [vmem:[%s3 + $0x20] sm:$0xf]
      %v933 = vld [vmem:[%s3 + $0x24] sm:$0xf]
      %v934 = vld [vmem:[%s3 + $0x28] sm:$0xf]
      %v935 = vld [vmem:[%s3 + $0x2c] sm:$0xf]
      %v936 = vld [vmem:[%s3 + $0x30] sm:$0xf]
      %v937 = vld [vmem:[%s3 + $0x34] sm:$0xf]
      %v938 = vld [vmem:[%s3 + $0x38] sm:$0xf]
      %v939 = vld [vmem:[%s3 + $0x3c] sm:$0xf]
      %v940 = vld [vmem:[%s3 + $0x40] sm:$0xf]
      %v941 = vld [vmem:[%s3 + $0x44] sm:$0xf]
      %v942 = vld [vmem:[%s3 + $0x48] sm:$0xf]
      %v943 = vld [vmem:[%s3 + $0x4c] sm:$0xf]
      %v944 = vld [vmem:[%s3 + $0x50] sm:$0xf]
      %v945 = vld [vmem:[%s3 + $0x54] sm:$0xf]
      %v946 = vld [vmem:[%s3 + $0x58] sm:$0xf]
      %v947 = vld [vmem:[%s3 + $0x5c] sm:$0xf]
      %v948 = vld [vmem:[%s3 + $0x60] sm:$0xf]
      %v949 = vld [vmem:[%s3 + $0x64] sm:$0xf]
      %v950 = vld [vmem:[%s3 + $0x68] sm:$0xf]
      %v951 = vld [vmem:[%s3 + $0x6c] sm:$0xf]
      %v952 = vld [vmem:[%s3 + $0x70] sm:$0xf]
      %v953 = vld [vmem:[%s3 + $0x74] sm:$0xf]
      %v954 = vld [vmem:[%s3 + $0x78] sm:$0xf]
      %v955 = vld [vmem:[%s3 + $0x7c] sm:$0xf]
      %v956 = vld [vmem:[%s3 + $0x80] sm:$0xf]
      %v957 = vld [vmem:[%s3 + $0x84] sm:$0xf]
      %v958 = vld [vmem:[%s3 + $0x88] sm:$0xf]
      %v959 = vld [vmem:[%s3 + $0x8c] sm:$0xf]
      %v960 = vld [vmem:[%s3 + $0x90] sm:$0xf]
      %v961 = vld [vmem:[%s3 + $0x94] sm:$0xf]
      %v962 = vld [vmem:[%s3 + $0x98] sm:$0xf]
      %v963 = vld [vmem:[%s3 + $0x9c] sm:$0xf]
      %v964 = vld [vmem:[%s3 + $0xa0] sm:$0xf]
      %v965 = vld [vmem:[%s3 + $0xa4] sm:$0xf]
      %v966 = vld [vmem:[%s3 + $0xa8] sm:$0xf]
      %v967 = vld [vmem:[%s3 + $0xac] sm:$0xf]
      %v968 = vld [vmem:[%s3 + $0xb0] sm:$0xf]
      %v969 = vld [vmem:[%s3 + $0xb4] sm:$0xf]
      %v970 = vld [vmem:[%s3 + $0xb8] sm:$0xf]
      %v971 = vld [vmem:[%s3 + $0xbc] sm:$0xf]
      %s972 = scalar_lea.vmem %s3, 192
      %v973 = vld [vmem:[%s972] sm:$0xf]
      %v974 = vld [vmem:[%s972 + $0x4] sm:$0xf]
      %v975 = vld [vmem:[%s972 + $0x8] sm:$0xf]
      %v976 = vld [vmem:[%s972 + $0xc] sm:$0xf]
      %v977 = vld [vmem:[%s972 + $0x10] sm:$0xf]
      %v978 = vld [vmem:[%s972 + $0x14] sm:$0xf]
      %v979 = vld [vmem:[%s972 + $0x18] sm:$0xf]
      %v980 = vld [vmem:[%s972 + $0x1c] sm:$0xf]
      %v981 = vld [vmem:[%s972 + $0x20] sm:$0xf]
      %v982 = vld [vmem:[%s972 + $0x24] sm:$0xf]
      %v983 = vld [vmem:[%s972 + $0x28] sm:$0xf]
      %v984 = vld [vmem:[%s972 + $0x2c] sm:$0xf]
      %v985 = vld [vmem:[%s972 + $0x30] sm:$0xf]
      %v986 = vld [vmem:[%s972 + $0x34] sm:$0xf]
      %v987 = vld [vmem:[%s972 + $0x38] sm:$0xf]
      %v988 = vld [vmem:[%s972 + $0x3c] sm:$0xf]
      %v989 = vld [vmem:[%s972 + $0x40] sm:$0xf]
      %v990 = vld [vmem:[%s972 + $0x44] sm:$0xf]
      %v991 = vld [vmem:[%s972 + $0x48] sm:$0xf]
      %v992 = vld [vmem:[%s972 + $0x4c] sm:$0xf]
      %v993 = vld [vmem:[%s972 + $0x50] sm:$0xf]
      %v994 = vld [vmem:[%s972 + $0x54] sm:$0xf]
      %v995 = vld [vmem:[%s972 + $0x58] sm:$0xf]
      %v996 = vld [vmem:[%s972 + $0x5c] sm:$0xf]
      %v997 = vld [vmem:[%s972 + $0x60] sm:$0xf]
      %v998 = vld [vmem:[%s972 + $0x64] sm:$0xf]
      %v999 = vld [vmem:[%s972 + $0x68] sm:$0xf]
      %v1000 = vld [vmem:[%s972 + $0x6c] sm:$0xf]
      %v1001 = vld [vmem:[%s972 + $0x70] sm:$0xf]
      %v1002 = vld [vmem:[%s972 + $0x74] sm:$0xf]
      %v1003 = vld [vmem:[%s972 + $0x78] sm:$0xf]
      %v1004 = vld [vmem:[%s972 + $0x7c] sm:$0xf]
      %v1005 = vld [vmem:[%s972 + $0x80] sm:$0xf]
      %v1006 = vld [vmem:[%s972 + $0x84] sm:$0xf]
      %v1007 = vld [vmem:[%s972 + $0x88] sm:$0xf]
      %v1008 = vld [vmem:[%s972 + $0x8c] sm:$0xf]
      %v1009 = vld [vmem:[%s972 + $0x90] sm:$0xf]
      %v1010 = vld [vmem:[%s972 + $0x94] sm:$0xf]
      %v1011 = vld [vmem:[%s972 + $0x98] sm:$0xf]
      %v1012 = vld [vmem:[%s972 + $0x9c] sm:$0xf]
      %v1013 = vld [vmem:[%s972 + $0xa0] sm:$0xf]
      %v1014 = vld [vmem:[%s972 + $0xa4] sm:$0xf]
      %v1015 = vld [vmem:[%s972 + $0xa8] sm:$0xf]
      %v1016 = vld [vmem:[%s972 + $0xac] sm:$0xf]
      %v1017 = vld [vmem:[%s972 + $0xb0] sm:$0xf]
      %v1018 = vld [vmem:[%s972 + $0xb4] sm:$0xf]
      %v1019 = vld [vmem:[%s972 + $0xb8] sm:$0xf]
      %v1020 = vld [vmem:[%s972 + $0xbc] sm:$0xf]
      %v1069 = vunpack.c.l.b16 %v973
      %v1070 = vunpack.c.l.b16 %v974
      %v1071 = vunpack.c.l.b16 %v975
      %v1072 = vunpack.c.l.b16 %v976
      %v1073 = vunpack.c.l.b16 %v977
      %v1074 = vunpack.c.l.b16 %v978
      %v1075 = vunpack.c.l.b16 %v979
      %v1076 = vunpack.c.l.b16 %v980
      %v1077 = vunpack.c.l.b16 %v981
      %v1078 = vunpack.c.l.b16 %v982
      %v1079 = vunpack.c.l.b16 %v983
      %v1080 = vunpack.c.l.b16 %v984
      %v1081 = vunpack.c.l.b16 %v985
      %v1082 = vunpack.c.l.b16 %v986
      %v1083 = vunpack.c.l.b16 %v987
      %v1084 = vunpack.c.l.b16 %v988
      %v1085 = vunpack.c.l.b16 %v989
      %v1086 = vunpack.c.l.b16 %v990
      %v1087 = vunpack.c.l.b16 %v991
      %v1088 = vunpack.c.l.b16 %v992
      %v1089 = vunpack.c.l.b16 %v993
      %v1090 = vunpack.c.l.b16 %v994
      %v1091 = vunpack.c.l.b16 %v995
      %v1092 = vunpack.c.l.b16 %v996
      %v1093 = vunpack.c.l.b16 %v997
      %v1094 = vunpack.c.l.b16 %v998
      %v1095 = vunpack.c.l.b16 %v999
      %v1096 = vunpack.c.l.b16 %v1000
      %v1097 = vunpack.c.l.b16 %v1001
      %v1098 = vunpack.c.l.b16 %v1002
      %v1099 = vunpack.c.l.b16 %v1003
      %v1100 = vunpack.c.l.b16 %v1004
      %v1101 = vunpack.c.l.b16 %v1005
      %v1102 = vunpack.c.l.b16 %v1006
      %v1103 = vunpack.c.l.b16 %v1007
      %v1104 = vunpack.c.l.b16 %v1008
      %v1105 = vunpack.c.l.b16 %v1009
      %v1106 = vunpack.c.l.b16 %v1010
      %v1107 = vunpack.c.l.b16 %v1011
      %v1108 = vunpack.c.l.b16 %v1012
      %v1109 = vunpack.c.l.b16 %v1013
      %v1110 = vunpack.c.l.b16 %v1014
      %v1111 = vunpack.c.l.b16 %v1015
      %v1112 = vunpack.c.l.b16 %v1016
      %v1113 = vunpack.c.l.b16 %v1017
      %v1114 = vunpack.c.l.b16 %v1018
      %v1115 = vunpack.c.l.b16 %v1019
      %v1116 = vunpack.c.l.b16 %v1020
      %v1117 = vpack.c.b16 %v1070, %v1069
      %v1118 = vpack.c.b16 %v1072, %v1071
      %v1119 = vpack.c.b16 %v1074, %v1073
      %v1120 = vpack.c.b16 %v1076, %v1075
      %v1121 = vpack.c.b16 %v1078, %v1077
      %v1122 = vpack.c.b16 %v1080, %v1079
      %v1123 = vpack.c.b16 %v1082, %v1081
      %v1124 = vpack.c.b16 %v1084, %v1083
      %v1125 = vpack.c.b16 %v1086, %v1085
      %v1126 = vpack.c.b16 %v1088, %v1087
      %v1127 = vpack.c.b16 %v1090, %v1089
      %v1128 = vpack.c.b16 %v1092, %v1091
      %v1129 = vpack.c.b16 %v1094, %v1093
      %v1130 = vpack.c.b16 %v1096, %v1095
      %v1131 = vpack.c.b16 %v1098, %v1097
      %v1132 = vpack.c.b16 %v1100, %v1099
      %v1133 = vpack.c.b16 %v1102, %v1101
      %v1134 = vpack.c.b16 %v1104, %v1103
      %v1135 = vpack.c.b16 %v1106, %v1105
      %v1136 = vpack.c.b16 %v1108, %v1107
      %v1137 = vpack.c.b16 %v1110, %v1109
      %v1138 = vpack.c.b16 %v1112, %v1111
      %v1139 = vpack.c.b16 %v1114, %v1113
      %v1140 = vpack.c.b16 %v1116, %v1115
      %1165 = vmatpush.bf16.msra.mxu0 %v1124
      %1166 = vmatpush.bf16.msra.mxu0 %v1123
      %1167 = vmatpush.bf16.msra.mxu0 %v1122
      %1168 = vmatpush.bf16.msra.mxu0 %v1121
      %1169 = vmatpush.bf16.msra.mxu0 %v1120
      %1170 = vmatpush.bf16.msra.mxu0 %v1119
      %1171 = vmatpush.bf16.msra.mxu0 %v1118
      %1172 = vmatpush.bf16.msra.mxu0 %v1117
      %1173 = vmatmul.bf16.gmra.mxu0 %v814
      %v1174 = vpop.f32.mrf.mxu0
      %v1175 = vadd.f32 0.0, %v1174
      %v1176 = vpop.f32.mrf.mxu0
      %v1177 = vadd.f32 0.0, %v1176
      %1178 = vmatmul.bf16.gmra.mxu0 %v815
      %v1179 = vpop.f32.mrf.mxu0
      %v1180 = vadd.f32 0.0, %v1179
      %v1181 = vpop.f32.mrf.mxu0
      %v1182 = vadd.f32 0.0, %v1181
      %1183 = vmatmul.bf16.gmra.mxu0 %v816
      %v1184 = vpop.f32.mrf.mxu0
      %v1185 = vadd.f32 0.0, %v1184
      %v1186 = vpop.f32.mrf.mxu0
      %v1187 = vadd.f32 0.0, %v1186
      %1188 = vmatmul.bf16.gmra.mxu0 %v817
      %v1189 = vpop.f32.mrf.mxu0
      %v1190 = vadd.f32 0.0, %v1189
      %v1191 = vpop.f32.mrf.mxu0
      %v1192 = vadd.f32 0.0, %v1191
      %1193 = vmatmul.bf16.gmra.mxu0 %v818
      %v1194 = vpop.f32.mrf.mxu0
      %v1195 = vadd.f32 0.0, %v1194
      %v1196 = vpop.f32.mrf.mxu0
      %v1197 = vadd.f32 0.0, %v1196
      %1198 = vmatmul.bf16.gmra.mxu0 %v819
      %v1199 = vpop.f32.mrf.mxu0
      %v1200 = vadd.f32 0.0, %v1199
      %v1201 = vpop.f32.mrf.mxu0
      %v1202 = vadd.f32 0.0, %v1201
      %1203 = vmatmul.bf16.gmra.mxu0 %v820
      %v1204 = vpop.f32.mrf.mxu0
      %v1205 = vadd.f32 0.0, %v1204
      %v1206 = vpop.f32.mrf.mxu0
      %v1207 = vadd.f32 0.0, %v1206
      %1208 = vmatmul.bf16.gmra.mxu0 %v821
      %v1209 = vpop.f32.mrf.mxu0
      %v1210 = vadd.f32 0.0, %v1209
      %v1211 = vpop.f32.mrf.mxu0
      %v1212 = vadd.f32 0.0, %v1211
      %1213 = vmatmul.bf16.gmra.mxu0 %v822
      %v1214 = vpop.f32.mrf.mxu0
      %v1215 = vadd.f32 0.0, %v1214
      %v1216 = vpop.f32.mrf.mxu0
      %v1217 = vadd.f32 0.0, %v1216
      %1218 = vmatmul.bf16.gmra.mxu0 %v823
      %v1219 = vpop.f32.mrf.mxu0
      %v1220 = vadd.f32 0.0, %v1219
      %v1221 = vpop.f32.mrf.mxu0
      %v1222 = vadd.f32 0.0, %v1221
      %1223 = vmatmul.bf16.gmra.mxu0 %v824
      %v1224 = vpop.f32.mrf.mxu0
      %v1225 = vadd.f32 0.0, %v1224
      %v1226 = vpop.f32.mrf.mxu0
      %v1227 = vadd.f32 0.0, %v1226
      %1228 = vmatmul.bf16.gmra.mxu0 %v825
      %v1229 = vpop.f32.mrf.mxu0
      %v1230 = vadd.f32 0.0, %v1229
      %v1231 = vpop.f32.mrf.mxu0
      %v1232 = vadd.f32 0.0, %v1231
      %1233 = vmatmul.bf16.gmra.mxu0 %v826
      %v1234 = vpop.f32.mrf.mxu0
      %v1235 = vadd.f32 0.0, %v1234
      %v1236 = vpop.f32.mrf.mxu0
      %v1237 = vadd.f32 0.0, %v1236
      %1238 = vmatmul.bf16.gmra.mxu0 %v827
      %v1239 = vpop.f32.mrf.mxu0
      %v1240 = vadd.f32 0.0, %v1239
      %v1241 = vpop.f32.mrf.mxu0
      %v1242 = vadd.f32 0.0, %v1241
      %1243 = vmatmul.bf16.gmra.mxu0 %v828
      %v1244 = vpop.f32.mrf.mxu0
      %v1245 = vadd.f32 0.0, %v1244
      %v1246 = vpop.f32.mrf.mxu0
      %v1247 = vadd.f32 0.0, %v1246
      %1248 = vmatmul.bf16.gmra.mxu0 %v829
      %v1249 = vpop.f32.mrf.mxu0
      %v1250 = vadd.f32 0.0, %v1249
      %v1251 = vpop.f32.mrf.mxu0
      %v1252 = vadd.f32 0.0, %v1251
      %1253 = vdwg.mxu0
      %1254 = vmatpush.bf16.msra.mxu0 %v1132
      %1255 = vmatpush.bf16.msra.mxu0 %v1131
      %1256 = vmatpush.bf16.msra.mxu0 %v1130
      %1257 = vmatpush.bf16.msra.mxu0 %v1129
      %1258 = vmatpush.bf16.msra.mxu0 %v1128
      %1259 = vmatpush.bf16.msra.mxu0 %v1127
      %1260 = vmatpush.bf16.msra.mxu0 %v1126
      %1261 = vmatpush.bf16.msra.mxu0 %v1125
      %1262 = vmatmul.bf16.gmra.mxu0 %v649
      %v1263 = vpop.f32.mrf.mxu0
      %v1264 = vadd.f32 %v1175, %v1263
      %v1265 = vpop.f32.mrf.mxu0
      %v1266 = vadd.f32 %v1177, %v1265
      %1267 = vmatmul.bf16.gmra.mxu0 %v650
      %v1268 = vpop.f32.mrf.mxu0
      %v1269 = vadd.f32 %v1180, %v1268
      %v1270 = vpop.f32.mrf.mxu0
      %v1271 = vadd.f32 %v1182, %v1270
      %1272 = vmatmul.bf16.gmra.mxu0 %v651
      %v1273 = vpop.f32.mrf.mxu0
      %v1274 = vadd.f32 %v1185, %v1273
      %v1275 = vpop.f32.mrf.mxu0
      %v1276 = vadd.f32 %v1187, %v1275
      %1277 = vmatmul.bf16.gmra.mxu0 %v652
      %v1278 = vpop.f32.mrf.mxu0
      %v1279 = vadd.f32 %v1190, %v1278
      %v1280 = vpop.f32.mrf.mxu0
      %v1281 = vadd.f32 %v1192, %v1280
      %1282 = vmatmul.bf16.gmra.mxu0 %v653
      %v1283 = vpop.f32.mrf.mxu0
      %v1284 = vadd.f32 %v1195, %v1283
      %v1285 = vpop.f32.mrf.mxu0
      %v1286 = vadd.f32 %v1197, %v1285
      %1287 = vmatmul.bf16.gmra.mxu0 %v654
      %v1288 = vpop.f32.mrf.mxu0
      %v1289 = vadd.f32 %v1200, %v1288
      %v1290 = vpop.f32.mrf.mxu0
      %v1291 = vadd.f32 %v1202, %v1290
      %1292 = vmatmul.bf16.gmra.mxu0 %v655
      %v1293 = vpop.f32.mrf.mxu0
      %v1294 = vadd.f32 %v1205, %v1293
      %v1295 = vpop.f32.mrf.mxu0
      %v1296 = vadd.f32 %v1207, %v1295
      %1297 = vmatmul.bf16.gmra.mxu0 %v656
      %v1298 = vpop.f32.mrf.mxu0
      %v1299 = vadd.f32 %v1210, %v1298
      %v1300 = vpop.f32.mrf.mxu0
      %v1301 = vadd.f32 %v1212, %v1300
      %1302 = vmatmul.bf16.gmra.mxu0 %v657
      %v1303 = vpop.f32.mrf.mxu0
      %v1304 = vadd.f32 %v1215, %v1303
      %v1305 = vpop.f32.mrf.mxu0
      %v1306 = vadd.f32 %v1217, %v1305
      %1307 = vmatmul.bf16.gmra.mxu0 %v658
      %v1308 = vpop.f32.mrf.mxu0
      %v1309 = vadd.f32 %v1220, %v1308
      %v1310 = vpop.f32.mrf.mxu0
      %v1311 = vadd.f32 %v1222, %v1310
      %1312 = vmatmul.bf16.gmra.mxu0 %v659
      %v1313 = vpop.f32.mrf.mxu0
      %v1314 = vadd.f32 %v1225, %v1313
      %v1315 = vpop.f32.mrf.mxu0
      %v1316 = vadd.f32 %v1227, %v1315
      %1317 = vmatmul.bf16.gmra.mxu0 %v660
      %v1318 = vpop.f32.mrf.mxu0
      %v1319 = vadd.f32 %v1230, %v1318
      %v1320 = vpop.f32.mrf.mxu0
      %v1321 = vadd.f32 %v1232, %v1320
      %1322 = vmatmul.bf16.gmra.mxu0 %v661
      %v1323 = vpop.f32.mrf.mxu0
      %v1324 = vadd.f32 %v1235, %v1323
      %v1325 = vpop.f32.mrf.mxu0
      %v1326 = vadd.f32 %v1237, %v1325
      %1327 = vmatmul.bf16.gmra.mxu0 %v662
      %v1328 = vpop.f32.mrf.mxu0
      %v1329 = vadd.f32 %v1240, %v1328
      %v1330 = vpop.f32.mrf.mxu0
      %v1331 = vadd.f32 %v1242, %v1330
      %1332 = vmatmul.bf16.gmra.mxu0 %v663
      %v1333 = vpop.f32.mrf.mxu0
      %v1334 = vadd.f32 %v1245, %v1333
      %v1335 = vpop.f32.mrf.mxu0
      %v1336 = vadd.f32 %v1247, %v1335
      %1337 = vmatmul.bf16.gmra.mxu0 %v664
      %v1338 = vpop.f32.mrf.mxu0
      %v1339 = vadd.f32 %v1250, %v1338
      %v1340 = vpop.f32.mrf.mxu0
      %v1341 = vadd.f32 %v1252, %v1340
      %1342 = vdwg.mxu0
      %1343 = vmatpush.bf16.msra.mxu0 %v1140
      %1344 = vmatpush.bf16.msra.mxu0 %v1139
      %1345 = vmatpush.bf16.msra.mxu0 %v1138
      %1346 = vmatpush.bf16.msra.mxu0 %v1137
      %1347 = vmatpush.bf16.msra.mxu0 %v1136
      %1348 = vmatpush.bf16.msra.mxu0 %v1135
      %1349 = vmatpush.bf16.msra.mxu0 %v1134
      %1350 = vmatpush.bf16.msra.mxu0 %v1133
      %1351 = vmatmul.bf16.gmra.mxu0 %v889
      %v1352 = vpop.f32.mrf.mxu0
      %v1353 = vadd.f32 %v1264, %v1352
      %v1354 = vpop.f32.mrf.mxu0
      %v1355 = vadd.f32 %v1266, %v1354
      %1356 = vmatmul.bf16.gmra.mxu0 %v890
      %v1357 = vpop.f32.mrf.mxu0
      %v1358 = vadd.f32 %v1269, %v1357
      %v1359 = vpop.f32.mrf.mxu0
      %v1360 = vadd.f32 %v1271, %v1359
      %1361 = vmatmul.bf16.gmra.mxu0 %v891
      %v1362 = vpop.f32.mrf.mxu0
      %v1363 = vadd.f32 %v1274, %v1362
      %v1364 = vpop.f32.mrf.mxu0
      %v1365 = vadd.f32 %v1276, %v1364
      %1366 = vmatmul.bf16.gmra.mxu0 %v892
      %v1367 = vpop.f32.mrf.mxu0
      %v1368 = vadd.f32 %v1279, %v1367
      %v1369 = vpop.f32.mrf.mxu0
      %v1370 = vadd.f32 %v1281, %v1369
      %1371 = vmatmul.bf16.gmra.mxu0 %v893
      %v1372 = vpop.f32.mrf.mxu0
      %v1373 = vadd.f32 %v1284, %v1372
      %v1374 = vpop.f32.mrf.mxu0
      %v1375 = vadd.f32 %v1286, %v1374
      %1376 = vmatmul.bf16.gmra.mxu0 %v894
      %v1377 = vpop.f32.mrf.mxu0
      %v1378 = vadd.f32 %v1289, %v1377
      %v1379 = vpop.f32.mrf.mxu0
      %v1380 = vadd.f32 %v1291, %v1379
      %1381 = vmatmul.bf16.gmra.mxu0 %v895
      %v1382 = vpop.f32.mrf.mxu0
      %v1383 = vadd.f32 %v1294, %v1382
      %v1384 = vpop.f32.mrf.mxu0
      %v1385 = vadd.f32 %v1296, %v1384
      %1386 = vmatmul.bf16.gmra.mxu0 %v896
      %v1387 = vpop.f32.mrf.mxu0
      %v1388 = vadd.f32 %v1299, %v1387
      %v1389 = vpop.f32.mrf.mxu0
      %v1390 = vadd.f32 %v1301, %v1389
      %1391 = vmatmul.bf16.gmra.mxu0 %v897
      %v1392 = vpop.f32.mrf.mxu0
      %v1393 = vadd.f32 %v1304, %v1392
      %v1394 = vpop.f32.mrf.mxu0
      %v1395 = vadd.f32 %v1306, %v1394
      %1396 = vmatmul.bf16.gmra.mxu0 %v898
      %v1397 = vpop.f32.mrf.mxu0
      %v1398 = vadd.f32 %v1309, %v1397
      %v1399 = vpop.f32.mrf.mxu0
      %v1400 = vadd.f32 %v1311, %v1399
      %1401 = vmatmul.bf16.gmra.mxu0 %v899
      %v1402 = vpop.f32.mrf.mxu0
      %v1403 = vadd.f32 %v1314, %v1402
      %v1404 = vpop.f32.mrf.mxu0
      %v1405 = vadd.f32 %v1316, %v1404
      %1406 = vmatmul.bf16.gmra.mxu0 %v900
      %v1407 = vpop.f32.mrf.mxu0
      %v1408 = vadd.f32 %v1319, %v1407
      %v1409 = vpop.f32.mrf.mxu0
      %v1410 = vadd.f32 %v1321, %v1409
      %1411 = vmatmul.bf16.gmra.mxu0 %v901
      %v1412 = vpop.f32.mrf.mxu0
      %v1413 = vadd.f32 %v1324, %v1412
      %v1414 = vpop.f32.mrf.mxu0
      %v1415 = vadd.f32 %v1326, %v1414
      %1416 = vmatmul.bf16.gmra.mxu0 %v902
      %v1417 = vpop.f32.mrf.mxu0
      %v1418 = vadd.f32 %v1329, %v1417
      %v1419 = vpop.f32.mrf.mxu0
      %v1420 = vadd.f32 %v1331, %v1419
      %1421 = vmatmul.bf16.gmra.mxu0 %v903
      %v1422 = vpop.f32.mrf.mxu0
      %v1423 = vadd.f32 %v1334, %v1422
      %v1424 = vpop.f32.mrf.mxu0
      %v1425 = vadd.f32 %v1336, %v1424
      %1426 = vmatmul.bf16.gmra.mxu0 %v904
      %v1427 = vpop.f32.mrf.mxu0
      %v1428 = vadd.f32 %v1339, %v1427
      %v1429 = vpop.f32.mrf.mxu0
      %v1430 = vadd.f32 %v1341, %v1429
      %1431 = vdwg.mxu0
      %v1480 = vunpack.c.l.b16 %v924
      %v1481 = vunpack.c.l.b16 %v925
      %v1482 = vunpack.c.l.b16 %v926
      %v1483 = vunpack.c.l.b16 %v927
      %v1484 = vunpack.c.l.b16 %v928
      %v1485 = vunpack.c.l.b16 %v929
      %v1486 = vunpack.c.l.b16 %v930
      %v1487 = vunpack.c.l.b16 %v931
      %v1488 = vunpack.c.l.b16 %v932
      %v1489 = vunpack.c.l.b16 %v933
      %v1490 = vunpack.c.l.b16 %v934
      %v1491 = vunpack.c.l.b16 %v935
      %v1492 = vunpack.c.l.b16 %v936
      %v1493 = vunpack.c.l.b16 %v937
      %v1494 = vunpack.c.l.b16 %v938
      %v1495 = vunpack.c.l.b16 %v939
      %v1496 = vunpack.c.l.b16 %v940
      %v1497 = vunpack.c.l.b16 %v941
      %v1498 = vunpack.c.l.b16 %v942
      %v1499 = vunpack.c.l.b16 %v943
      %v1500 = vunpack.c.l.b16 %v944
      %v1501 = vunpack.c.l.b16 %v945
      %v1502 = vunpack.c.l.b16 %v946
      %v1503 = vunpack.c.l.b16 %v947
      %v1504 = vunpack.c.l.b16 %v948
      %v1505 = vunpack.c.l.b16 %v949
      %v1506 = vunpack.c.l.b16 %v950
      %v1507 = vunpack.c.l.b16 %v951
      %v1508 = vunpack.c.l.b16 %v952
      %v1509 = vunpack.c.l.b16 %v953
      %v1510 = vunpack.c.l.b16 %v954
      %v1511 = vunpack.c.l.b16 %v955
      %v1512 = vunpack.c.l.b16 %v956
      %v1513 = vunpack.c.l.b16 %v957
      %v1514 = vunpack.c.l.b16 %v958
      %v1515 = vunpack.c.l.b16 %v959
      %v1516 = vunpack.c.l.b16 %v960
      %v1517 = vunpack.c.l.b16 %v961
      %v1518 = vunpack.c.l.b16 %v962
      %v1519 = vunpack.c.l.b16 %v963
      %v1520 = vunpack.c.l.b16 %v964
      %v1521 = vunpack.c.l.b16 %v965
      %v1522 = vunpack.c.l.b16 %v966
      %v1523 = vunpack.c.l.b16 %v967
      %v1524 = vunpack.c.l.b16 %v968
      %v1525 = vunpack.c.l.b16 %v969
      %v1526 = vunpack.c.l.b16 %v970
      %v1527 = vunpack.c.l.b16 %v971
      %v1528 = vpack.c.b16 %v1481, %v1480
      %v1529 = vpack.c.b16 %v1483, %v1482
      %v1530 = vpack.c.b16 %v1485, %v1484
      %v1531 = vpack.c.b16 %v1487, %v1486
      %v1532 = vpack.c.b16 %v1489, %v1488
      %v1533 = vpack.c.b16 %v1491, %v1490
      %v1534 = vpack.c.b16 %v1493, %v1492
      %v1535 = vpack.c.b16 %v1495, %v1494
      %v1536 = vpack.c.b16 %v1497, %v1496
      %v1537 = vpack.c.b16 %v1499, %v1498
      %v1538 = vpack.c.b16 %v1501, %v1500
      %v1539 = vpack.c.b16 %v1503, %v1502
      %v1540 = vpack.c.b16 %v1505, %v1504
      %v1541 = vpack.c.b16 %v1507, %v1506
      %v1542 = vpack.c.b16 %v1509, %v1508
      %v1543 = vpack.c.b16 %v1511, %v1510
      %v1544 = vpack.c.b16 %v1513, %v1512
      %v1545 = vpack.c.b16 %v1515, %v1514
      %v1546 = vpack.c.b16 %v1517, %v1516
      %v1547 = vpack.c.b16 %v1519, %v1518
      %v1548 = vpack.c.b16 %v1521, %v1520
      %v1549 = vpack.c.b16 %v1523, %v1522
      %v1550 = vpack.c.b16 %v1525, %v1524
      %v1551 = vpack.c.b16 %v1527, %v1526
      %1576 = vmatpush.bf16.msra.mxu0 %v1535
      %1577 = vmatpush.bf16.msra.mxu0 %v1534
      %1578 = vmatpush.bf16.msra.mxu0 %v1533
      %1579 = vmatpush.bf16.msra.mxu0 %v1532
      %1580 = vmatpush.bf16.msra.mxu0 %v1531
      %1581 = vmatpush.bf16.msra.mxu0 %v1530
      %1582 = vmatpush.bf16.msra.mxu0 %v1529
      %1583 = vmatpush.bf16.msra.mxu0 %v1528
      %1584 = vmatmul.bf16.gmra.mxu0 %v813
      %v1585 = vpop.f32.mrf.mxu0
      %v1586 = vadd.f32 %v1353, %v1585
      %v1587 = vpop.f32.mrf.mxu0
      %v1588 = vadd.f32 %v1355, %v1587
      %1589 = vmatmul.bf16.gmra.mxu0 %v814
      %v1590 = vpop.f32.mrf.mxu0
      %v1591 = vadd.f32 %v1358, %v1590
      %v1592 = vpop.f32.mrf.mxu0
      %v1593 = vadd.f32 %v1360, %v1592
      %1594 = vmatmul.bf16.gmra.mxu0 %v815
      %v1595 = vpop.f32.mrf.mxu0
      %v1596 = vadd.f32 %v1363, %v1595
      %v1597 = vpop.f32.mrf.mxu0
      %v1598 = vadd.f32 %v1365, %v1597
      %1599 = vmatmul.bf16.gmra.mxu0 %v816
      %v1600 = vpop.f32.mrf.mxu0
      %v1601 = vadd.f32 %v1368, %v1600
      %v1602 = vpop.f32.mrf.mxu0
      %v1603 = vadd.f32 %v1370, %v1602
      %1604 = vmatmul.bf16.gmra.mxu0 %v817
      %v1605 = vpop.f32.mrf.mxu0
      %v1606 = vadd.f32 %v1373, %v1605
      %v1607 = vpop.f32.mrf.mxu0
      %v1608 = vadd.f32 %v1375, %v1607
      %1609 = vmatmul.bf16.gmra.mxu0 %v818
      %v1610 = vpop.f32.mrf.mxu0
      %v1611 = vadd.f32 %v1378, %v1610
      %v1612 = vpop.f32.mrf.mxu0
      %v1613 = vadd.f32 %v1380, %v1612
      %1614 = vmatmul.bf16.gmra.mxu0 %v819
      %v1615 = vpop.f32.mrf.mxu0
      %v1616 = vadd.f32 %v1383, %v1615
      %v1617 = vpop.f32.mrf.mxu0
      %v1618 = vadd.f32 %v1385, %v1617
      %1619 = vmatmul.bf16.gmra.mxu0 %v820
      %v1620 = vpop.f32.mrf.mxu0
      %v1621 = vadd.f32 %v1388, %v1620
      %v1622 = vpop.f32.mrf.mxu0
      %v1623 = vadd.f32 %v1390, %v1622
      %1624 = vmatmul.bf16.gmra.mxu0 %v821
      %v1625 = vpop.f32.mrf.mxu0
      %v1626 = vadd.f32 %v1393, %v1625
      %v1627 = vpop.f32.mrf.mxu0
      %v1628 = vadd.f32 %v1395, %v1627
      %1629 = vmatmul.bf16.gmra.mxu0 %v822
      %v1630 = vpop.f32.mrf.mxu0
      %v1631 = vadd.f32 %v1398, %v1630
      %v1632 = vpop.f32.mrf.mxu0
      %v1633 = vadd.f32 %v1400, %v1632
      %1634 = vmatmul.bf16.gmra.mxu0 %v823
      %v1635 = vpop.f32.mrf.mxu0
      %v1636 = vadd.f32 %v1403, %v1635
      %v1637 = vpop.f32.mrf.mxu0
      %v1638 = vadd.f32 %v1405, %v1637
      %1639 = vmatmul.bf16.gmra.mxu0 %v824
      %v1640 = vpop.f32.mrf.mxu0
      %v1641 = vadd.f32 %v1408, %v1640
      %v1642 = vpop.f32.mrf.mxu0
      %v1643 = vadd.f32 %v1410, %v1642
      %1644 = vmatmul.bf16.gmra.mxu0 %v825
      %v1645 = vpop.f32.mrf.mxu0
      %v1646 = vadd.f32 %v1413, %v1645
      %v1647 = vpop.f32.mrf.mxu0
      %v1648 = vadd.f32 %v1415, %v1647
      %1649 = vmatmul.bf16.gmra.mxu0 %v826
      %v1650 = vpop.f32.mrf.mxu0
      %v1651 = vadd.f32 %v1418, %v1650
      %v1652 = vpop.f32.mrf.mxu0
      %v1653 = vadd.f32 %v1420, %v1652
      %1654 = vmatmul.bf16.gmra.mxu0 %v827
      %v1655 = vpop.f32.mrf.mxu0
      %v1656 = vadd.f32 %v1423, %v1655
      %v1657 = vpop.f32.mrf.mxu0
      %v1658 = vadd.f32 %v1425, %v1657
      %1659 = vmatmul.bf16.gmra.mxu0 %v828
      %v1660 = vpop.f32.mrf.mxu0
      %v1661 = vadd.f32 %v1428, %v1660
      %v1662 = vpop.f32.mrf.mxu0
      %v1663 = vadd.f32 %v1430, %v1662
      %1664 = vdwg.mxu0
      %1665 = vmatpush.bf16.msra.mxu0 %v1543
      %1666 = vmatpush.bf16.msra.mxu0 %v1542
      %1667 = vmatpush.bf16.msra.mxu0 %v1541
      %1668 = vmatpush.bf16.msra.mxu0 %v1540
      %1669 = vmatpush.bf16.msra.mxu0 %v1539
      %1670 = vmatpush.bf16.msra.mxu0 %v1538
      %1671 = vmatpush.bf16.msra.mxu0 %v1537
      %1672 = vmatpush.bf16.msra.mxu0 %v1536
      %1673 = vmatmul.bf16.gmra.mxu0 %v648
      %v1674 = vpop.f32.mrf.mxu0
      %v1675 = vadd.f32 %v1586, %v1674
      %v1676 = vpop.f32.mrf.mxu0
      %v1677 = vadd.f32 %v1588, %v1676
      %1678 = vmatmul.bf16.gmra.mxu0 %v649
      %v1679 = vpop.f32.mrf.mxu0
      %v1680 = vadd.f32 %v1591, %v1679
      %v1681 = vpop.f32.mrf.mxu0
      %v1682 = vadd.f32 %v1593, %v1681
      %1683 = vmatmul.bf16.gmra.mxu0 %v650
      %v1684 = vpop.f32.mrf.mxu0
      %v1685 = vadd.f32 %v1596, %v1684
      %v1686 = vpop.f32.mrf.mxu0
      %v1687 = vadd.f32 %v1598, %v1686
      %1688 = vmatmul.bf16.gmra.mxu0 %v651
      %v1689 = vpop.f32.mrf.mxu0
      %v1690 = vadd.f32 %v1601, %v1689
      %v1691 = vpop.f32.mrf.mxu0
      %v1692 = vadd.f32 %v1603, %v1691
      %1693 = vmatmul.bf16.gmra.mxu0 %v652
      %v1694 = vpop.f32.mrf.mxu0
      %v1695 = vadd.f32 %v1606, %v1694
      %v1696 = vpop.f32.mrf.mxu0
      %v1697 = vadd.f32 %v1608, %v1696
      %1698 = vmatmul.bf16.gmra.mxu0 %v653
      %v1699 = vpop.f32.mrf.mxu0
      %v1700 = vadd.f32 %v1611, %v1699
      %v1701 = vpop.f32.mrf.mxu0
      %v1702 = vadd.f32 %v1613, %v1701
      %1703 = vmatmul.bf16.gmra.mxu0 %v654
      %v1704 = vpop.f32.mrf.mxu0
      %v1705 = vadd.f32 %v1616, %v1704
      %v1706 = vpop.f32.mrf.mxu0
      %v1707 = vadd.f32 %v1618, %v1706
      %1708 = vmatmul.bf16.gmra.mxu0 %v655
      %v1709 = vpop.f32.mrf.mxu0
      %v1710 = vadd.f32 %v1621, %v1709
      %v1711 = vpop.f32.mrf.mxu0
      %v1712 = vadd.f32 %v1623, %v1711
      %1713 = vmatmul.bf16.gmra.mxu0 %v656
      %v1714 = vpop.f32.mrf.mxu0
      %v1715 = vadd.f32 %v1626, %v1714
      %v1716 = vpop.f32.mrf.mxu0
      %v1717 = vadd.f32 %v1628, %v1716
      %1718 = vmatmul.bf16.gmra.mxu0 %v657
      %v1719 = vpop.f32.mrf.mxu0
      %v1720 = vadd.f32 %v1631, %v1719
      %v1721 = vpop.f32.mrf.mxu0
      %v1722 = vadd.f32 %v1633, %v1721
      %1723 = vmatmul.bf16.gmra.mxu0 %v658
      %v1724 = vpop.f32.mrf.mxu0
      %v1725 = vadd.f32 %v1636, %v1724
      %v1726 = vpop.f32.mrf.mxu0
      %v1727 = vadd.f32 %v1638, %v1726
      %1728 = vmatmul.bf16.gmra.mxu0 %v659
      %v1729 = vpop.f32.mrf.mxu0
      %v1730 = vadd.f32 %v1641, %v1729
      %v1731 = vpop.f32.mrf.mxu0
      %v1732 = vadd.f32 %v1643, %v1731
      %1733 = vmatmul.bf16.gmra.mxu0 %v660
      %v1734 = vpop.f32.mrf.mxu0
      %v1735 = vadd.f32 %v1646, %v1734
      %v1736 = vpop.f32.mrf.mxu0
      %v1737 = vadd.f32 %v1648, %v1736
      %1738 = vmatmul.bf16.gmra.mxu0 %v661
      %v1739 = vpop.f32.mrf.mxu0
      %v1740 = vadd.f32 %v1651, %v1739
      %v1741 = vpop.f32.mrf.mxu0
      %v1742 = vadd.f32 %v1653, %v1741
      %1743 = vmatmul.bf16.gmra.mxu0 %v662
      %v1744 = vpop.f32.mrf.mxu0
      %v1745 = vadd.f32 %v1656, %v1744
      %v1746 = vpop.f32.mrf.mxu0
      %v1747 = vadd.f32 %v1658, %v1746
      %1748 = vmatmul.bf16.gmra.mxu0 %v663
      %v1749 = vpop.f32.mrf.mxu0
      %v1750 = vadd.f32 %v1661, %v1749
      %v1751 = vpop.f32.mrf.mxu0
      %v1752 = vadd.f32 %v1663, %v1751
      %1753 = vdwg.mxu0
      %1754 = vmatpush.bf16.msra.mxu0 %v1551
      %1755 = vmatpush.bf16.msra.mxu0 %v1550
      %1756 = vmatpush.bf16.msra.mxu0 %v1549
      %1757 = vmatpush.bf16.msra.mxu0 %v1548
      %1758 = vmatpush.bf16.msra.mxu0 %v1547
      %1759 = vmatpush.bf16.msra.mxu0 %v1546
      %1760 = vmatpush.bf16.msra.mxu0 %v1545
      %1761 = vmatpush.bf16.msra.mxu0 %v1544
      %1762 = vmatmul.bf16.gmra.mxu0 %v888
      %v1763 = vpop.f32.mrf.mxu0
      %v1764 = vadd.f32 %v1675, %v1763
      %v1765 = vpop.f32.mrf.mxu0
      %v1766 = vadd.f32 %v1677, %v1765
      %1767 = vmatmul.bf16.gmra.mxu0 %v889
      %v1768 = vpop.f32.mrf.mxu0
      %v1769 = vadd.f32 %v1680, %v1768
      %v1770 = vpop.f32.mrf.mxu0
      %v1771 = vadd.f32 %v1682, %v1770
      %1772 = vmatmul.bf16.gmra.mxu0 %v890
      %v1773 = vpop.f32.mrf.mxu0
      %v1774 = vadd.f32 %v1685, %v1773
      %v1775 = vpop.f32.mrf.mxu0
      %v1776 = vadd.f32 %v1687, %v1775
      %1777 = vmatmul.bf16.gmra.mxu0 %v891
      %v1778 = vpop.f32.mrf.mxu0
      %v1779 = vadd.f32 %v1690, %v1778
      %v1780 = vpop.f32.mrf.mxu0
      %v1781 = vadd.f32 %v1692, %v1780
      %1782 = vmatmul.bf16.gmra.mxu0 %v892
      %v1783 = vpop.f32.mrf.mxu0
      %v1784 = vadd.f32 %v1695, %v1783
      %v1785 = vpop.f32.mrf.mxu0
      %v1786 = vadd.f32 %v1697, %v1785
      %1787 = vmatmul.bf16.gmra.mxu0 %v893
      %v1788 = vpop.f32.mrf.mxu0
      %v1789 = vadd.f32 %v1700, %v1788
      %v1790 = vpop.f32.mrf.mxu0
      %v1791 = vadd.f32 %v1702, %v1790
      %1792 = vmatmul.bf16.gmra.mxu0 %v894
      %v1793 = vpop.f32.mrf.mxu0
      %v1794 = vadd.f32 %v1705, %v1793
      %v1795 = vpop.f32.mrf.mxu0
      %v1796 = vadd.f32 %v1707, %v1795
      %1797 = vmatmul.bf16.gmra.mxu0 %v895
      %v1798 = vpop.f32.mrf.mxu0
      %v1799 = vadd.f32 %v1710, %v1798
      %v1800 = vpop.f32.mrf.mxu0
      %v1801 = vadd.f32 %v1712, %v1800
      %1802 = vmatmul.bf16.gmra.mxu0 %v896
      %v1803 = vpop.f32.mrf.mxu0
      %v1804 = vadd.f32 %v1715, %v1803
      %v1805 = vpop.f32.mrf.mxu0
      %v1806 = vadd.f32 %v1717, %v1805
      %1807 = vmatmul.bf16.gmra.mxu0 %v897
      %v1808 = vpop.f32.mrf.mxu0
      %v1809 = vadd.f32 %v1720, %v1808
      %v1810 = vpop.f32.mrf.mxu0
      %v1811 = vadd.f32 %v1722, %v1810
      %1812 = vmatmul.bf16.gmra.mxu0 %v898
      %v1813 = vpop.f32.mrf.mxu0
      %v1814 = vadd.f32 %v1725, %v1813
      %v1815 = vpop.f32.mrf.mxu0
      %v1816 = vadd.f32 %v1727, %v1815
      %1817 = vmatmul.bf16.gmra.mxu0 %v899
      %v1818 = vpop.f32.mrf.mxu0
      %v1819 = vadd.f32 %v1730, %v1818
      %v1820 = vpop.f32.mrf.mxu0
      %v1821 = vadd.f32 %v1732, %v1820
      %1822 = vmatmul.bf16.gmra.mxu0 %v900
      %v1823 = vpop.f32.mrf.mxu0
      %v1824 = vadd.f32 %v1735, %v1823
      %v1825 = vpop.f32.mrf.mxu0
      %v1826 = vadd.f32 %v1737, %v1825
      %1827 = vmatmul.bf16.gmra.mxu0 %v901
      %v1828 = vpop.f32.mrf.mxu0
      %v1829 = vadd.f32 %v1740, %v1828
      %v1830 = vpop.f32.mrf.mxu0
      %v1831 = vadd.f32 %v1742, %v1830
      %1832 = vmatmul.bf16.gmra.mxu0 %v902
      %v1833 = vpop.f32.mrf.mxu0
      %v1834 = vadd.f32 %v1745, %v1833
      %v1835 = vpop.f32.mrf.mxu0
      %v1836 = vadd.f32 %v1747, %v1835
      %1837 = vmatmul.bf16.gmra.mxu0 %v903
      %v1838 = vpop.f32.mrf.mxu0
      %v1839 = vadd.f32 %v1750, %v1838
      %v1840 = vpop.f32.mrf.mxu0
      %v1841 = vadd.f32 %v1752, %v1840
      %1842 = vdwg.mxu0
      %s1843 = scalar_lea.vmem %s3, 384
      %v1844 = vld [vmem:[%s1843] sm:$0xf]
      %v1845 = vld [vmem:[%s1843 + $0x4] sm:$0xf]
      %v1846 = vld [vmem:[%s1843 + $0x8] sm:$0xf]
      %v1847 = vld [vmem:[%s1843 + $0xc] sm:$0xf]
      %v1848 = vld [vmem:[%s1843 + $0x10] sm:$0xf]
      %v1849 = vld [vmem:[%s1843 + $0x14] sm:$0xf]
      %v1850 = vld [vmem:[%s1843 + $0x18] sm:$0xf]
      %v1851 = vld [vmem:[%s1843 + $0x1c] sm:$0xf]
      %v1852 = vld [vmem:[%s1843 + $0x20] sm:$0xf]
      %v1853 = vld [vmem:[%s1843 + $0x24] sm:$0xf]
      %v1854 = vld [vmem:[%s1843 + $0x28] sm:$0xf]
      %v1855 = vld [vmem:[%s1843 + $0x2c] sm:$0xf]
      %v1856 = vld [vmem:[%s1843 + $0x30] sm:$0xf]
      %v1857 = vld [vmem:[%s1843 + $0x34] sm:$0xf]
      %v1858 = vld [vmem:[%s1843 + $0x38] sm:$0xf]
      %v1859 = vld [vmem:[%s1843 + $0x3c] sm:$0xf]
      %v1860 = vld [vmem:[%s1843 + $0x40] sm:$0xf]
      %v1861 = vld [vmem:[%s1843 + $0x44] sm:$0xf]
      %v1862 = vld [vmem:[%s1843 + $0x48] sm:$0xf]
      %v1863 = vld [vmem:[%s1843 + $0x4c] sm:$0xf]
      %v1864 = vld [vmem:[%s1843 + $0x50] sm:$0xf]
      %v1865 = vld [vmem:[%s1843 + $0x54] sm:$0xf]
      %v1866 = vld [vmem:[%s1843 + $0x58] sm:$0xf]
      %v1867 = vld [vmem:[%s1843 + $0x5c] sm:$0xf]
      %v1868 = vld [vmem:[%s1843 + $0x60] sm:$0xf]
      %v1869 = vld [vmem:[%s1843 + $0x64] sm:$0xf]
      %v1870 = vld [vmem:[%s1843 + $0x68] sm:$0xf]
      %v1871 = vld [vmem:[%s1843 + $0x6c] sm:$0xf]
      %v1872 = vld [vmem:[%s1843 + $0x70] sm:$0xf]
      %v1873 = vld [vmem:[%s1843 + $0x74] sm:$0xf]
      %v1874 = vld [vmem:[%s1843 + $0x78] sm:$0xf]
      %v1875 = vld [vmem:[%s1843 + $0x7c] sm:$0xf]
      %v1876 = vld [vmem:[%s1843 + $0x80] sm:$0xf]
      %v1877 = vld [vmem:[%s1843 + $0x84] sm:$0xf]
      %v1878 = vld [vmem:[%s1843 + $0x88] sm:$0xf]
      %v1879 = vld [vmem:[%s1843 + $0x8c] sm:$0xf]
      %v1880 = vld [vmem:[%s1843 + $0x90] sm:$0xf]
      %v1881 = vld [vmem:[%s1843 + $0x94] sm:$0xf]
      %v1882 = vld [vmem:[%s1843 + $0x98] sm:$0xf]
      %v1883 = vld [vmem:[%s1843 + $0x9c] sm:$0xf]
      %v1884 = vld [vmem:[%s1843 + $0xa0] sm:$0xf]
      %v1885 = vld [vmem:[%s1843 + $0xa4] sm:$0xf]
      %v1886 = vld [vmem:[%s1843 + $0xa8] sm:$0xf]
      %v1887 = vld [vmem:[%s1843 + $0xac] sm:$0xf]
      %v1888 = vld [vmem:[%s1843 + $0xb0] sm:$0xf]
      %v1889 = vld [vmem:[%s1843 + $0xb4] sm:$0xf]
      %v1890 = vld [vmem:[%s1843 + $0xb8] sm:$0xf]
      %v1891 = vld [vmem:[%s1843 + $0xbc] sm:$0xf]
      %v1940 = vunpack.c.l.b16 %v1844
      %v1941 = vunpack.c.l.b16 %v1845
      %v1942 = vunpack.c.l.b16 %v1846
      %v1943 = vunpack.c.l.b16 %v1847
      %v1944 = vunpack.c.l.b16 %v1848
      %v1945 = vunpack.c.l.b16 %v1849
      %v1946 = vunpack.c.l.b16 %v1850
      %v1947 = vunpack.c.l.b16 %v1851
      %v1948 = vunpack.c.l.b16 %v1852
      %v1949 = vunpack.c.l.b16 %v1853
      %v1950 = vunpack.c.l.b16 %v1854
      %v1951 = vunpack.c.l.b16 %v1855
      %v1952 = vunpack.c.l.b16 %v1856
      %v1953 = vunpack.c.l.b16 %v1857
      %v1954 = vunpack.c.l.b16 %v1858
      %v1955 = vunpack.c.l.b16 %v1859
      %v1956 = vunpack.c.l.b16 %v1860
      %v1957 = vunpack.c.l.b16 %v1861
      %v1958 = vunpack.c.l.b16 %v1862
      %v1959 = vunpack.c.l.b16 %v1863
      %v1960 = vunpack.c.l.b16 %v1864
      %v1961 = vunpack.c.l.b16 %v1865
      %v1962 = vunpack.c.l.b16 %v1866
      %v1963 = vunpack.c.l.b16 %v1867
      %v1964 = vunpack.c.l.b16 %v1868
      %v1965 = vunpack.c.l.b16 %v1869
      %v1966 = vunpack.c.l.b16 %v1870
      %v1967 = vunpack.c.l.b16 %v1871
      %v1968 = vunpack.c.l.b16 %v1872
      %v1969 = vunpack.c.l.b16 %v1873
      %v1970 = vunpack.c.l.b16 %v1874
      %v1971 = vunpack.c.l.b16 %v1875
      %v1972 = vunpack.c.l.b16 %v1876
      %v1973 = vunpack.c.l.b16 %v1877
      %v1974 = vunpack.c.l.b16 %v1878
      %v1975 = vunpack.c.l.b16 %v1879
      %v1976 = vunpack.c.l.b16 %v1880
      %v1977 = vunpack.c.l.b16 %v1881
      %v1978 = vunpack.c.l.b16 %v1882
      %v1979 = vunpack.c.l.b16 %v1883
      %v1980 = vunpack.c.l.b16 %v1884
      %v1981 = vunpack.c.l.b16 %v1885
      %v1982 = vunpack.c.l.b16 %v1886
      %v1983 = vunpack.c.l.b16 %v1887
      %v1984 = vunpack.c.l.b16 %v1888
      %v1985 = vunpack.c.l.b16 %v1889
      %v1986 = vunpack.c.l.b16 %v1890
      %v1987 = vunpack.c.l.b16 %v1891
      %v1988 = vpack.c.b16 %v1941, %v1940
      %v1989 = vpack.c.b16 %v1943, %v1942
      %v1990 = vpack.c.b16 %v1945, %v1944
      %v1991 = vpack.c.b16 %v1947, %v1946
      %v1992 = vpack.c.b16 %v1949, %v1948
      %v1993 = vpack.c.b16 %v1951, %v1950
      %v1994 = vpack.c.b16 %v1953, %v1952
      %v1995 = vpack.c.b16 %v1955, %v1954
      %v1996 = vpack.c.b16 %v1957, %v1956
      %v1997 = vpack.c.b16 %v1959, %v1958
      %v1998 = vpack.c.b16 %v1961, %v1960
      %v1999 = vpack.c.b16 %v1963, %v1962
      %v2000 = vpack.c.b16 %v1965, %v1964
      %v2001 = vpack.c.b16 %v1967, %v1966
      %v2002 = vpack.c.b16 %v1969, %v1968
      %v2003 = vpack.c.b16 %v1971, %v1970
      %v2004 = vpack.c.b16 %v1973, %v1972
      %v2005 = vpack.c.b16 %v1975, %v1974
      %v2006 = vpack.c.b16 %v1977, %v1976
      %v2007 = vpack.c.b16 %v1979, %v1978
      %v2008 = vpack.c.b16 %v1981, %v1980
      %v2009 = vpack.c.b16 %v1983, %v1982
      %v2010 = vpack.c.b16 %v1985, %v1984
      %v2011 = vpack.c.b16 %v1987, %v1986
      %2036 = vmatpush.bf16.msra.mxu0 %v1995
      %2037 = vmatpush.bf16.msra.mxu0 %v1994
      %2038 = vmatpush.bf16.msra.mxu0 %v1993
      %2039 = vmatpush.bf16.msra.mxu0 %v1992
      %2040 = vmatpush.bf16.msra.mxu0 %v1991
      %2041 = vmatpush.bf16.msra.mxu0 %v1990
      %2042 = vmatpush.bf16.msra.mxu0 %v1989
      %2043 = vmatpush.bf16.msra.mxu0 %v1988
      %2044 = vmatmul.bf16.gmra.mxu0 %v815
      %v2045 = vpop.f32.mrf.mxu0
      %v2046 = vadd.f32 0.0, %v2045
      %v2047 = vpop.f32.mrf.mxu0
      %v2048 = vadd.f32 0.0, %v2047
      %2049 = vmatmul.bf16.gmra.mxu0 %v816
      %v2050 = vpop.f32.mrf.mxu0
      %v2051 = vadd.f32 0.0, %v2050
      %v2052 = vpop.f32.mrf.mxu0
      %v2053 = vadd.f32 0.0, %v2052
      %2054 = vmatmul.bf16.gmra.mxu0 %v817
      %v2055 = vpop.f32.mrf.mxu0
      %v2056 = vadd.f32 0.0, %v2055
      %v2057 = vpop.f32.mrf.mxu0
      %v2058 = vadd.f32 0.0, %v2057
      %2059 = vmatmul.bf16.gmra.mxu0 %v818
      %v2060 = vpop.f32.mrf.mxu0
      %v2061 = vadd.f32 0.0, %v2060
      %v2062 = vpop.f32.mrf.mxu0
      %v2063 = vadd.f32 0.0, %v2062
      %2064 = vmatmul.bf16.gmra.mxu0 %v819
      %v2065 = vpop.f32.mrf.mxu0
      %v2066 = vadd.f32 0.0, %v2065
      %v2067 = vpop.f32.mrf.mxu0
      %v2068 = vadd.f32 0.0, %v2067
      %2069 = vmatmul.bf16.gmra.mxu0 %v820
      %v2070 = vpop.f32.mrf.mxu0
      %v2071 = vadd.f32 0.0, %v2070
      %v2072 = vpop.f32.mrf.mxu0
      %v2073 = vadd.f32 0.0, %v2072
      %2074 = vmatmul.bf16.gmra.mxu0 %v821
      %v2075 = vpop.f32.mrf.mxu0
      %v2076 = vadd.f32 0.0, %v2075
      %v2077 = vpop.f32.mrf.mxu0
      %v2078 = vadd.f32 0.0, %v2077
      %2079 = vmatmul.bf16.gmra.mxu0 %v822
      %v2080 = vpop.f32.mrf.mxu0
      %v2081 = vadd.f32 0.0, %v2080
      %v2082 = vpop.f32.mrf.mxu0
      %v2083 = vadd.f32 0.0, %v2082
      %2084 = vmatmul.bf16.gmra.mxu0 %v823
      %v2085 = vpop.f32.mrf.mxu0
      %v2086 = vadd.f32 0.0, %v2085
      %v2087 = vpop.f32.mrf.mxu0
      %v2088 = vadd.f32 0.0, %v2087
      %2089 = vmatmul.bf16.gmra.mxu0 %v824
      %v2090 = vpop.f32.mrf.mxu0
      %v2091 = vadd.f32 0.0, %v2090
      %v2092 = vpop.f32.mrf.mxu0
      %v2093 = vadd.f32 0.0, %v2092
      %2094 = vmatmul.bf16.gmra.mxu0 %v825
      %v2095 = vpop.f32.mrf.mxu0
      %v2096 = vadd.f32 0.0, %v2095
      %v2097 = vpop.f32.mrf.mxu0
      %v2098 = vadd.f32 0.0, %v2097
      %2099 = vmatmul.bf16.gmra.mxu0 %v826
      %v2100 = vpop.f32.mrf.mxu0
      %v2101 = vadd.f32 0.0, %v2100
      %v2102 = vpop.f32.mrf.mxu0
      %v2103 = vadd.f32 0.0, %v2102
      %2104 = vmatmul.bf16.gmra.mxu0 %v827
      %v2105 = vpop.f32.mrf.mxu0
      %v2106 = vadd.f32 0.0, %v2105
      %v2107 = vpop.f32.mrf.mxu0
      %v2108 = vadd.f32 0.0, %v2107
      %2109 = vmatmul.bf16.gmra.mxu0 %v828
      %v2110 = vpop.f32.mrf.mxu0
      %v2111 = vadd.f32 0.0, %v2110
      %v2112 = vpop.f32.mrf.mxu0
      %v2113 = vadd.f32 0.0, %v2112
      %2114 = vmatmul.bf16.gmra.mxu0 %v829
      %v2115 = vpop.f32.mrf.mxu0
      %v2116 = vadd.f32 0.0, %v2115
      %v2117 = vpop.f32.mrf.mxu0
      %v2118 = vadd.f32 0.0, %v2117
      %2119 = vmatmul.bf16.gmra.mxu0 %v830
      %v2120 = vpop.f32.mrf.mxu0
      %v2121 = vadd.f32 0.0, %v2120
      %v2122 = vpop.f32.mrf.mxu0
      %v2123 = vadd.f32 0.0, %v2122
      %2124 = vdwg.mxu0
      %2125 = vmatpush.bf16.msra.mxu0 %v2003
      %2126 = vmatpush.bf16.msra.mxu0 %v2002
      %2127 = vmatpush.bf16.msra.mxu0 %v2001
      %2128 = vmatpush.bf16.msra.mxu0 %v2000
      %2129 = vmatpush.bf16.msra.mxu0 %v1999
      %2130 = vmatpush.bf16.msra.mxu0 %v1998
      %2131 = vmatpush.bf16.msra.mxu0 %v1997
      %2132 = vmatpush.bf16.msra.mxu0 %v1996
      %2133 = vmatmul.bf16.gmra.mxu0 %v650
      %v2134 = vpop.f32.mrf.mxu0
      %v2135 = vadd.f32 %v2046, %v2134
      %v2136 = vpop.f32.mrf.mxu0
      %v2137 = vadd.f32 %v2048, %v2136
      %2138 = vmatmul.bf16.gmra.mxu0 %v651
      %v2139 = vpop.f32.mrf.mxu0
      %v2140 = vadd.f32 %v2051, %v2139
      %v2141 = vpop.f32.mrf.mxu0
      %v2142 = vadd.f32 %v2053, %v2141
      %2143 = vmatmul.bf16.gmra.mxu0 %v652
      %v2144 = vpop.f32.mrf.mxu0
      %v2145 = vadd.f32 %v2056, %v2144
      %v2146 = vpop.f32.mrf.mxu0
      %v2147 = vadd.f32 %v2058, %v2146
      %2148 = vmatmul.bf16.gmra.mxu0 %v653
      %v2149 = vpop.f32.mrf.mxu0
      %v2150 = vadd.f32 %v2061, %v2149
      %v2151 = vpop.f32.mrf.mxu0
      %v2152 = vadd.f32 %v2063, %v2151
      %2153 = vmatmul.bf16.gmra.mxu0 %v654
      %v2154 = vpop.f32.mrf.mxu0
      %v2155 = vadd.f32 %v2066, %v2154
      %v2156 = vpop.f32.mrf.mxu0
      %v2157 = vadd.f32 %v2068, %v2156
      %2158 = vmatmul.bf16.gmra.mxu0 %v655
      %v2159 = vpop.f32.mrf.mxu0
      %v2160 = vadd.f32 %v2071, %v2159
      %v2161 = vpop.f32.mrf.mxu0
      %v2162 = vadd.f32 %v2073, %v2161
      %2163 = vmatmul.bf16.gmra.mxu0 %v656
      %v2164 = vpop.f32.mrf.mxu0
      %v2165 = vadd.f32 %v2076, %v2164
      %v2166 = vpop.f32.mrf.mxu0
      %v2167 = vadd.f32 %v2078, %v2166
      %2168 = vmatmul.bf16.gmra.mxu0 %v657
      %v2169 = vpop.f32.mrf.mxu0
      %v2170 = vadd.f32 %v2081, %v2169
      %v2171 = vpop.f32.mrf.mxu0
      %v2172 = vadd.f32 %v2083, %v2171
      %2173 = vmatmul.bf16.gmra.mxu0 %v658
      %v2174 = vpop.f32.mrf.mxu0
      %v2175 = vadd.f32 %v2086, %v2174
      %v2176 = vpop.f32.mrf.mxu0
      %v2177 = vadd.f32 %v2088, %v2176
      %2178 = vmatmul.bf16.gmra.mxu0 %v659
      %v2179 = vpop.f32.mrf.mxu0
      %v2180 = vadd.f32 %v2091, %v2179
      %v2181 = vpop.f32.mrf.mxu0
      %v2182 = vadd.f32 %v2093, %v2181
      %2183 = vmatmul.bf16.gmra.mxu0 %v660
      %v2184 = vpop.f32.mrf.mxu0
      %v2185 = vadd.f32 %v2096, %v2184
      %v2186 = vpop.f32.mrf.mxu0
      %v2187 = vadd.f32 %v2098, %v2186
      %2188 = vmatmul.bf16.gmra.mxu0 %v661
      %v2189 = vpop.f32.mrf.mxu0
      %v2190 = vadd.f32 %v2101, %v2189
      %v2191 = vpop.f32.mrf.mxu0
      %v2192 = vadd.f32 %v2103, %v2191
      %2193 = vmatmul.bf16.gmra.mxu0 %v662
      %v2194 = vpop.f32.mrf.mxu0
      %v2195 = vadd.f32 %v2106, %v2194
      %v2196 = vpop.f32.mrf.mxu0
      %v2197 = vadd.f32 %v2108, %v2196
      %2198 = vmatmul.bf16.gmra.mxu0 %v663
      %v2199 = vpop.f32.mrf.mxu0
      %v2200 = vadd.f32 %v2111, %v2199
      %v2201 = vpop.f32.mrf.mxu0
      %v2202 = vadd.f32 %v2113, %v2201
      %2203 = vmatmul.bf16.gmra.mxu0 %v664
      %v2204 = vpop.f32.mrf.mxu0
      %v2205 = vadd.f32 %v2116, %v2204
      %v2206 = vpop.f32.mrf.mxu0
      %v2207 = vadd.f32 %v2118, %v2206
      %2208 = vmatmul.bf16.gmra.mxu0 %v665
      %v2209 = vpop.f32.mrf.mxu0
      %v2210 = vadd.f32 %v2121, %v2209
      %v2211 = vpop.f32.mrf.mxu0
      %v2212 = vadd.f32 %v2123, %v2211
      %2213 = vdwg.mxu0
      %2214 = vmatpush.bf16.msra.mxu0 %v2011
      %2215 = vmatpush.bf16.msra.mxu0 %v2010
      %2216 = vmatpush.bf16.msra.mxu0 %v2009
      %2217 = vmatpush.bf16.msra.mxu0 %v2008
      %2218 = vmatpush.bf16.msra.mxu0 %v2007
      %2219 = vmatpush.bf16.msra.mxu0 %v2006
      %2220 = vmatpush.bf16.msra.mxu0 %v2005
      %2221 = vmatpush.bf16.msra.mxu0 %v2004
      %2222 = vmatmul.bf16.gmra.mxu0 %v890
      %v2223 = vpop.f32.mrf.mxu0
      %v2224 = vadd.f32 %v2135, %v2223
      %v2225 = vpop.f32.mrf.mxu0
      %v2226 = vadd.f32 %v2137, %v2225
      %2227 = vmatmul.bf16.gmra.mxu0 %v891
      %v2228 = vpop.f32.mrf.mxu0
      %v2229 = vadd.f32 %v2140, %v2228
      %v2230 = vpop.f32.mrf.mxu0
      %v2231 = vadd.f32 %v2142, %v2230
      %2232 = vmatmul.bf16.gmra.mxu0 %v892
      %v2233 = vpop.f32.mrf.mxu0
      %v2234 = vadd.f32 %v2145, %v2233
      %v2235 = vpop.f32.mrf.mxu0
      %v2236 = vadd.f32 %v2147, %v2235
      %2237 = vmatmul.bf16.gmra.mxu0 %v893
      %v2238 = vpop.f32.mrf.mxu0
      %v2239 = vadd.f32 %v2150, %v2238
      %v2240 = vpop.f32.mrf.mxu0
      %v2241 = vadd.f32 %v2152, %v2240
      %2242 = vmatmul.bf16.gmra.mxu0 %v894
      %v2243 = vpop.f32.mrf.mxu0
      %v2244 = vadd.f32 %v2155, %v2243
      %v2245 = vpop.f32.mrf.mxu0
      %v2246 = vadd.f32 %v2157, %v2245
      %2247 = vmatmul.bf16.gmra.mxu0 %v895
      %v2248 = vpop.f32.mrf.mxu0
      %v2249 = vadd.f32 %v2160, %v2248
      %v2250 = vpop.f32.mrf.mxu0
      %v2251 = vadd.f32 %v2162, %v2250
      %2252 = vmatmul.bf16.gmra.mxu0 %v896
      %v2253 = vpop.f32.mrf.mxu0
      %v2254 = vadd.f32 %v2165, %v2253
      %v2255 = vpop.f32.mrf.mxu0
      %v2256 = vadd.f32 %v2167, %v2255
      %2257 = vmatmul.bf16.gmra.mxu0 %v897
      %v2258 = vpop.f32.mrf.mxu0
      %v2259 = vadd.f32 %v2170, %v2258
      %v2260 = vpop.f32.mrf.mxu0
      %v2261 = vadd.f32 %v2172, %v2260
      %2262 = vmatmul.bf16.gmra.mxu0 %v898
      %v2263 = vpop.f32.mrf.mxu0
      %v2264 = vadd.f32 %v2175, %v2263
      %v2265 = vpop.f32.mrf.mxu0
      %v2266 = vadd.f32 %v2177, %v2265
      %2267 = vmatmul.bf16.gmra.mxu0 %v899
      %v2268 = vpop.f32.mrf.mxu0
      %v2269 = vadd.f32 %v2180, %v2268
      %v2270 = vpop.f32.mrf.mxu0
      %v2271 = vadd.f32 %v2182, %v2270
      %2272 = vmatmul.bf16.gmra.mxu0 %v900
      %v2273 = vpop.f32.mrf.mxu0
      %v2274 = vadd.f32 %v2185, %v2273
      %v2275 = vpop.f32.mrf.mxu0
      %v2276 = vadd.f32 %v2187, %v2275
      %2277 = vmatmul.bf16.gmra.mxu0 %v901
      %v2278 = vpop.f32.mrf.mxu0
      %v2279 = vadd.f32 %v2190, %v2278
      %v2280 = vpop.f32.mrf.mxu0
      %v2281 = vadd.f32 %v2192, %v2280
      %2282 = vmatmul.bf16.gmra.mxu0 %v902
      %v2283 = vpop.f32.mrf.mxu0
      %v2284 = vadd.f32 %v2195, %v2283
      %v2285 = vpop.f32.mrf.mxu0
      %v2286 = vadd.f32 %v2197, %v2285
      %2287 = vmatmul.bf16.gmra.mxu0 %v903
      %v2288 = vpop.f32.mrf.mxu0
      %v2289 = vadd.f32 %v2200, %v2288
      %v2290 = vpop.f32.mrf.mxu0
      %v2291 = vadd.f32 %v2202, %v2290
      %2292 = vmatmul.bf16.gmra.mxu0 %v904
      %v2293 = vpop.f32.mrf.mxu0
      %v2294 = vadd.f32 %v2205, %v2293
      %v2295 = vpop.f32.mrf.mxu0
      %v2296 = vadd.f32 %v2207, %v2295
      %2297 = vmatmul.bf16.gmra.mxu0 %v905
      %v2298 = vpop.f32.mrf.mxu0
      %v2299 = vadd.f32 %v2210, %v2298
      %v2300 = vpop.f32.mrf.mxu0
      %v2301 = vadd.f32 %v2212, %v2300
      %2302 = vdwg.mxu0
      %v2303 = vadd.f32 %v1764, %v2224
      %v2304 = vadd.f32 %v1766, %v2226
      %v2305 = vadd.f32 %v1769, %v2229
      %v2306 = vadd.f32 %v1771, %v2231
      %v2307 = vadd.f32 %v1774, %v2234
      %v2308 = vadd.f32 %v1776, %v2236
      %v2309 = vadd.f32 %v1779, %v2239
      %v2310 = vadd.f32 %v1781, %v2241
      %v2311 = vadd.f32 %v1784, %v2244
      %v2312 = vadd.f32 %v1786, %v2246
      %v2313 = vadd.f32 %v1789, %v2249
      %v2314 = vadd.f32 %v1791, %v2251
      %v2315 = vadd.f32 %v1794, %v2254
      %v2316 = vadd.f32 %v1796, %v2256
      %v2317 = vadd.f32 %v1799, %v2259
      %v2318 = vadd.f32 %v1801, %v2261
      %v2319 = vadd.f32 %v1804, %v2264
      %v2320 = vadd.f32 %v1806, %v2266
      %v2321 = vadd.f32 %v1809, %v2269
      %v2322 = vadd.f32 %v1811, %v2271
      %v2323 = vadd.f32 %v1814, %v2274
      %v2324 = vadd.f32 %v1816, %v2276
      %v2325 = vadd.f32 %v1819, %v2279
      %v2326 = vadd.f32 %v1821, %v2281
      %v2327 = vadd.f32 %v1824, %v2284
      %v2328 = vadd.f32 %v1826, %v2286
      %v2329 = vadd.f32 %v1829, %v2289
      %v2330 = vadd.f32 %v1831, %v2291
      %v2331 = vadd.f32 %v1834, %v2294
      %v2332 = vadd.f32 %v1836, %v2296
      %v2333 = vadd.f32 %v1839, %v2299
      %v2334 = vadd.f32 %v1841, %v2301
      %v2335 = vpack.c.bf16 %v2303, %v2303
      %v2336 = vpack.c.bf16 %v2304, %v2304
      %v2337 = vpack.c.bf16 %v2305, %v2305
      %v2338 = vpack.c.bf16 %v2306, %v2306
      %v2339 = vpack.c.bf16 %v2307, %v2307
      %v2340 = vpack.c.bf16 %v2308, %v2308
      %v2341 = vpack.c.bf16 %v2309, %v2309
      %v2342 = vpack.c.bf16 %v2310, %v2310
      %v2343 = vpack.c.bf16 %v2311, %v2311
      %v2344 = vpack.c.bf16 %v2312, %v2312
      %v2345 = vpack.c.bf16 %v2313, %v2313
      %v2346 = vpack.c.bf16 %v2314, %v2314
      %v2347 = vpack.c.bf16 %v2315, %v2315
      %v2348 = vpack.c.bf16 %v2316, %v2316
      %v2349 = vpack.c.bf16 %v2317, %v2317
      %v2350 = vpack.c.bf16 %v2318, %v2318
      %v2351 = vpack.c.bf16 %v2319, %v2319
      %v2352 = vpack.c.bf16 %v2320, %v2320
      %v2353 = vpack.c.bf16 %v2321, %v2321
      %v2354 = vpack.c.bf16 %v2322, %v2322
      %v2355 = vpack.c.bf16 %v2323, %v2323
      %v2356 = vpack.c.bf16 %v2324, %v2324
      %v2357 = vpack.c.bf16 %v2325, %v2325
      %v2358 = vpack.c.bf16 %v2326, %v2326
      %v2359 = vpack.c.bf16 %v2327, %v2327
      %v2360 = vpack.c.bf16 %v2328, %v2328
      %v2361 = vpack.c.bf16 %v2329, %v2329
      %v2362 = vpack.c.bf16 %v2330, %v2330
      %v2363 = vpack.c.bf16 %v2331, %v2331
      %v2364 = vpack.c.bf16 %v2332, %v2332
      %v2365 = vpack.c.bf16 %v2333, %v2333
      %v2366 = vpack.c.bf16 %v2334, %v2334
      %2367 = vst [vmem:[%s471] sm:$0xf] %v2335
      %2368 = vst [vmem:[%s471 + $0x4] sm:$0xf] %v2336
      %2369 = vst [vmem:[%s471 + $0x8] sm:$0xf] %v2337
      %2370 = vst [vmem:[%s471 + $0xc] sm:$0xf] %v2338
      %2371 = vst [vmem:[%s471 + $0x10] sm:$0xf] %v2339
      %2372 = vst [vmem:[%s471 + $0x14] sm:$0xf] %v2340
      %2373 = vst [vmem:[%s471 + $0x18] sm:$0xf] %v2341
      %2374 = vst [vmem:[%s471 + $0x1c] sm:$0xf] %v2342
      %2375 = vst [vmem:[%s471 + $0x20] sm:$0xf] %v2343
      %2376 = vst [vmem:[%s471 + $0x24] sm:$0xf] %v2344
      %2377 = vst [vmem:[%s471 + $0x28] sm:$0xf] %v2345
      %2378 = vst [vmem:[%s471 + $0x2c] sm:$0xf] %v2346
      %2379 = vst [vmem:[%s471 + $0x30] sm:$0xf] %v2347
      %2380 = vst [vmem:[%s471 + $0x34] sm:$0xf] %v2348
      %2381 = vst [vmem:[%s471 + $0x38] sm:$0xf] %v2349
      %2382 = vst [vmem:[%s471 + $0x3c] sm:$0xf] %v2350
      %2383 = vst [vmem:[%s471 + $0x40] sm:$0xf] %v2351
      %2384 = vst [vmem:[%s471 + $0x44] sm:$0xf] %v2352
      %2385 = vst [vmem:[%s471 + $0x48] sm:$0xf] %v2353
      %2386 = vst [vmem:[%s471 + $0x4c] sm:$0xf] %v2354
      %2387 = vst [vmem:[%s471 + $0x50] sm:$0xf] %v2355
      %2388 = vst [vmem:[%s471 + $0x54] sm:$0xf] %v2356
      %2389 = vst [vmem:[%s471 + $0x58] sm:$0xf] %v2357
      %2390 = vst [vmem:[%s471 + $0x5c] sm:$0xf] %v2358
      %2391 = vst [vmem:[%s471 + $0x60] sm:$0xf] %v2359
      %2392 = vst [vmem:[%s471 + $0x64] sm:$0xf] %v2360
      %2393 = vst [vmem:[%s471 + $0x68] sm:$0xf] %v2361
      %2394 = vst [vmem:[%s471 + $0x6c] sm:$0xf] %v2362
      %2395 = vst [vmem:[%s471 + $0x70] sm:$0xf] %v2363
      %2396 = vst [vmem:[%s471 + $0x74] sm:$0xf] %v2364
      %2397 = vst [vmem:[%s471 + $0x78] sm:$0xf] %v2365
      %2398 = vst [vmem:[%s471 + $0x7c] sm:$0xf] %v2366
      %v2399 = vld [vmem:[%s4] sm:$0xf]
      %v2400 = vld [vmem:[%s4 + $0x4] sm:$0xf]
      %v2401 = vld [vmem:[%s4 + $0x8] sm:$0xf]
      %v2402 = vld [vmem:[%s4 + $0xc] sm:$0xf]
      %v2403 = vld [vmem:[%s4 + $0x10] sm:$0xf]
      %v2404 = vld [vmem:[%s4 + $0x14] sm:$0xf]
      %v2405 = vld [vmem:[%s4 + $0x18] sm:$0xf]
      %v2406 = vld [vmem:[%s4 + $0x1c] sm:$0xf]
      %v2407 = vld [vmem:[%s4 + $0x20] sm:$0xf]
      %v2408 = vld [vmem:[%s4 + $0x24] sm:$0xf]
      %v2409 = vld [vmem:[%s4 + $0x28] sm:$0xf]
      %v2410 = vld [vmem:[%s4 + $0x2c] sm:$0xf]
      %v2411 = vld [vmem:[%s4 + $0x30] sm:$0xf]
      %v2412 = vld [vmem:[%s4 + $0x34] sm:$0xf]
      %v2413 = vld [vmem:[%s4 + $0x38] sm:$0xf]
      %v2414 = vld [vmem:[%s4 + $0x3c] sm:$0xf]
      %v2431 = vunpack.c.l.b16 %v2399
      %v2432 = vunpack.c.l.b16 %v2400
      %v2433 = vunpack.c.l.b16 %v2401
      %v2434 = vunpack.c.l.b16 %v2402
      %v2435 = vunpack.c.l.b16 %v2403
      %v2436 = vunpack.c.l.b16 %v2404
      %v2437 = vunpack.c.l.b16 %v2405
      %v2438 = vunpack.c.l.b16 %v2406
      %v2439 = vunpack.c.l.b16 %v2407
      %v2440 = vunpack.c.l.b16 %v2408
      %v2441 = vunpack.c.l.b16 %v2409
      %v2442 = vunpack.c.l.b16 %v2410
      %v2443 = vunpack.c.l.b16 %v2411
      %v2444 = vunpack.c.l.b16 %v2412
      %v2445 = vunpack.c.l.b16 %v2413
      %v2446 = vunpack.c.l.b16 %v2414
      %v2447 = vpack.c.b16 %v2432, %v2431
      %v2448 = vpack.c.b16 %v2434, %v2433
      %v2449 = vpack.c.b16 %v2436, %v2435
      %v2450 = vpack.c.b16 %v2438, %v2437
      %v2451 = vpack.c.b16 %v2440, %v2439
      %v2452 = vpack.c.b16 %v2442, %v2441
      %v2453 = vpack.c.b16 %v2444, %v2443
      %v2454 = vpack.c.b16 %v2446, %v2445
      %2463 = vmatpush.bf16.msra.mxu0 %v2454
      %2464 = vmatpush.bf16.msra.mxu0 %v2453
      %2465 = vmatpush.bf16.msra.mxu0 %v2452
      %2466 = vmatpush.bf16.msra.mxu0 %v2451
      %2467 = vmatpush.bf16.msra.mxu0 %v2450
      %2468 = vmatpush.bf16.msra.mxu0 %v2449
      %2469 = vmatpush.bf16.msra.mxu0 %v2448
      %2470 = vmatpush.bf16.msra.mxu0 %v2447
      %2471 = vmatmul.bf16.gmra.mxu0 %v649
      %v2472 = vpop.f32.mrf.mxu0
      %v2473 = vadd.f32 0.0, %v2472
      %v2474 = vpop.f32.mrf.mxu0
      %v2475 = vadd.f32 0.0, %v2474
      %2476 = vmatmul.bf16.gmra.mxu0 %v650
      %v2477 = vpop.f32.mrf.mxu0
      %v2478 = vadd.f32 0.0, %v2477
      %v2479 = vpop.f32.mrf.mxu0
      %v2480 = vadd.f32 0.0, %v2479
      %2481 = vmatmul.bf16.gmra.mxu0 %v651
      %v2482 = vpop.f32.mrf.mxu0
      %v2483 = vadd.f32 0.0, %v2482
      %v2484 = vpop.f32.mrf.mxu0
      %v2485 = vadd.f32 0.0, %v2484
      %2486 = vmatmul.bf16.gmra.mxu0 %v652
      %v2487 = vpop.f32.mrf.mxu0
      %v2488 = vadd.f32 0.0, %v2487
      %v2489 = vpop.f32.mrf.mxu0
      %v2490 = vadd.f32 0.0, %v2489
      %2491 = vmatmul.bf16.gmra.mxu0 %v653
      %v2492 = vpop.f32.mrf.mxu0
      %v2493 = vadd.f32 0.0, %v2492
      %v2494 = vpop.f32.mrf.mxu0
      %v2495 = vadd.f32 0.0, %v2494
      %2496 = vmatmul.bf16.gmra.mxu0 %v654
      %v2497 = vpop.f32.mrf.mxu0
      %v2498 = vadd.f32 0.0, %v2497
      %v2499 = vpop.f32.mrf.mxu0
      %v2500 = vadd.f32 0.0, %v2499
      %2501 = vmatmul.bf16.gmra.mxu0 %v655
      %v2502 = vpop.f32.mrf.mxu0
      %v2503 = vadd.f32 0.0, %v2502
      %v2504 = vpop.f32.mrf.mxu0
      %v2505 = vadd.f32 0.0, %v2504
      %2506 = vmatmul.bf16.gmra.mxu0 %v656
      %v2507 = vpop.f32.mrf.mxu0
      %v2508 = vadd.f32 0.0, %v2507
      %v2509 = vpop.f32.mrf.mxu0
      %v2510 = vadd.f32 0.0, %v2509
      %2511 = vmatmul.bf16.gmra.mxu0 %v657
      %v2512 = vpop.f32.mrf.mxu0
      %v2513 = vadd.f32 0.0, %v2512
      %v2514 = vpop.f32.mrf.mxu0
      %v2515 = vadd.f32 0.0, %v2514
      %2516 = vmatmul.bf16.gmra.mxu0 %v658
      %v2517 = vpop.f32.mrf.mxu0
      %v2518 = vadd.f32 0.0, %v2517
      %v2519 = vpop.f32.mrf.mxu0
      %v2520 = vadd.f32 0.0, %v2519
      %2521 = vmatmul.bf16.gmra.mxu0 %v659
      %v2522 = vpop.f32.mrf.mxu0
      %v2523 = vadd.f32 0.0, %v2522
      %v2524 = vpop.f32.mrf.mxu0
      %v2525 = vadd.f32 0.0, %v2524
      %2526 = vmatmul.bf16.gmra.mxu0 %v660
      %v2527 = vpop.f32.mrf.mxu0
      %v2528 = vadd.f32 0.0, %v2527
      %v2529 = vpop.f32.mrf.mxu0
      %v2530 = vadd.f32 0.0, %v2529
      %2531 = vmatmul.bf16.gmra.mxu0 %v661
      %v2532 = vpop.f32.mrf.mxu0
      %v2533 = vadd.f32 0.0, %v2532
      %v2534 = vpop.f32.mrf.mxu0
      %v2535 = vadd.f32 0.0, %v2534
      %2536 = vmatmul.bf16.gmra.mxu0 %v662
      %v2537 = vpop.f32.mrf.mxu0
      %v2538 = vadd.f32 0.0, %v2537
      %v2539 = vpop.f32.mrf.mxu0
      %v2540 = vadd.f32 0.0, %v2539
      %2541 = vmatmul.bf16.gmra.mxu0 %v663
      %v2542 = vpop.f32.mrf.mxu0
      %v2543 = vadd.f32 0.0, %v2542
      %v2544 = vpop.f32.mrf.mxu0
      %v2545 = vadd.f32 0.0, %v2544
      %2546 = vmatmul.bf16.gmra.mxu0 %v664
      %v2547 = vpop.f32.mrf.mxu0
      %v2548 = vadd.f32 0.0, %v2547
      %v2549 = vpop.f32.mrf.mxu0
      %v2550 = vadd.f32 0.0, %v2549
      %2551 = vdwg.mxu0
      %v2552 = vpack.c.bf16 %v2473, %v2473
      %v2553 = vpack.c.bf16 %v2475, %v2475
      %v2554 = vpack.c.bf16 %v2478, %v2478
      %v2555 = vpack.c.bf16 %v2480, %v2480
      %v2556 = vpack.c.bf16 %v2483, %v2483
      %v2557 = vpack.c.bf16 %v2485, %v2485
      %v2558 = vpack.c.bf16 %v2488, %v2488
      %v2559 = vpack.c.bf16 %v2490, %v2490
      %v2560 = vpack.c.bf16 %v2493, %v2493
      %v2561 = vpack.c.bf16 %v2495, %v2495
      %v2562 = vpack.c.bf16 %v2498, %v2498
      %v2563 = vpack.c.bf16 %v2500, %v2500
      %v2564 = vpack.c.bf16 %v2503, %v2503
      %v2565 = vpack.c.bf16 %v2505, %v2505
      %v2566 = vpack.c.bf16 %v2508, %v2508
      %v2567 = vpack.c.bf16 %v2510, %v2510
      %v2568 = vpack.c.bf16 %v2513, %v2513
      %v2569 = vpack.c.bf16 %v2515, %v2515
      %v2570 = vpack.c.bf16 %v2518, %v2518
      %v2571 = vpack.c.bf16 %v2520, %v2520
      %v2572 = vpack.c.bf16 %v2523, %v2523
      %v2573 = vpack.c.bf16 %v2525, %v2525
      %v2574 = vpack.c.bf16 %v2528, %v2528
      %v2575 = vpack.c.bf16 %v2530, %v2530
      %v2576 = vpack.c.bf16 %v2533, %v2533
      %v2577 = vpack.c.bf16 %v2535, %v2535
      %v2578 = vpack.c.bf16 %v2538, %v2538
      %v2579 = vpack.c.bf16 %v2540, %v2540
      %v2580 = vpack.c.bf16 %v2543, %v2543
      %v2581 = vpack.c.bf16 %v2545, %v2545
      %v2582 = vpack.c.bf16 %v2548, %v2548
      %v2583 = vpack.c.bf16 %v2550, %v2550
      %2584 = vst [vmem:[%s482] sm:$0xf] %v2552
      %2585 = vst [vmem:[%s482 + $0x4] sm:$0xf] %v2553
      %2586 = vst [vmem:[%s482 + $0x8] sm:$0xf] %v2554
      %2587 = vst [vmem:[%s482 + $0xc] sm:$0xf] %v2555
      %2588 = vst [vmem:[%s482 + $0x10] sm:$0xf] %v2556
      %2589 = vst [vmem:[%s482 + $0x14] sm:$0xf] %v2557
      %2590 = vst [vmem:[%s482 + $0x18] sm:$0xf] %v2558
      %2591 = vst [vmem:[%s482 + $0x1c] sm:$0xf] %v2559
      %2592 = vst [vmem:[%s482 + $0x20] sm:$0xf] %v2560
      %2593 = vst [vmem:[%s482 + $0x24] sm:$0xf] %v2561
      %2594 = vst [vmem:[%s482 + $0x28] sm:$0xf] %v2562
      %2595 = vst [vmem:[%s482 + $0x2c] sm:$0xf] %v2563
      %2596 = vst [vmem:[%s482 + $0x30] sm:$0xf] %v2564
      %2597 = vst [vmem:[%s482 + $0x34] sm:$0xf] %v2565
      %2598 = vst [vmem:[%s482 + $0x38] sm:$0xf] %v2566
      %2599 = vst [vmem:[%s482 + $0x3c] sm:$0xf] %v2567
      %2600 = vst [vmem:[%s482 + $0x40] sm:$0xf] %v2568
      %2601 = vst [vmem:[%s482 + $0x44] sm:$0xf] %v2569
      %2602 = vst [vmem:[%s482 + $0x48] sm:$0xf] %v2570
      %2603 = vst [vmem:[%s482 + $0x4c] sm:$0xf] %v2571
      %2604 = vst [vmem:[%s482 + $0x50] sm:$0xf] %v2572
      %2605 = vst [vmem:[%s482 + $0x54] sm:$0xf] %v2573
      %2606 = vst [vmem:[%s482 + $0x58] sm:$0xf] %v2574
      %2607 = vst [vmem:[%s482 + $0x5c] sm:$0xf] %v2575
      %2608 = vst [vmem:[%s482 + $0x60] sm:$0xf] %v2576
      %2609 = vst [vmem:[%s482 + $0x64] sm:$0xf] %v2577
      %2610 = vst [vmem:[%s482 + $0x68] sm:$0xf] %v2578
      %2611 = vst [vmem:[%s482 + $0x6c] sm:$0xf] %v2579
      %2612 = vst [vmem:[%s482 + $0x70] sm:$0xf] %v2580
      %2613 = vst [vmem:[%s482 + $0x74] sm:$0xf] %v2581
      %2614 = vst [vmem:[%s482 + $0x78] sm:$0xf] %v2582
      %2615 = vst [vmem:[%s482 + $0x7c] sm:$0xf] %v2583
      %v2616 = vadd.f32 %v2303, %v2304
      %v2617 = vadd.f32 %v2616, %v2305
      %v2618 = vadd.f32 %v2617, %v2306
      %v2619 = vadd.f32 %v2618, %v2307
      %v2620 = vadd.f32 %v2619, %v2308
      %v2621 = vadd.f32 %v2620, %v2309
      %v2622 = vadd.f32 %v2621, %v2310
      %v2623 = vadd.f32 %v2622, %v2311
      %v2624 = vadd.f32 %v2623, %v2312
      %v2625 = vadd.f32 %v2624, %v2313
      %v2626 = vadd.f32 %v2625, %v2314
      %v2627 = vadd.f32 %v2626, %v2315
      %v2628 = vadd.f32 %v2627, %v2316
      %v2629 = vadd.f32 %v2628, %v2317
      %v2630 = vadd.f32 %v2629, %v2318
      %v2631 = vadd.f32 %v2630, %v2319
      %v2632 = vadd.f32 %v2631, %v2320
      %v2633 = vadd.f32 %v2632, %v2321
      %v2634 = vadd.f32 %v2633, %v2322
      %v2635 = vadd.f32 %v2634, %v2323
      %v2636 = vadd.f32 %v2635, %v2324
      %v2637 = vadd.f32 %v2636, %v2325
      %v2638 = vadd.f32 %v2637, %v2326
      %v2639 = vadd.f32 %v2638, %v2327
      %v2640 = vadd.f32 %v2639, %v2328
      %v2641 = vadd.f32 %v2640, %v2329
      %v2642 = vadd.f32 %v2641, %v2330
      %v2643 = vadd.f32 %v2642, %v2331
      %v2644 = vadd.f32 %v2643, %v2332
      %v2645 = vadd.f32 %v2644, %v2333
      %v2646 = vadd.f32 %v2645, %v2334
      %v2647 = vrot.slane %v2646, 4
      %v2648 = vadd.f32 %v2646, %v2647
      %v2649 = vrot.slane %v2648, 2
      %v2650 = vadd.f32 %v2648, %v2649
      %v2651 = vrot.slane %v2650, 1
      %v2652 = vadd.f32 %v2650, %v2651
      %v2653 = vmul.f32 %v2303, %v2303
      %v2654 = vmul.f32 %v2304, %v2304
      %v2655 = vmul.f32 %v2305, %v2305
      %v2656 = vmul.f32 %v2306, %v2306
      %v2657 = vmul.f32 %v2307, %v2307
      %v2658 = vmul.f32 %v2308, %v2308
      %v2659 = vmul.f32 %v2309, %v2309
      %v2660 = vmul.f32 %v2310, %v2310
      %v2661 = vmul.f32 %v2311, %v2311
      %v2662 = vmul.f32 %v2312, %v2312
      %v2663 = vmul.f32 %v2313, %v2313
      %v2664 = vmul.f32 %v2314, %v2314
      %v2665 = vmul.f32 %v2315, %v2315
      %v2666 = vmul.f32 %v2316, %v2316
      %v2667 = vmul.f32 %v2317, %v2317
      %v2668 = vmul.f32 %v2318, %v2318
      %v2669 = vmul.f32 %v2319, %v2319
      %v2670 = vmul.f32 %v2320, %v2320
      %v2671 = vmul.f32 %v2321, %v2321
      %v2672 = vmul.f32 %v2322, %v2322
      %v2673 = vmul.f32 %v2323, %v2323
      %v2674 = vmul.f32 %v2324, %v2324
      %v2675 = vmul.f32 %v2325, %v2325
      %v2676 = vmul.f32 %v2326, %v2326
      %v2677 = vmul.f32 %v2327, %v2327
      %v2678 = vmul.f32 %v2328, %v2328
      %v2679 = vmul.f32 %v2329, %v2329
      %v2680 = vmul.f32 %v2330, %v2330
      %v2681 = vmul.f32 %v2331, %v2331
      %v2682 = vmul.f32 %v2332, %v2332
      %v2683 = vmul.f32 %v2333, %v2333
      %v2684 = vmul.f32 %v2334, %v2334
      %v2685 = vadd.f32 %v2653, %v2654
      %v2686 = vadd.f32 %v2685, %v2655
      %v2687 = vadd.f32 %v2686, %v2656
      %v2688 = vadd.f32 %v2687, %v2657
      %v2689 = vadd.f32 %v2688, %v2658
      %v2690 = vadd.f32 %v2689, %v2659
      %v2691 = vadd.f32 %v2690, %v2660
      %v2692 = vadd.f32 %v2691, %v2661
      %v2693 = vadd.f32 %v2692, %v2662
      %v2694 = vadd.f32 %v2693, %v2663
      %v2695 = vadd.f32 %v2694, %v2664
      %v2696 = vadd.f32 %v2695, %v2665
      %v2697 = vadd.f32 %v2696, %v2666
      %v2698 = vadd.f32 %v2697, %v2667
      %v2699 = vadd.f32 %v2698, %v2668
      %v2700 = vadd.f32 %v2699, %v2669
      %v2701 = vadd.f32 %v2700, %v2670
      %v2702 = vadd.f32 %v2701, %v2671
      %v2703 = vadd.f32 %v2702, %v2672
      %v2704 = vadd.f32 %v2703, %v2673
      %v2705 = vadd.f32 %v2704, %v2674
      %v2706 = vadd.f32 %v2705, %v2675
      %v2707 = vadd.f32 %v2706, %v2676
      %v2708 = vadd.f32 %v2707, %v2677
      %v2709 = vadd.f32 %v2708, %v2678
      %v2710 = vadd.f32 %v2709, %v2679
      %v2711 = vadd.f32 %v2710, %v2680
      %v2712 = vadd.f32 %v2711, %v2681
      %v2713 = vadd.f32 %v2712, %v2682
      %v2714 = vadd.f32 %v2713, %v2683
      %v2715 = vadd.f32 %v2714, %v2684
      %v2716 = vrot.slane %v2715, 4
      %v2717 = vadd.f32 %v2715, %v2716
      %v2718 = vrot.slane %v2717, 2
      %v2719 = vadd.f32 %v2717, %v2718
      %v2720 = vrot.slane %v2719, 1
      %v2721 = vadd.f32 %v2719, %v2720
      %v2722 = vadd.f32 %v2473, %v2475
      %v2723 = vadd.f32 %v2722, %v2478
      %v2724 = vadd.f32 %v2723, %v2480
      %v2725 = vadd.f32 %v2724, %v2483
      %v2726 = vadd.f32 %v2725, %v2485
      %v2727 = vadd.f32 %v2726, %v2488
      %v2728 = vadd.f32 %v2727, %v2490
      %v2729 = vadd.f32 %v2728, %v2493
      %v2730 = vadd.f32 %v2729, %v2495
      %v2731 = vadd.f32 %v2730, %v2498
      %v2732 = vadd.f32 %v2731, %v2500
      %v2733 = vadd.f32 %v2732, %v2503
      %v2734 = vadd.f32 %v2733, %v2505
      %v2735 = vadd.f32 %v2734, %v2508
      %v2736 = vadd.f32 %v2735, %v2510
      %v2737 = vadd.f32 %v2736, %v2513
      %v2738 = vadd.f32 %v2737, %v2515
      %v2739 = vadd.f32 %v2738, %v2518
      %v2740 = vadd.f32 %v2739, %v2520
      %v2741 = vadd.f32 %v2740, %v2523
      %v2742 = vadd.f32 %v2741, %v2525
      %v2743 = vadd.f32 %v2742, %v2528
      %v2744 = vadd.f32 %v2743, %v2530
      %v2745 = vadd.f32 %v2744, %v2533
      %v2746 = vadd.f32 %v2745, %v2535
      %v2747 = vadd.f32 %v2746, %v2538
      %v2748 = vadd.f32 %v2747, %v2540
      %v2749 = vadd.f32 %v2748, %v2543
      %v2750 = vadd.f32 %v2749, %v2545
      %v2751 = vadd.f32 %v2750, %v2548
      %v2752 = vadd.f32 %v2751, %v2550
      %v2753 = vrot.slane %v2752, 4
      %v2754 = vadd.f32 %v2752, %v2753
      %v2755 = vrot.slane %v2754, 2
      %v2756 = vadd.f32 %v2754, %v2755
      %v2757 = vrot.slane %v2756, 1
      %v2758 = vadd.f32 %v2756, %v2757
      %v2759 = vmul.f32 %v2473, %v2473
      %v2760 = vmul.f32 %v2475, %v2475
      %v2761 = vmul.f32 %v2478, %v2478
      %v2762 = vmul.f32 %v2480, %v2480
      %v2763 = vmul.f32 %v2483, %v2483
      %v2764 = vmul.f32 %v2485, %v2485
      %v2765 = vmul.f32 %v2488, %v2488
      %v2766 = vmul.f32 %v2490, %v2490
      %v2767 = vmul.f32 %v2493, %v2493
      %v2768 = vmul.f32 %v2495, %v2495
      %v2769 = vmul.f32 %v2498, %v2498
      %v2770 = vmul.f32 %v2500, %v2500
      %v2771 = vmul.f32 %v2503, %v2503
      %v2772 = vmul.f32 %v2505, %v2505
      %v2773 = vmul.f32 %v2508, %v2508
      %v2774 = vmul.f32 %v2510, %v2510
      %v2775 = vmul.f32 %v2513, %v2513
      %v2776 = vmul.f32 %v2515, %v2515
      %v2777 = vmul.f32 %v2518, %v2518
      %v2778 = vmul.f32 %v2520, %v2520
      %v2779 = vmul.f32 %v2523, %v2523
      %v2780 = vmul.f32 %v2525, %v2525
      %v2781 = vmul.f32 %v2528, %v2528
      %v2782 = vmul.f32 %v2530, %v2530
      %v2783 = vmul.f32 %v2533, %v2533
      %v2784 = vmul.f32 %v2535, %v2535
      %v2785 = vmul.f32 %v2538, %v2538
      %v2786 = vmul.f32 %v2540, %v2540
      %v2787 = vmul.f32 %v2543, %v2543
      %v2788 = vmul.f32 %v2545, %v2545
      %v2789 = vmul.f32 %v2548, %v2548
      %v2790 = vmul.f32 %v2550, %v2550
      %v2791 = vadd.f32 %v2759, %v2760
      %v2792 = vadd.f32 %v2791, %v2761
      %v2793 = vadd.f32 %v2792, %v2762
      %v2794 = vadd.f32 %v2793, %v2763
      %v2795 = vadd.f32 %v2794, %v2764
      %v2796 = vadd.f32 %v2795, %v2765
      %v2797 = vadd.f32 %v2796, %v2766
      %v2798 = vadd.f32 %v2797, %v2767
      %v2799 = vadd.f32 %v2798, %v2768
      %v2800 = vadd.f32 %v2799, %v2769
      %v2801 = vadd.f32 %v2800, %v2770
      %v2802 = vadd.f32 %v2801, %v2771
      %v2803 = vadd.f32 %v2802, %v2772
      %v2804 = vadd.f32 %v2803, %v2773
      %v2805 = vadd.f32 %v2804, %v2774
      %v2806 = vadd.f32 %v2805, %v2775
      %v2807 = vadd.f32 %v2806, %v2776
      %v2808 = vadd.f32 %v2807, %v2777
      %v2809 = vadd.f32 %v2808, %v2778
      %v2810 = vadd.f32 %v2809, %v2779
      %v2811 = vadd.f32 %v2810, %v2780
      %v2812 = vadd.f32 %v2811, %v2781
      %v2813 = vadd.f32 %v2812, %v2782
      %v2814 = vadd.f32 %v2813, %v2783
      %v2815 = vadd.f32 %v2814, %v2784
      %v2816 = vadd.f32 %v2815, %v2785
      %v2817 = vadd.f32 %v2816, %v2786
      %v2818 = vadd.f32 %v2817, %v2787
      %v2819 = vadd.f32 %v2818, %v2788
      %v2820 = vadd.f32 %v2819, %v2789
      %v2821 = vadd.f32 %v2820, %v2790
      %v2822 = vrot.slane %v2821, 4
      %v2823 = vadd.f32 %v2821, %v2822
      %v2824 = vrot.slane %v2823, 2
      %v2825 = vadd.f32 %v2823, %v2824
      %v2826 = vrot.slane %v2825, 1
      %v2827 = vadd.f32 %v2825, %v2826
      %vm2828 = vcmask 1040384
      %v2829 = vsel %vm2828, %v2652, %v2721
      %vm2830 = vcmask 1041408
      %v2831 = vsel %vm2830, %v2829, %v2758
      %vm2832 = vcmask 1042432
      %v2833 = vsel %vm2832, %v2831, %v2827
      %2834 = vst [vmem:[%s490] sm:$0xf] %v2833
      %s2835 = smul.u32 16, %s24
      %p2836 = scmp.lt.s32.totalorder %s23, 1
      %s2837 = scalar_select %p2836, %s23, 1
      %p2838 = scmp.lt.s32.totalorder %s2835, 15
      %s2839 = scalar_select %p2838, %s2835, 15
      %s2840 = smul.addr %s2839, 2
      %s2841 = smul.addr %s2837, 32
      %s2842 = sadd.s32 %s2840, %s2841
      %s2843 = smul.addr %s2842, 4
      %s2844 = scalar_lea.vmem %s5, %s2843
      %s2845 = smul.u32 16, %s24
      %p2846 = scmp.lt.s32.totalorder %s23, 1
      %s2847 = scalar_select %p2846, %s23, 1
      %p2848 = scmp.lt.s32.totalorder %s2845, 15
      %s2849 = scalar_select %p2848, %s2845, 15
      %s2850 = smul.addr %s2849, 2
      %s2851 = smul.addr %s2847, 32
      %s2852 = sadd.s32 %s2850, %s2851
      %s2853 = smul.addr %s2852, 4
      %s2854 = scalar_lea.vmem %s6, %s2853
      %p2855 = scmp.lt.s32.totalorder %s23, 1
      %s2856 = scalar_select %p2855, %s23, 1
      %p2857 = scmp.lt.s32.totalorder %s24, 0
      %s2858 = scalar_select %p2857, %s24, 0
      %s2859 = sadd.s32 %s2858, %s2856
      %s2860 = smul.addr %s2859, 4
      %s2861 = scalar_lea.vmem %s7, %s2860
      // Predicated region
      $region41: #{residual_block.3} parent=39 // pred_check
        %p2862 = pneg %p193
      $region42: #{residual_block.3} parent=39 // pred_check_branch
        %2864 = sbr.rel (%p2862) target = $region44
      $region43: #{residual_block.3} parent=39 // pred_region
        %s2865 = smul.u32 16, %s24
      $region44: #{residual_block.3} parent=39 // pred_fallthru
        _
      // Predicated region
      $region45: #{residual_block.3} parent=39 // pred_check
        %p2866 = pneg %p221
      $region46: #{residual_block.3} parent=39 // pred_check_branch
        %2868 = sbr.rel (%p2866) target = $region48
      $region47: #{residual_block.3} parent=39 // pred_region
        %s2869 = smul.u32 16, %s24
      $region48: #{residual_block.3} parent=39 // pred_fallthru
        _
      // Predicated region
      $region49: #{residual_block.3} parent=39 // pred_check
        %p2870 = pneg %p249
      $region50: #{residual_block.3} parent=39 // pred_check_branch
        %2872 = sbr.rel (%p2870) target = $region52
      $region51: #{residual_block.3} parent=39 // pred_region
        _
      $region52: #{residual_block.3} parent=39 // pred_fallthru
        _
    $region40: #{residual_block.3} parent=5 // pred_fallthru
      _
    %p2873 = scmp.le.s32.totalorder 2, %s14
    // Predicated region
    $region53: #{residual_block.3} parent=5 // pred_check
      %p2874 = pneg %p2873
    $region54: #{residual_block.3} parent=5 // pred_check_branch
      %2876 = sbr.rel (%p2874) target = $region56
    $region55: #{residual_block.3} parent=5 // pred_region
      %s2877 = ssub.s32 %s14, 2
      // Predicated region
      $region57: #{residual_block.3} parent=55 // pred_check
        %p2878 = pneg %p199
      $region58: #{residual_block.3} parent=55 // pred_check_branch
        %2880 = sbr.rel (%p2878) target = $region60
      $region59: #{residual_block.3} parent=55 // pred_region
        %s2881 = smul.u32 16, %s26
        %p2882 = scmp.lt.s32.totalorder %s25, 1
        %s2883 = scalar_select %p2882, %s25, 1
        %p2884 = scmp.lt.s32.totalorder %s2881, 15
        %s2885 = scalar_select %p2884, %s2881, 15
        %s2886 = smul.addr %s2885, 2
        %s2887 = smul.addr %s2883, 32
        %s2888 = sadd.s32 %s2886, %s2887
        %s2889 = smul.addr %s2888, 4
        %s2890 = scalar_lea.vmem %s5, %s2889
      $region60: #{residual_block.3} parent=55 // pred_fallthru
        _
      // Predicated region
      $region61: #{residual_block.3} parent=55 // pred_check
        %p2891 = pneg %p227
      $region62: #{residual_block.3} parent=55 // pred_check_branch
        %2893 = sbr.rel (%p2891) target = $region64
      $region63: #{residual_block.3} parent=55 // pred_region
        %s2894 = smul.u32 16, %s26
        %p2895 = scmp.lt.s32.totalorder %s25, 1
        %s2896 = scalar_select %p2895, %s25, 1
        %p2897 = scmp.lt.s32.totalorder %s2894, 15
        %s2898 = scalar_select %p2897, %s2894, 15
        %s2899 = smul.addr %s2898, 2
        %s2900 = smul.addr %s2896, 32
        %s2901 = sadd.s32 %s2899, %s2900
        %s2902 = smul.addr %s2901, 4
        %s2903 = scalar_lea.vmem %s6, %s2902
      $region64: #{residual_block.3} parent=55 // pred_fallthru
        _
      // Predicated region
      $region65: #{residual_block.3} parent=55 // pred_check
        %p2904 = pneg %p255
      $region66: #{residual_block.3} parent=55 // pred_check_branch
        %2906 = sbr.rel (%p2904) target = $region68
      $region67: #{residual_block.3} parent=55 // pred_region
        %p2907 = scmp.lt.s32.totalorder %s25, 1
        %s2908 = scalar_select %p2907, %s25, 1
        %p2909 = scmp.lt.s32.totalorder %s26, 0
        %s2910 = scalar_select %p2909, %s26, 0
        %s2911 = sadd.s32 %s2910, %s2908
        %s2912 = smul.addr %s2911, 4
        %s2913 = scalar_lea.vmem %s7, %s2912
      $region68: #{residual_block.3} parent=55 // pred_fallthru
        _
    $region56: #{residual_block.3} parent=5 // pred_fallthru
      _
  $region6: #{residual_block.3} parent=0 // loop_footer
    %s18 = sadd.s32 1, %s14
  $region7: #{residual_block.3} parent=0 // loop_footer_branch
    %13 = sbr.rel target = $region3
  $region8: #{residual_block.3} parent=0 // loop_exit
    _

</llo_original>
